<compile_context>
chip_gen: v5e
topology: v5e:2x2
jax: 0.10.0
libtpu: 0.0.40
codegen_flags: <defaults>
</compile_context>

<pallas_src>
import functools

import numpy as np

import jax
import jax.numpy as jnp
from jax.experimental import pallas as pl
from jax.experimental.pallas import tpu as pltpu


# -----------------------------------------------------------------------------
# Deterministic stand-in parameters (same architecture/init as the reference).
# -----------------------------------------------------------------------------
def _conv_param(key, kh, kw, cin, cout):
    kw_, kb_ = jax.random.split(key)
    scale = 1.0 / np.sqrt(kh * kw * cin)
    w = jax.random.normal(kw_, (kh, kw, cin, cout), jnp.float32) * scale
    b = jax.random.normal(kb_, (cout,), jnp.float32) * 0.01
    return w, b


def _fc_param(key, fin, fout):
    kw_, kb_ = jax.random.split(key)
    scale = 1.0 / np.sqrt(fin)
    w = jax.random.normal(kw_, (fin, fout), jnp.float32) * scale
    b = jax.random.normal(kb_, (fout,), jnp.float32) * 0.01
    return w, b


def init_params(key):
    ks = jax.random.split(key, 10)
    p = {}
    # Component_AE encoder ('face'): sketch [B,1,16,16] -> latent [B,32]
    p["enc_conv1"] = _conv_param(ks[0], 3, 3, 1, 8)     # stride 2 -> 8x8
    p["enc_conv2"] = _conv_param(ks[1], 3, 3, 8, 16)    # stride 2 -> 4x4
    p["enc_fc"] = _fc_param(ks[2], 16 * 4 * 4, 32)
    # Feature_Decoder ('face'): latent [B,32] -> feature map [B,8,16,16]
    p["dec_fc"] = _fc_param(ks[3], 32, 16 * 4 * 4)
    p["dec_conv1"] = _conv_param(ks[4], 3, 3, 16, 8)    # after 2x upsample (4->8)
    p["dec_conv2"] = _conv_param(ks[5], 3, 3, 8, 8)     # after 2x upsample (8->16)
    # netG: concat(decoded[8], target[3], hints[3]) = 14ch -> image [B,3,16,16]
    p["g_conv1"] = _conv_param(ks[6], 3, 3, 14, 16)
    p["g_conv2"] = _conv_param(ks[7], 3, 3, 16, 16)
    p["g_conv3"] = _conv_param(ks[8], 3, 3, 16, 3)
    return p


# -----------------------------------------------------------------------------
# Host-side weight preprocessing: fold im2col / stride / zero-pad / 2x upsample
# into constant matrices so the kernel is matmuls only.
#
# Activation layout inside the kernel (per sample): a2[h, w*C + c] = A[h, w, c].
# Conv:  y = sum_{di in 0..2} (S_di @ x2) @ Wband_di + tile(bias)
# -----------------------------------------------------------------------------
def _row_shift_mats(h_out, h_in, stride):
    """S[di, ho, hi] = 1 iff hi == ho*stride + di - 1 (zero rows at pad boundary)."""
    S = np.zeros((3, h_out, h_in), np.float32)
    for di in range(3):
        for ho in range(h_out):
            hi = ho * stride + di - 1
            if 0 <= hi < h_in:
                S[di, ho, hi] = 1.0
    return S


def _row_shift_up_mats(h_src):
    """Row-tap selection fused with nearest 2x row-upsample (conv stride 1, pad 1)."""
    h_out = 2 * h_src
    S = np.zeros((3, h_out, h_src), np.float32)
    for di in range(3):
        for ho in range(h_out):
            hu = ho + di - 1
            if 0 <= hu < h_out:
                S[di, ho, hu // 2] = 1.0
    return S


def _band_mat(w, w_in, w_out, stride):
    """w: [3,3,Cin,Cout] -> [3*w_in*Cin, w_out*Cout] banded column/channel matrix."""
    w = np.asarray(w, np.float32)
    _, _, cin, cout = w.shape
    M = np.zeros((3, w_in, cin, w_out, cout), np.float32)
    for di in range(3):
        for dj in range(3):
            for wo in range(w_out):
                wi = wo * stride + dj - 1
                if 0 <= wi < w_in:
                    M[di, wi, :, wo, :] += w[di, dj]
    return M.reshape(3 * w_in * cin, w_out * cout)


def _band_mat_up(w, w_src):
    """Band matrix fused with nearest 2x column upsample (source width w_src)."""
    w = np.asarray(w, np.float32)
    w_out = 2 * w_src
    _, _, cin, cout = w.shape
    M = np.zeros((3, w_src, cin, w_out, cout), np.float32)
    for di in range(3):
        for dj in range(3):
            for wo in range(w_out):
                wu = wo + dj - 1
                if 0 <= wu < w_out:
                    M[di, wu // 2, :, wo, :] += w[di, dj]
    return M.reshape(3 * w_src * cin, w_out * cout)


def _tile_bias(b, w_out):
    """bias [Cout] -> [1, w_out*Cout] matching lane layout w*Cout + c."""
    b = np.asarray(b, np.float32)
    return np.tile(b, w_out)[None, :]


_PARAM_ORDER = [
    "enc1_S", "enc1_W", "enc1_b",
    "enc2_S", "enc2_W", "enc2_b",
    "encfc_W", "encfc_b",
    "decfc_W", "decfc_b",
    "dec1_S", "dec1_W", "dec1_b",
    "dec2_S", "dec2_W", "dec2_b",
    "s16",
    "g1_Wd", "g1_Wt", "g1_Wh", "g1_b",
    "g2_W", "g2_b",
    "g3_W", "g3_b",
]


def preprocess_params(params):
    prep = {}
    # encoder conv1: 16x16x1 -> 8x8x8, stride 2, pad 1
    w, b = params["enc_conv1"]
    prep["enc1_S"] = _row_shift_mats(8, 16, 2)
    prep["enc1_W"] = _band_mat(w, 16, 8, 2)
    prep["enc1_b"] = _tile_bias(b, 8)
    # encoder conv2: 8x8x8 -> 4x4x16, stride 2, pad 1
    w, b = params["enc_conv2"]
    prep["enc2_S"] = _row_shift_mats(4, 8, 2)
    prep["enc2_W"] = _band_mat(w, 8, 4, 2)
    prep["enc2_b"] = _tile_bias(b, 4)
    # encoder fc: 256 -> 32
    w, b = params["enc_fc"]
    prep["encfc_W"] = np.asarray(w, np.float32)
    prep["encfc_b"] = np.asarray(b, np.float32)[None, :]
    # decoder fc: 32 -> 256
    w, b = params["dec_fc"]
    prep["decfc_W"] = np.asarray(w, np.float32)
    prep["decfc_b"] = np.asarray(b, np.float32)[None, :]
    # decoder conv1: upsample(4->8) + 3x3 conv, 16 -> 8
    w, b = params["dec_conv1"]
    prep["dec1_S"] = _row_shift_up_mats(4)
    prep["dec1_W"] = _band_mat_up(w, 4)
    prep["dec1_b"] = _tile_bias(b, 8)
    # decoder conv2: upsample(8->16) + 3x3 conv, 8 -> 8
    w, b = params["dec_conv2"]
    prep["dec2_S"] = _row_shift_up_mats(8)
    prep["dec2_W"] = _band_mat_up(w, 8)
    prep["dec2_b"] = _tile_bias(b, 16)
    # shared 16x16 stride-1 row-tap matrices for netG
    prep["s16"] = _row_shift_mats(16, 16, 1)
    # netG conv1: channel-concat [decoded(8) | target(3) | hints(3)] folded into 3 band mats
    w, b = params["g_conv1"]
    w = np.asarray(w, np.float32)
    prep["g1_Wd"] = _band_mat(w[:, :, 0:8, :], 16, 16, 1)
    prep["g1_Wt"] = _band_mat(w[:, :, 8:11, :], 16, 16, 1)
    prep["g1_Wh"] = _band_mat(w[:, :, 11:14, :], 16, 16, 1)
    prep["g1_b"] = _tile_bias(b, 16)
    # netG conv2 / conv3
    w, b = params["g_conv2"]
    prep["g2_W"] = _band_mat(w, 16, 16, 1)
    prep["g2_b"] = _tile_bias(b, 16)
    w, b = params["g_conv3"]
    prep["g3_W"] = _band_mat(w, 16, 16, 1)
    prep["g3_b"] = _tile_bias(b, 16)
    return {k: jnp.asarray(v) for k, v in prep.items()}


# -----------------------------------------------------------------------------
# The single fused Pallas kernel: whole forward pass, one grid step per sample.
# -----------------------------------------------------------------------------
def _fused_forward_kernel(
    sketch_ref, target_ref, hints_ref,
    enc1_S, enc1_W, enc1_b,
    enc2_S, enc2_W, enc2_b,
    encfc_W, encfc_b,
    decfc_W, decfc_b,
    dec1_S, dec1_W, dec1_b,
    dec2_S, dec2_W, dec2_b,
    s16,
    g1_Wd, g1_Wt, g1_Wh, g1_b,
    g2_W, g2_b,
    g3_W, g3_b,
    out_ref,
):
    f32 = jnp.float32

    def taps_matmul(x, s_ref, w_ref):
        # 3 row-shift matmuls (S_tap @ x), lane-concat, one banded matmul.
        taps = [jnp.dot(s_ref[t], x, preferred_element_type=f32) for t in range(3)]
        cols = jnp.concatenate(taps, axis=-1)
        return jnp.dot(cols, w_ref[...], preferred_element_type=f32)

    def conv(x, s_ref, w_ref, b_ref, act):
        y = taps_matmul(x, s_ref, w_ref) + b_ref[...]
        if act == "relu":
            y = jnp.maximum(y, 0.0)
        elif act == "tanh":
            y = jnp.tanh(y)
        return y

    sketch = sketch_ref[0]   # [16, 16]   (H, W*1)
    target = target_ref[0]   # [16, 48]   (H, W*3)
    hints = hints_ref[0]     # [16, 48]

    # ---- Component_AE.get_latent ----
    x = conv(sketch, enc1_S, enc1_W, enc1_b, "relu")   # [8, 64]   = 8x8x8
    x = conv(x, enc2_S, enc2_W, enc2_b, "relu")        # [4, 64]   = 4x4x16
    flat = jnp.concatenate([x[0:1, :], x[1:2, :], x[2:3, :], x[3:4, :]], axis=-1)  # [1,256]
    latent = jnp.dot(flat, encfc_W[...], preferred_element_type=f32) + encfc_b[...]  # [1,32]

    # ---- Feature_Decoder ----
    h = jnp.dot(latent, decfc_W[...], preferred_element_type=f32) + decfc_b[...]   # [1,256]
    h = jnp.maximum(h, 0.0)
    x = jnp.concatenate(
        [h[:, 0:64], h[:, 64:128], h[:, 128:192], h[:, 192:256]], axis=0)          # [4,64] = 4x4x16
    x = conv(x, dec1_S, dec1_W, dec1_b, "relu")        # [8, 64]   (2x upsample folded)
    dec = conv(x, dec2_S, dec2_W, dec2_b, "relu")      # [16, 128] (2x upsample folded)

    # ---- netG ----  (channel concat of [dec | target | hints] folded into 3 band mats)
    pre = (taps_matmul(dec, s16, g1_Wd)
           + taps_matmul(target, s16, g1_Wt)
           + taps_matmul(hints, s16, g1_Wh)
           + g1_b[...])
    x = jnp.maximum(pre, 0.0)                          # [16, 256] = 16x16x16
    x = conv(x, s16, g2_W, g2_b, "relu")               # [16, 256]
    img = conv(x, s16, g3_W, g3_b, "tanh")             # [16, 48]  = 16x16x3

    out_ref[0] = img.astype(out_ref.dtype)


# -----------------------------------------------------------------------------
# Combined_Model.forward equivalent (NCHW in/out, like PyTorch)
# -----------------------------------------------------------------------------
def combined_model_forward(prep, sketch_nchw, target_nchw, user_hints_nchw=None):
    B, _, H, W = sketch_nchw.shape
    assert (H, W) == (16, 16), "stand-in geometry is 16x16"

    def to_lanes(t):  # NCHW -> [B, H, W*C] (channels-last, lane-dense)
        t = jnp.transpose(t.astype(jnp.float32), (0, 2, 3, 1))
        return t.reshape(t.shape[0], t.shape[1], t.shape[2] * t.shape[3])

    hints_nchw = (user_hints_nchw if user_hints_nchw is not None
                  else jnp.zeros_like(target_nchw))
    sketch2 = to_lanes(sketch_nchw)   # [B, 16, 16]
    target2 = to_lanes(target_nchw)   # [B, 16, 48]
    hints2 = to_lanes(hints_nchw)     # [B, 16, 48]

    param_list = [prep[k] for k in _PARAM_ORDER]

    act_specs = [
        pl.BlockSpec((1, 16, sketch2.shape[-1]), lambda i: (i, 0, 0)),
        pl.BlockSpec((1, 16, target2.shape[-1]), lambda i: (i, 0, 0)),
        pl.BlockSpec((1, 16, hints2.shape[-1]), lambda i: (i, 0, 0)),
    ]
    param_specs = [
        pl.BlockSpec(p.shape, lambda i, _nd=p.ndim: (0,) * _nd) for p in param_list
    ]

    param_bytes = sum(int(np.prod(p.shape)) * 4 for p in param_list)
    act_bytes = B * 4 * (16 * 16 + 2 * 16 * 48 + 16 * 48)
    cost = pl.CostEstimate(
        flops=int(1.6e7) * B,            # ~8M MACs/sample through the band matmuls
        transcendentals=16 * 48 * B,     # final tanh
        bytes_accessed=param_bytes + act_bytes,
    )

    img2 = pl.pallas_call(
        _fused_forward_kernel,
        out_shape=jax.ShapeDtypeStruct((B, 16, 16 * 3), jnp.float32),
        grid=(B,),
        in_specs=act_specs + param_specs,
        out_specs=pl.BlockSpec((1, 16, 16 * 3), lambda i: (i, 0, 0)),
        compiler_params=pltpu.CompilerParams(
            dimension_semantics=("parallel",),        # batch sharded across TCs on v7x
            vmem_limit_bytes=32 * 1024 * 1024,
        ),
        cost_estimate=cost,
    )(sketch2, target2, hints2, *param_list)

    img = jnp.transpose(img2.reshape(B, 16, 16, 3), (0, 3, 1, 2))   # back to NCHW
    return img, hints_nchw


if __name__ == "__main__":
    key = jax.random.PRNGKey(0)
    k_p, k_s, k_t, k_h = jax.random.split(key, 4)

    params = init_params(k_p)
    prep = preprocess_params(params)   # one-time host-side weight folding

    sketch = jax.random.normal(k_s, (2, 1, 16, 16), jnp.float32)      # NCHW
    target = jax.random.normal(k_t, (2, 3, 16, 16), jnp.float32)      # NCHW
    user_hints = jax.random.normal(k_h, (2, 3, 16, 16), jnp.float32)  # NCHW

    fwd = jax.jit(combined_model_forward)
    generated_image, hints = fwd(prep, sketch, target, user_hints)
    jax.block_until_ready((generated_image, hints))

    assert generated_image.shape == (2, 3, 16, 16)
    assert hints.shape == (2, 3, 16, 16)
    assert bool(jnp.all(jnp.isfinite(generated_image)))
    print("KERNEL_OK")
</pallas_src>

<mosaic_0001>
module attributes {stable_mosaic.version = 11 : i64} {
  func.func @_fused_forward_kernel(%arg0: i32, %arg1: memref<1x16x16xf32, #tpu.memory_space<vmem>>, %arg2: memref<1x16x48xf32, #tpu.memory_space<vmem>>, %arg3: memref<1x16x48xf32, #tpu.memory_space<vmem>>, %arg4: memref<3x8x16xf32, #tpu.memory_space<vmem>>, %arg5: memref<48x64xf32, #tpu.memory_space<vmem>>, %arg6: memref<1x64xf32, #tpu.memory_space<vmem>>, %arg7: memref<3x4x8xf32, #tpu.memory_space<vmem>>, %arg8: memref<192x64xf32, #tpu.memory_space<vmem>>, %arg9: memref<1x64xf32, #tpu.memory_space<vmem>>, %arg10: memref<256x32xf32, #tpu.memory_space<vmem>>, %arg11: memref<1x32xf32, #tpu.memory_space<vmem>>, %arg12: memref<32x256xf32, #tpu.memory_space<vmem>>, %arg13: memref<1x256xf32, #tpu.memory_space<vmem>>, %arg14: memref<3x8x4xf32, #tpu.memory_space<vmem>>, %arg15: memref<192x64xf32, #tpu.memory_space<vmem>>, %arg16: memref<1x64xf32, #tpu.memory_space<vmem>>, %arg17: memref<3x16x8xf32, #tpu.memory_space<vmem>>, %arg18: memref<192x128xf32, #tpu.memory_space<vmem>>, %arg19: memref<1x128xf32, #tpu.memory_space<vmem>>, %arg20: memref<3x16x16xf32, #tpu.memory_space<vmem>>, %arg21: memref<384x256xf32, #tpu.memory_space<vmem>>, %arg22: memref<144x256xf32, #tpu.memory_space<vmem>>, %arg23: memref<144x256xf32, #tpu.memory_space<vmem>>, %arg24: memref<1x256xf32, #tpu.memory_space<vmem>>, %arg25: memref<768x256xf32, #tpu.memory_space<vmem>>, %arg26: memref<1x256xf32, #tpu.memory_space<vmem>>, %arg27: memref<768x48xf32, #tpu.memory_space<vmem>>, %arg28: memref<1x48xf32, #tpu.memory_space<vmem>>, %arg29: memref<1x16x48xf32, #tpu.memory_space<vmem>>) attributes {dimension_semantics = [#tpu.dimension_semantics<parallel>], iteration_bounds = array<i64: 2>, scalar_prefetch = 0 : i64, scratch_operands = 0 : i64, tpu.core_type = #tpu.core_type<tc>, window_params = [{transform_indices = @transform_0, window_bounds = array<i64: 1, 16, 16>}, {transform_indices = @transform_1, window_bounds = array<i64: 1, 16, 48>}, {transform_indices = @transform_2, window_bounds = array<i64: 1, 16, 48>}, {pipeline_mode = #tpu.pipeline_mode<synchronous>, transform_indices = @transform_3, window_bounds = array<i64: 3, 8, 16>}, {pipeline_mode = #tpu.pipeline_mode<synchronous>, transform_indices = @transform_4, window_bounds = array<i64: 48, 64>}, {pipeline_mode = #tpu.pipeline_mode<synchronous>, transform_indices = @transform_5, window_bounds = array<i64: 1, 64>}, {pipeline_mode = #tpu.pipeline_mode<synchronous>, transform_indices = @transform_6, window_bounds = array<i64: 3, 4, 8>}, {pipeline_mode = #tpu.pipeline_mode<synchronous>, transform_indices = @transform_7, window_bounds = array<i64: 192, 64>}, {pipeline_mode = #tpu.pipeline_mode<synchronous>, transform_indices = @transform_8, window_bounds = array<i64: 1, 64>}, {pipeline_mode = #tpu.pipeline_mode<synchronous>, transform_indices = @transform_9, window_bounds = array<i64: 256, 32>}, {pipeline_mode = #tpu.pipeline_mode<synchronous>, transform_indices = @transform_10, window_bounds = array<i64: 1, 32>}, {pipeline_mode = #tpu.pipeline_mode<synchronous>, transform_indices = @transform_11, window_bounds = array<i64: 32, 256>}, {pipeline_mode = #tpu.pipeline_mode<synchronous>, transform_indices = @transform_12, window_bounds = array<i64: 1, 256>}, {pipeline_mode = #tpu.pipeline_mode<synchronous>, transform_indices = @transform_13, window_bounds = array<i64: 3, 8, 4>}, {pipeline_mode = #tpu.pipeline_mode<synchronous>, transform_indices = @transform_14, window_bounds = array<i64: 192, 64>}, {pipeline_mode = #tpu.pipeline_mode<synchronous>, transform_indices = @transform_15, window_bounds = array<i64: 1, 64>}, {pipeline_mode = #tpu.pipeline_mode<synchronous>, transform_indices = @transform_16, window_bounds = array<i64: 3, 16, 8>}, {pipeline_mode = #tpu.pipeline_mode<synchronous>, transform_indices = @transform_17, window_bounds = array<i64: 192, 128>}, {pipeline_mode = #tpu.pipeline_mode<synchronous>, transform_indices = @transform_18, window_bounds = array<i64: 1, 128>}, {pipeline_mode = #tpu.pipeline_mode<synchronous>, transform_indices = @transform_19, window_bounds = array<i64: 3, 16, 16>}, {pipeline_mode = #tpu.pipeline_mode<synchronous>, transform_indices = @transform_20, window_bounds = array<i64: 384, 256>}, {pipeline_mode = #tpu.pipeline_mode<synchronous>, transform_indices = @transform_21, window_bounds = array<i64: 144, 256>}, {pipeline_mode = #tpu.pipeline_mode<synchronous>, transform_indices = @transform_22, window_bounds = array<i64: 144, 256>}, {pipeline_mode = #tpu.pipeline_mode<synchronous>, transform_indices = @transform_23, window_bounds = array<i64: 1, 256>}, {pipeline_mode = #tpu.pipeline_mode<synchronous>, transform_indices = @transform_24, window_bounds = array<i64: 768, 256>}, {pipeline_mode = #tpu.pipeline_mode<synchronous>, transform_indices = @transform_25, window_bounds = array<i64: 1, 256>}, {pipeline_mode = #tpu.pipeline_mode<synchronous>, transform_indices = @transform_26, window_bounds = array<i64: 768, 48>}, {pipeline_mode = #tpu.pipeline_mode<synchronous>, transform_indices = @transform_27, window_bounds = array<i64: 1, 48>}, {transform_indices = @transform_28, window_bounds = array<i64: 1, 16, 48>}]} {
    %c0 = arith.constant 0 : index
    %c0_0 = arith.constant 0 : index
    %c0_1 = arith.constant 0 : index
    %0 = vector.load %arg1[%c0, %c0_0, %c0_1] : memref<1x16x16xf32, #tpu.memory_space<vmem>>, vector<1x16x16xf32>
    %1 = vector.shape_cast %0 : vector<1x16x16xf32> to vector<16x16xf32>
    %c0_2 = arith.constant 0 : index
    %c0_3 = arith.constant 0 : index
    %c0_4 = arith.constant 0 : index
    %2 = vector.load %arg2[%c0_2, %c0_3, %c0_4] : memref<1x16x48xf32, #tpu.memory_space<vmem>>, vector<1x16x48xf32>
    %3 = vector.shape_cast %2 : vector<1x16x48xf32> to vector<16x48xf32>
    %c0_5 = arith.constant 0 : index
    %c0_6 = arith.constant 0 : index
    %c0_7 = arith.constant 0 : index
    %4 = vector.load %arg3[%c0_5, %c0_6, %c0_7] : memref<1x16x48xf32, #tpu.memory_space<vmem>>, vector<1x16x48xf32>
    %5 = vector.shape_cast %4 : vector<1x16x48xf32> to vector<16x48xf32>
    %c0_8 = arith.constant 0 : index
    %c0_9 = arith.constant 0 : index
    %c0_10 = arith.constant 0 : index
    %6 = vector.load %arg4[%c0_8, %c0_9, %c0_10] : memref<3x8x16xf32, #tpu.memory_space<vmem>>, vector<1x8x16xf32>
    %7 = vector.shape_cast %6 : vector<1x8x16xf32> to vector<8x16xf32>
    %cst = arith.constant dense<0.000000e+00> : vector<8x16xf32>
    %8 = tpu.matmul %7, %1, %cst {dimension_numbers = #tpu.dot_dimension_numbers<[1], [0], [0], [1], [0, 0, 1, 1], [], []>} : vector<8x16xf32>, vector<16x16xf32>, vector<8x16xf32> -> vector<8x16xf32>
    %c1 = arith.constant 1 : index
    %c0_11 = arith.constant 0 : index
    %c0_12 = arith.constant 0 : index
    %9 = vector.load %arg4[%c1, %c0_11, %c0_12] : memref<3x8x16xf32, #tpu.memory_space<vmem>>, vector<1x8x16xf32>
    %10 = vector.shape_cast %9 : vector<1x8x16xf32> to vector<8x16xf32>
    %cst_13 = arith.constant dense<0.000000e+00> : vector<8x16xf32>
    %11 = tpu.matmul %10, %1, %cst_13 {dimension_numbers = #tpu.dot_dimension_numbers<[1], [0], [0], [1], [0, 0, 1, 1], [], []>} : vector<8x16xf32>, vector<16x16xf32>, vector<8x16xf32> -> vector<8x16xf32>
    %c2 = arith.constant 2 : index
    %c0_14 = arith.constant 0 : index
    %c0_15 = arith.constant 0 : index
    %12 = vector.load %arg4[%c2, %c0_14, %c0_15] : memref<3x8x16xf32, #tpu.memory_space<vmem>>, vector<1x8x16xf32>
    %13 = vector.shape_cast %12 : vector<1x8x16xf32> to vector<8x16xf32>
    %cst_16 = arith.constant dense<0.000000e+00> : vector<8x16xf32>
    %14 = tpu.matmul %13, %1, %cst_16 {dimension_numbers = #tpu.dot_dimension_numbers<[1], [0], [0], [1], [0, 0, 1, 1], [], []>} : vector<8x16xf32>, vector<16x16xf32>, vector<8x16xf32> -> vector<8x16xf32>
    %15 = tpu.concatenate %8, %11, %14 in 1 : vector<8x16xf32>, vector<8x16xf32>, vector<8x16xf32> -> vector<8x48xf32>
    %c0_17 = arith.constant 0 : index
    %c0_18 = arith.constant 0 : index
    %16 = vector.load %arg5[%c0_17, %c0_18] : memref<48x64xf32, #tpu.memory_space<vmem>>, vector<48x64xf32>
    %cst_19 = arith.constant dense<0.000000e+00> : vector<8x64xf32>
    %17 = tpu.matmul %15, %16, %cst_19 {dimension_numbers = #tpu.dot_dimension_numbers<[1], [0], [0], [1], [0, 0, 1, 1], [], []>} : vector<8x48xf32>, vector<48x64xf32>, vector<8x64xf32> -> vector<8x64xf32>
    %c0_20 = arith.constant 0 : index
    %c0_21 = arith.constant 0 : index
    %18 = vector.load %arg6[%c0_20, %c0_21] : memref<1x64xf32, #tpu.memory_space<vmem>>, vector<1x64xf32>
    %19 = vector.broadcast %18 : vector<1x64xf32> to vector<8x64xf32>
    %20 = arith.addf %17, %19 : vector<8x64xf32>
    %cst_22 = arith.constant 0.000000e+00 : f32
    %21 = vector.broadcast %cst_22 : f32 to vector<8x64xf32>
    %22 = arith.maximumf %20, %21 : vector<8x64xf32>
    %c0_23 = arith.constant 0 : index
    %c0_24 = arith.constant 0 : index
    %c0_25 = arith.constant 0 : index
    %23 = vector.load %arg7[%c0_23, %c0_24, %c0_25] : memref<3x4x8xf32, #tpu.memory_space<vmem>>, vector<1x4x8xf32>
    %24 = vector.shape_cast %23 : vector<1x4x8xf32> to vector<4x8xf32>
    %cst_26 = arith.constant dense<0.000000e+00> : vector<4x64xf32>
    %25 = tpu.matmul %24, %22, %cst_26 {dimension_numbers = #tpu.dot_dimension_numbers<[1], [0], [0], [1], [0, 0, 1, 1], [], []>} : vector<4x8xf32>, vector<8x64xf32>, vector<4x64xf32> -> vector<4x64xf32>
    %c1_27 = arith.constant 1 : index
    %c0_28 = arith.constant 0 : index
    %c0_29 = arith.constant 0 : index
    %26 = vector.load %arg7[%c1_27, %c0_28, %c0_29] : memref<3x4x8xf32, #tpu.memory_space<vmem>>, vector<1x4x8xf32>
    %27 = vector.shape_cast %26 : vector<1x4x8xf32> to vector<4x8xf32>
    %cst_30 = arith.constant dense<0.000000e+00> : vector<4x64xf32>
    %28 = tpu.matmul %27, %22, %cst_30 {dimension_numbers = #tpu.dot_dimension_numbers<[1], [0], [0], [1], [0, 0, 1, 1], [], []>} : vector<4x8xf32>, vector<8x64xf32>, vector<4x64xf32> -> vector<4x64xf32>
    %c2_31 = arith.constant 2 : index
    %c0_32 = arith.constant 0 : index
    %c0_33 = arith.constant 0 : index
    %29 = vector.load %arg7[%c2_31, %c0_32, %c0_33] : memref<3x4x8xf32, #tpu.memory_space<vmem>>, vector<1x4x8xf32>
    %30 = vector.shape_cast %29 : vector<1x4x8xf32> to vector<4x8xf32>
    %cst_34 = arith.constant dense<0.000000e+00> : vector<4x64xf32>
    %31 = tpu.matmul %30, %22, %cst_34 {dimension_numbers = #tpu.dot_dimension_numbers<[1], [0], [0], [1], [0, 0, 1, 1], [], []>} : vector<4x8xf32>, vector<8x64xf32>, vector<4x64xf32> -> vector<4x64xf32>
    %32 = tpu.concatenate %25, %28, %31 in 1 : vector<4x64xf32>, vector<4x64xf32>, vector<4x64xf32> -> vector<4x192xf32>
    %c0_35 = arith.constant 0 : index
    %c0_36 = arith.constant 0 : index
    %33 = vector.load %arg8[%c0_35, %c0_36] : memref<192x64xf32, #tpu.memory_space<vmem>>, vector<192x64xf32>
    %cst_37 = arith.constant dense<0.000000e+00> : vector<4x64xf32>
    %34 = tpu.matmul %32, %33, %cst_37 {dimension_numbers = #tpu.dot_dimension_numbers<[1], [0], [0], [1], [0, 0, 1, 1], [], []>} : vector<4x192xf32>, vector<192x64xf32>, vector<4x64xf32> -> vector<4x64xf32>
    %c0_38 = arith.constant 0 : index
    %c0_39 = arith.constant 0 : index
    %35 = vector.load %arg9[%c0_38, %c0_39] : memref<1x64xf32, #tpu.memory_space<vmem>>, vector<1x64xf32>
    %36 = vector.broadcast %35 : vector<1x64xf32> to vector<4x64xf32>
    %37 = arith.addf %34, %36 : vector<4x64xf32>
    %cst_40 = arith.constant 0.000000e+00 : f32
    %38 = vector.broadcast %cst_40 : f32 to vector<4x64xf32>
    %39 = arith.maximumf %37, %38 : vector<4x64xf32>
    %40 = vector.extract_strided_slice %39 {offsets = [0, 0], sizes = [1, 64], strides = [1, 1]} : vector<4x64xf32> to vector<1x64xf32>
    %41 = vector.extract_strided_slice %39 {offsets = [1, 0], sizes = [1, 64], strides = [1, 1]} : vector<4x64xf32> to vector<1x64xf32>
    %42 = vector.extract_strided_slice %39 {offsets = [2, 0], sizes = [1, 64], strides = [1, 1]} : vector<4x64xf32> to vector<1x64xf32>
    %43 = vector.extract_strided_slice %39 {offsets = [3, 0], sizes = [1, 64], strides = [1, 1]} : vector<4x64xf32> to vector<1x64xf32>
    %44 = tpu.concatenate %40, %41, %42, %43 in 1 : vector<1x64xf32>, vector<1x64xf32>, vector<1x64xf32>, vector<1x64xf32> -> vector<1x256xf32>
    %c0_41 = arith.constant 0 : index
    %c0_42 = arith.constant 0 : index
    %45 = vector.load %arg10[%c0_41, %c0_42] : memref<256x32xf32, #tpu.memory_space<vmem>>, vector<256x32xf32>
    %cst_43 = arith.constant dense<0.000000e+00> : vector<1x32xf32>
    %46 = tpu.matmul %44, %45, %cst_43 {dimension_numbers = #tpu.dot_dimension_numbers<[1], [0], [0], [1], [0, 0, 1, 1], [], []>} : vector<1x256xf32>, vector<256x32xf32>, vector<1x32xf32> -> vector<1x32xf32>
    %c0_44 = arith.constant 0 : index
    %c0_45 = arith.constant 0 : index
    %47 = vector.load %arg11[%c0_44, %c0_45] : memref<1x32xf32, #tpu.memory_space<vmem>>, vector<1x32xf32>
    %48 = arith.addf %46, %47 : vector<1x32xf32>
    %c0_46 = arith.constant 0 : index
    %c0_47 = arith.constant 0 : index
    %49 = vector.load %arg12[%c0_46, %c0_47] : memref<32x256xf32, #tpu.memory_space<vmem>>, vector<32x256xf32>
    %cst_48 = arith.constant dense<0.000000e+00> : vector<1x256xf32>
    %50 = tpu.matmul %48, %49, %cst_48 {dimension_numbers = #tpu.dot_dimension_numbers<[1], [0], [0], [1], [0, 0, 1, 1], [], []>} : vector<1x32xf32>, vector<32x256xf32>, vector<1x256xf32> -> vector<1x256xf32>
    %c0_49 = arith.constant 0 : index
    %c0_50 = arith.constant 0 : index
    %51 = vector.load %arg13[%c0_49, %c0_50] : memref<1x256xf32, #tpu.memory_space<vmem>>, vector<1x256xf32>
    %52 = arith.addf %50, %51 : vector<1x256xf32>
    %cst_51 = arith.constant 0.000000e+00 : f32
    %53 = vector.broadcast %cst_51 : f32 to vector<1x256xf32>
    %54 = arith.maximumf %52, %53 : vector<1x256xf32>
    %55 = vector.extract_strided_slice %54 {offsets = [0, 0], sizes = [1, 64], strides = [1, 1]} : vector<1x256xf32> to vector<1x64xf32>
    %56 = vector.extract_strided_slice %54 {offsets = [0, 64], sizes = [1, 64], strides = [1, 1]} : vector<1x256xf32> to vector<1x64xf32>
    %57 = vector.extract_strided_slice %54 {offsets = [0, 128], sizes = [1, 64], strides = [1, 1]} : vector<1x256xf32> to vector<1x64xf32>
    %58 = vector.extract_strided_slice %54 {offsets = [0, 192], sizes = [1, 64], strides = [1, 1]} : vector<1x256xf32> to vector<1x64xf32>
    %59 = tpu.concatenate %55, %56, %57, %58 in 0 : vector<1x64xf32>, vector<1x64xf32>, vector<1x64xf32>, vector<1x64xf32> -> vector<4x64xf32>
    %c0_52 = arith.constant 0 : index
    %c0_53 = arith.constant 0 : index
    %c0_54 = arith.constant 0 : index
    %60 = vector.load %arg14[%c0_52, %c0_53, %c0_54] : memref<3x8x4xf32, #tpu.memory_space<vmem>>, vector<1x8x4xf32>
    %61 = vector.shape_cast %60 : vector<1x8x4xf32> to vector<8x4xf32>
    %cst_55 = arith.constant dense<0.000000e+00> : vector<8x64xf32>
    %62 = tpu.matmul %61, %59, %cst_55 {dimension_numbers = #tpu.dot_dimension_numbers<[1], [0], [0], [1], [0, 0, 1, 1], [], []>} : vector<8x4xf32>, vector<4x64xf32>, vector<8x64xf32> -> vector<8x64xf32>
    %c1_56 = arith.constant 1 : index
    %c0_57 = arith.constant 0 : index
    %c0_58 = arith.constant 0 : index
    %63 = vector.load %arg14[%c1_56, %c0_57, %c0_58] : memref<3x8x4xf32, #tpu.memory_space<vmem>>, vector<1x8x4xf32>
    %64 = vector.shape_cast %63 : vector<1x8x4xf32> to vector<8x4xf32>
    %cst_59 = arith.constant dense<0.000000e+00> : vector<8x64xf32>
    %65 = tpu.matmul %64, %59, %cst_59 {dimension_numbers = #tpu.dot_dimension_numbers<[1], [0], [0], [1], [0, 0, 1, 1], [], []>} : vector<8x4xf32>, vector<4x64xf32>, vector<8x64xf32> -> vector<8x64xf32>
    %c2_60 = arith.constant 2 : index
    %c0_61 = arith.constant 0 : index
    %c0_62 = arith.constant 0 : index
    %66 = vector.load %arg14[%c2_60, %c0_61, %c0_62] : memref<3x8x4xf32, #tpu.memory_space<vmem>>, vector<1x8x4xf32>
    %67 = vector.shape_cast %66 : vector<1x8x4xf32> to vector<8x4xf32>
    %cst_63 = arith.constant dense<0.000000e+00> : vector<8x64xf32>
    %68 = tpu.matmul %67, %59, %cst_63 {dimension_numbers = #tpu.dot_dimension_numbers<[1], [0], [0], [1], [0, 0, 1, 1], [], []>} : vector<8x4xf32>, vector<4x64xf32>, vector<8x64xf32> -> vector<8x64xf32>
    %69 = tpu.concatenate %62, %65, %68 in 1 : vector<8x64xf32>, vector<8x64xf32>, vector<8x64xf32> -> vector<8x192xf32>
    %c0_64 = arith.constant 0 : index
    %c0_65 = arith.constant 0 : index
    %70 = vector.load %arg15[%c0_64, %c0_65] : memref<192x64xf32, #tpu.memory_space<vmem>>, vector<192x64xf32>
    %cst_66 = arith.constant dense<0.000000e+00> : vector<8x64xf32>
    %71 = tpu.matmul %69, %70, %cst_66 {dimension_numbers = #tpu.dot_dimension_numbers<[1], [0], [0], [1], [0, 0, 1, 1], [], []>} : vector<8x192xf32>, vector<192x64xf32>, vector<8x64xf32> -> vector<8x64xf32>
    %c0_67 = arith.constant 0 : index
    %c0_68 = arith.constant 0 : index
    %72 = vector.load %arg16[%c0_67, %c0_68] : memref<1x64xf32, #tpu.memory_space<vmem>>, vector<1x64xf32>
    %73 = vector.broadcast %72 : vector<1x64xf32> to vector<8x64xf32>
    %74 = arith.addf %71, %73 : vector<8x64xf32>
    %cst_69 = arith.constant 0.000000e+00 : f32
    %75 = vector.broadcast %cst_69 : f32 to vector<8x64xf32>
    %76 = arith.maximumf %74, %75 : vector<8x64xf32>
    %c0_70 = arith.constant 0 : index
    %c0_71 = arith.constant 0 : index
    %c0_72 = arith.constant 0 : index
    %77 = vector.load %arg17[%c0_70, %c0_71, %c0_72] : memref<3x16x8xf32, #tpu.memory_space<vmem>>, vector<1x16x8xf32>
    %78 = vector.shape_cast %77 : vector<1x16x8xf32> to vector<16x8xf32>
    %cst_73 = arith.constant dense<0.000000e+00> : vector<16x64xf32>
    %79 = tpu.matmul %78, %76, %cst_73 {dimension_numbers = #tpu.dot_dimension_numbers<[1], [0], [0], [1], [0, 0, 1, 1], [], []>} : vector<16x8xf32>, vector<8x64xf32>, vector<16x64xf32> -> vector<16x64xf32>
    %c1_74 = arith.constant 1 : index
    %c0_75 = arith.constant 0 : index
    %c0_76 = arith.constant 0 : index
    %80 = vector.load %arg17[%c1_74, %c0_75, %c0_76] : memref<3x16x8xf32, #tpu.memory_space<vmem>>, vector<1x16x8xf32>
    %81 = vector.shape_cast %80 : vector<1x16x8xf32> to vector<16x8xf32>
    %cst_77 = arith.constant dense<0.000000e+00> : vector<16x64xf32>
    %82 = tpu.matmul %81, %76, %cst_77 {dimension_numbers = #tpu.dot_dimension_numbers<[1], [0], [0], [1], [0, 0, 1, 1], [], []>} : vector<16x8xf32>, vector<8x64xf32>, vector<16x64xf32> -> vector<16x64xf32>
    %c2_78 = arith.constant 2 : index
    %c0_79 = arith.constant 0 : index
    %c0_80 = arith.constant 0 : index
    %83 = vector.load %arg17[%c2_78, %c0_79, %c0_80] : memref<3x16x8xf32, #tpu.memory_space<vmem>>, vector<1x16x8xf32>
    %84 = vector.shape_cast %83 : vector<1x16x8xf32> to vector<16x8xf32>
    %cst_81 = arith.constant dense<0.000000e+00> : vector<16x64xf32>
    %85 = tpu.matmul %84, %76, %cst_81 {dimension_numbers = #tpu.dot_dimension_numbers<[1], [0], [0], [1], [0, 0, 1, 1], [], []>} : vector<16x8xf32>, vector<8x64xf32>, vector<16x64xf32> -> vector<16x64xf32>
    %86 = tpu.concatenate %79, %82, %85 in 1 : vector<16x64xf32>, vector<16x64xf32>, vector<16x64xf32> -> vector<16x192xf32>
    %c0_82 = arith.constant 0 : index
    %c0_83 = arith.constant 0 : index
    %87 = vector.load %arg18[%c0_82, %c0_83] : memref<192x128xf32, #tpu.memory_space<vmem>>, vector<192x128xf32>
    %cst_84 = arith.constant dense<0.000000e+00> : vector<16x128xf32>
    %88 = tpu.matmul %86, %87, %cst_84 {dimension_numbers = #tpu.dot_dimension_numbers<[1], [0], [0], [1], [0, 0, 1, 1], [], []>} : vector<16x192xf32>, vector<192x128xf32>, vector<16x128xf32> -> vector<16x128xf32>
    %c0_85 = arith.constant 0 : index
    %c0_86 = arith.constant 0 : index
    %89 = vector.load %arg19[%c0_85, %c0_86] : memref<1x128xf32, #tpu.memory_space<vmem>>, vector<1x128xf32>
    %90 = vector.broadcast %89 : vector<1x128xf32> to vector<16x128xf32>
    %91 = arith.addf %88, %90 : vector<16x128xf32>
    %cst_87 = arith.constant 0.000000e+00 : f32
    %92 = vector.broadcast %cst_87 : f32 to vector<16x128xf32>
    %93 = arith.maximumf %91, %92 : vector<16x128xf32>
    %c0_88 = arith.constant 0 : index
    %c0_89 = arith.constant 0 : index
    %c0_90 = arith.constant 0 : index
    %94 = vector.load %arg20[%c0_88, %c0_89, %c0_90] : memref<3x16x16xf32, #tpu.memory_space<vmem>>, vector<1x16x16xf32>
    %95 = vector.shape_cast %94 : vector<1x16x16xf32> to vector<16x16xf32>
    %cst_91 = arith.constant dense<0.000000e+00> : vector<16x128xf32>
    %96 = tpu.matmul %95, %93, %cst_91 {dimension_numbers = #tpu.dot_dimension_numbers<[1], [0], [0], [1], [0, 0, 1, 1], [], []>} : vector<16x16xf32>, vector<16x128xf32>, vector<16x128xf32> -> vector<16x128xf32>
    %c1_92 = arith.constant 1 : index
    %c0_93 = arith.constant 0 : index
    %c0_94 = arith.constant 0 : index
    %97 = vector.load %arg20[%c1_92, %c0_93, %c0_94] : memref<3x16x16xf32, #tpu.memory_space<vmem>>, vector<1x16x16xf32>
    %98 = vector.shape_cast %97 : vector<1x16x16xf32> to vector<16x16xf32>
    %cst_95 = arith.constant dense<0.000000e+00> : vector<16x128xf32>
    %99 = tpu.matmul %98, %93, %cst_95 {dimension_numbers = #tpu.dot_dimension_numbers<[1], [0], [0], [1], [0, 0, 1, 1], [], []>} : vector<16x16xf32>, vector<16x128xf32>, vector<16x128xf32> -> vector<16x128xf32>
    %c2_96 = arith.constant 2 : index
    %c0_97 = arith.constant 0 : index
    %c0_98 = arith.constant 0 : index
    %100 = vector.load %arg20[%c2_96, %c0_97, %c0_98] : memref<3x16x16xf32, #tpu.memory_space<vmem>>, vector<1x16x16xf32>
    %101 = vector.shape_cast %100 : vector<1x16x16xf32> to vector<16x16xf32>
    %cst_99 = arith.constant dense<0.000000e+00> : vector<16x128xf32>
    %102 = tpu.matmul %101, %93, %cst_99 {dimension_numbers = #tpu.dot_dimension_numbers<[1], [0], [0], [1], [0, 0, 1, 1], [], []>} : vector<16x16xf32>, vector<16x128xf32>, vector<16x128xf32> -> vector<16x128xf32>
    %103 = tpu.concatenate %96, %99, %102 in 1 : vector<16x128xf32>, vector<16x128xf32>, vector<16x128xf32> -> vector<16x384xf32>
    %c0_100 = arith.constant 0 : index
    %c0_101 = arith.constant 0 : index
    %104 = vector.load %arg21[%c0_100, %c0_101] : memref<384x256xf32, #tpu.memory_space<vmem>>, vector<384x256xf32>
    %cst_102 = arith.constant dense<0.000000e+00> : vector<16x256xf32>
    %105 = tpu.matmul %103, %104, %cst_102 {dimension_numbers = #tpu.dot_dimension_numbers<[1], [0], [0], [1], [0, 0, 1, 1], [], []>} : vector<16x384xf32>, vector<384x256xf32>, vector<16x256xf32> -> vector<16x256xf32>
    %c0_103 = arith.constant 0 : index
    %c0_104 = arith.constant 0 : index
    %c0_105 = arith.constant 0 : index
    %106 = vector.load %arg20[%c0_103, %c0_104, %c0_105] : memref<3x16x16xf32, #tpu.memory_space<vmem>>, vector<1x16x16xf32>
    %107 = vector.shape_cast %106 : vector<1x16x16xf32> to vector<16x16xf32>
    %cst_106 = arith.constant dense<0.000000e+00> : vector<16x48xf32>
    %108 = tpu.matmul %107, %3, %cst_106 {dimension_numbers = #tpu.dot_dimension_numbers<[1], [0], [0], [1], [0, 0, 1, 1], [], []>} : vector<16x16xf32>, vector<16x48xf32>, vector<16x48xf32> -> vector<16x48xf32>
    %c1_107 = arith.constant 1 : index
    %c0_108 = arith.constant 0 : index
    %c0_109 = arith.constant 0 : index
    %109 = vector.load %arg20[%c1_107, %c0_108, %c0_109] : memref<3x16x16xf32, #tpu.memory_space<vmem>>, vector<1x16x16xf32>
    %110 = vector.shape_cast %109 : vector<1x16x16xf32> to vector<16x16xf32>
    %cst_110 = arith.constant dense<0.000000e+00> : vector<16x48xf32>
    %111 = tpu.matmul %110, %3, %cst_110 {dimension_numbers = #tpu.dot_dimension_numbers<[1], [0], [0], [1], [0, 0, 1, 1], [], []>} : vector<16x16xf32>, vector<16x48xf32>, vector<16x48xf32> -> vector<16x48xf32>
    %c2_111 = arith.constant 2 : index
    %c0_112 = arith.constant 0 : index
    %c0_113 = arith.constant 0 : index
    %112 = vector.load %arg20[%c2_111, %c0_112, %c0_113] : memref<3x16x16xf32, #tpu.memory_space<vmem>>, vector<1x16x16xf32>
    %113 = vector.shape_cast %112 : vector<1x16x16xf32> to vector<16x16xf32>
    %cst_114 = arith.constant dense<0.000000e+00> : vector<16x48xf32>
    %114 = tpu.matmul %113, %3, %cst_114 {dimension_numbers = #tpu.dot_dimension_numbers<[1], [0], [0], [1], [0, 0, 1, 1], [], []>} : vector<16x16xf32>, vector<16x48xf32>, vector<16x48xf32> -> vector<16x48xf32>
    %115 = tpu.concatenate %108, %111, %114 in 1 : vector<16x48xf32>, vector<16x48xf32>, vector<16x48xf32> -> vector<16x144xf32>
    %c0_115 = arith.constant 0 : index
    %c0_116 = arith.constant 0 : index
    %116 = vector.load %arg22[%c0_115, %c0_116] : memref<144x256xf32, #tpu.memory_space<vmem>>, vector<144x256xf32>
    %cst_117 = arith.constant dense<0.000000e+00> : vector<16x256xf32>
    %117 = tpu.matmul %115, %116, %cst_117 {dimension_numbers = #tpu.dot_dimension_numbers<[1], [0], [0], [1], [0, 0, 1, 1], [], []>} : vector<16x144xf32>, vector<144x256xf32>, vector<16x256xf32> -> vector<16x256xf32>
    %118 = arith.addf %105, %117 : vector<16x256xf32>
    %c0_118 = arith.constant 0 : index
    %c0_119 = arith.constant 0 : index
    %c0_120 = arith.constant 0 : index
    %119 = vector.load %arg20[%c0_118, %c0_119, %c0_120] : memref<3x16x16xf32, #tpu.memory_space<vmem>>, vector<1x16x16xf32>
    %120 = vector.shape_cast %119 : vector<1x16x16xf32> to vector<16x16xf32>
    %cst_121 = arith.constant dense<0.000000e+00> : vector<16x48xf32>
    %121 = tpu.matmul %120, %5, %cst_121 {dimension_numbers = #tpu.dot_dimension_numbers<[1], [0], [0], [1], [0, 0, 1, 1], [], []>} : vector<16x16xf32>, vector<16x48xf32>, vector<16x48xf32> -> vector<16x48xf32>
    %c1_122 = arith.constant 1 : index
    %c0_123 = arith.constant 0 : index
    %c0_124 = arith.constant 0 : index
    %122 = vector.load %arg20[%c1_122, %c0_123, %c0_124] : memref<3x16x16xf32, #tpu.memory_space<vmem>>, vector<1x16x16xf32>
    %123 = vector.shape_cast %122 : vector<1x16x16xf32> to vector<16x16xf32>
    %cst_125 = arith.constant dense<0.000000e+00> : vector<16x48xf32>
    %124 = tpu.matmul %123, %5, %cst_125 {dimension_numbers = #tpu.dot_dimension_numbers<[1], [0], [0], [1], [0, 0, 1, 1], [], []>} : vector<16x16xf32>, vector<16x48xf32>, vector<16x48xf32> -> vector<16x48xf32>
    %c2_126 = arith.constant 2 : index
    %c0_127 = arith.constant 0 : index
    %c0_128 = arith.constant 0 : index
    %125 = vector.load %arg20[%c2_126, %c0_127, %c0_128] : memref<3x16x16xf32, #tpu.memory_space<vmem>>, vector<1x16x16xf32>
    %126 = vector.shape_cast %125 : vector<1x16x16xf32> to vector<16x16xf32>
    %cst_129 = arith.constant dense<0.000000e+00> : vector<16x48xf32>
    %127 = tpu.matmul %126, %5, %cst_129 {dimension_numbers = #tpu.dot_dimension_numbers<[1], [0], [0], [1], [0, 0, 1, 1], [], []>} : vector<16x16xf32>, vector<16x48xf32>, vector<16x48xf32> -> vector<16x48xf32>
    %128 = tpu.concatenate %121, %124, %127 in 1 : vector<16x48xf32>, vector<16x48xf32>, vector<16x48xf32> -> vector<16x144xf32>
    %c0_130 = arith.constant 0 : index
    %c0_131 = arith.constant 0 : index
    %129 = vector.load %arg23[%c0_130, %c0_131] : memref<144x256xf32, #tpu.memory_space<vmem>>, vector<144x256xf32>
    %cst_132 = arith.constant dense<0.000000e+00> : vector<16x256xf32>
    %130 = tpu.matmul %128, %129, %cst_132 {dimension_numbers = #tpu.dot_dimension_numbers<[1], [0], [0], [1], [0, 0, 1, 1], [], []>} : vector<16x144xf32>, vector<144x256xf32>, vector<16x256xf32> -> vector<16x256xf32>
    %131 = arith.addf %118, %130 : vector<16x256xf32>
    %c0_133 = arith.constant 0 : index
    %c0_134 = arith.constant 0 : index
    %132 = vector.load %arg24[%c0_133, %c0_134] : memref<1x256xf32, #tpu.memory_space<vmem>>, vector<1x256xf32>
    %133 = vector.broadcast %132 : vector<1x256xf32> to vector<16x256xf32>
    %134 = arith.addf %131, %133 : vector<16x256xf32>
    %cst_135 = arith.constant 0.000000e+00 : f32
    %135 = vector.broadcast %cst_135 : f32 to vector<16x256xf32>
    %136 = arith.maximumf %134, %135 : vector<16x256xf32>
    %c0_136 = arith.constant 0 : index
    %c0_137 = arith.constant 0 : index
    %c0_138 = arith.constant 0 : index
    %137 = vector.load %arg20[%c0_136, %c0_137, %c0_138] : memref<3x16x16xf32, #tpu.memory_space<vmem>>, vector<1x16x16xf32>
    %138 = vector.shape_cast %137 : vector<1x16x16xf32> to vector<16x16xf32>
    %cst_139 = arith.constant dense<0.000000e+00> : vector<16x256xf32>
    %139 = tpu.matmul %138, %136, %cst_139 {dimension_numbers = #tpu.dot_dimension_numbers<[1], [0], [0], [1], [0, 0, 1, 1], [], []>} : vector<16x16xf32>, vector<16x256xf32>, vector<16x256xf32> -> vector<16x256xf32>
    %c1_140 = arith.constant 1 : index
    %c0_141 = arith.constant 0 : index
    %c0_142 = arith.constant 0 : index
    %140 = vector.load %arg20[%c1_140, %c0_141, %c0_142] : memref<3x16x16xf32, #tpu.memory_space<vmem>>, vector<1x16x16xf32>
    %141 = vector.shape_cast %140 : vector<1x16x16xf32> to vector<16x16xf32>
    %cst_143 = arith.constant dense<0.000000e+00> : vector<16x256xf32>
    %142 = tpu.matmul %141, %136, %cst_143 {dimension_numbers = #tpu.dot_dimension_numbers<[1], [0], [0], [1], [0, 0, 1, 1], [], []>} : vector<16x16xf32>, vector<16x256xf32>, vector<16x256xf32> -> vector<16x256xf32>
    %c2_144 = arith.constant 2 : index
    %c0_145 = arith.constant 0 : index
    %c0_146 = arith.constant 0 : index
    %143 = vector.load %arg20[%c2_144, %c0_145, %c0_146] : memref<3x16x16xf32, #tpu.memory_space<vmem>>, vector<1x16x16xf32>
    %144 = vector.shape_cast %143 : vector<1x16x16xf32> to vector<16x16xf32>
    %cst_147 = arith.constant dense<0.000000e+00> : vector<16x256xf32>
    %145 = tpu.matmul %144, %136, %cst_147 {dimension_numbers = #tpu.dot_dimension_numbers<[1], [0], [0], [1], [0, 0, 1, 1], [], []>} : vector<16x16xf32>, vector<16x256xf32>, vector<16x256xf32> -> vector<16x256xf32>
    %146 = tpu.concatenate %139, %142, %145 in 1 : vector<16x256xf32>, vector<16x256xf32>, vector<16x256xf32> -> vector<16x768xf32>
    %c0_148 = arith.constant 0 : index
    %c0_149 = arith.constant 0 : index
    %147 = vector.load %arg25[%c0_148, %c0_149] : memref<768x256xf32, #tpu.memory_space<vmem>>, vector<768x256xf32>
    %cst_150 = arith.constant dense<0.000000e+00> : vector<16x256xf32>
    %148 = tpu.matmul %146, %147, %cst_150 {dimension_numbers = #tpu.dot_dimension_numbers<[1], [0], [0], [1], [0, 0, 1, 1], [], []>} : vector<16x768xf32>, vector<768x256xf32>, vector<16x256xf32> -> vector<16x256xf32>
    %c0_151 = arith.constant 0 : index
    %c0_152 = arith.constant 0 : index
    %149 = vector.load %arg26[%c0_151, %c0_152] : memref<1x256xf32, #tpu.memory_space<vmem>>, vector<1x256xf32>
    %150 = vector.broadcast %149 : vector<1x256xf32> to vector<16x256xf32>
    %151 = arith.addf %148, %150 : vector<16x256xf32>
    %cst_153 = arith.constant 0.000000e+00 : f32
    %152 = vector.broadcast %cst_153 : f32 to vector<16x256xf32>
    %153 = arith.maximumf %151, %152 : vector<16x256xf32>
    %c0_154 = arith.constant 0 : index
    %c0_155 = arith.constant 0 : index
    %c0_156 = arith.constant 0 : index
    %154 = vector.load %arg20[%c0_154, %c0_155, %c0_156] : memref<3x16x16xf32, #tpu.memory_space<vmem>>, vector<1x16x16xf32>
    %155 = vector.shape_cast %154 : vector<1x16x16xf32> to vector<16x16xf32>
    %cst_157 = arith.constant dense<0.000000e+00> : vector<16x256xf32>
    %156 = tpu.matmul %155, %153, %cst_157 {dimension_numbers = #tpu.dot_dimension_numbers<[1], [0], [0], [1], [0, 0, 1, 1], [], []>} : vector<16x16xf32>, vector<16x256xf32>, vector<16x256xf32> -> vector<16x256xf32>
    %c1_158 = arith.constant 1 : index
    %c0_159 = arith.constant 0 : index
    %c0_160 = arith.constant 0 : index
    %157 = vector.load %arg20[%c1_158, %c0_159, %c0_160] : memref<3x16x16xf32, #tpu.memory_space<vmem>>, vector<1x16x16xf32>
    %158 = vector.shape_cast %157 : vector<1x16x16xf32> to vector<16x16xf32>
    %cst_161 = arith.constant dense<0.000000e+00> : vector<16x256xf32>
    %159 = tpu.matmul %158, %153, %cst_161 {dimension_numbers = #tpu.dot_dimension_numbers<[1], [0], [0], [1], [0, 0, 1, 1], [], []>} : vector<16x16xf32>, vector<16x256xf32>, vector<16x256xf32> -> vector<16x256xf32>
    %c2_162 = arith.constant 2 : index
    %c0_163 = arith.constant 0 : index
    %c0_164 = arith.constant 0 : index
    %160 = vector.load %arg20[%c2_162, %c0_163, %c0_164] : memref<3x16x16xf32, #tpu.memory_space<vmem>>, vector<1x16x16xf32>
    %161 = vector.shape_cast %160 : vector<1x16x16xf32> to vector<16x16xf32>
    %cst_165 = arith.constant dense<0.000000e+00> : vector<16x256xf32>
    %162 = tpu.matmul %161, %153, %cst_165 {dimension_numbers = #tpu.dot_dimension_numbers<[1], [0], [0], [1], [0, 0, 1, 1], [], []>} : vector<16x16xf32>, vector<16x256xf32>, vector<16x256xf32> -> vector<16x256xf32>
    %163 = tpu.concatenate %156, %159, %162 in 1 : vector<16x256xf32>, vector<16x256xf32>, vector<16x256xf32> -> vector<16x768xf32>
    %c0_166 = arith.constant 0 : index
    %c0_167 = arith.constant 0 : index
    %164 = vector.load %arg27[%c0_166, %c0_167] : memref<768x48xf32, #tpu.memory_space<vmem>>, vector<768x48xf32>
    %cst_168 = arith.constant dense<0.000000e+00> : vector<16x48xf32>
    %165 = tpu.matmul %163, %164, %cst_168 {dimension_numbers = #tpu.dot_dimension_numbers<[1], [0], [0], [1], [0, 0, 1, 1], [], []>} : vector<16x768xf32>, vector<768x48xf32>, vector<16x48xf32> -> vector<16x48xf32>
    %c0_169 = arith.constant 0 : index
    %c0_170 = arith.constant 0 : index
    %166 = vector.load %arg28[%c0_169, %c0_170] : memref<1x48xf32, #tpu.memory_space<vmem>>, vector<1x48xf32>
    %167 = vector.broadcast %166 : vector<1x48xf32> to vector<16x48xf32>
    %168 = arith.addf %165, %167 : vector<16x48xf32>
    %169 = math.tanh %168 : vector<16x48xf32>
    %c0_171 = arith.constant 0 : index
    %c0_172 = arith.constant 0 : index
    %c0_173 = arith.constant 0 : index
    %170 = vector.load %arg29[%c0_171, %c0_172, %c0_173] : memref<1x16x48xf32, #tpu.memory_space<vmem>>, vector<1x16x48xf32>
    %171 = vector.shape_cast %170 : vector<1x16x48xf32> to vector<16x48xf32>
    %172 = vector.shape_cast %169 : vector<16x48xf32> to vector<1x16x48xf32>
    tpu.vector_store %arg29[%c0_171, %c0_172, %c0_173], %172 {strides = array<i32>} : memref<1x16x48xf32, #tpu.memory_space<vmem>>, vector<1x16x48xf32>,
    return
  }
  func.func @transform_0(%arg0: i32) -> (i32, i32, i32) {
    %c0_i32 = arith.constant 0 : i32
    %c0_i32_0 = arith.constant 0 : i32
    %c0_i32_1 = arith.constant 0 : i32
    return %arg0, %c0_i32, %c0_i32_0 : i32, i32, i32
  }
  func.func @transform_1(%arg0: i32) -> (i32, i32, i32) {
    %c0_i32 = arith.constant 0 : i32
    %c0_i32_0 = arith.constant 0 : i32
    %c0_i32_1 = arith.constant 0 : i32
    return %arg0, %c0_i32, %c0_i32_0 : i32, i32, i32
  }
  func.func @transform_2(%arg0: i32) -> (i32, i32, i32) {
    %c0_i32 = arith.constant 0 : i32
    %c0_i32_0 = arith.constant 0 : i32
    %c0_i32_1 = arith.constant 0 : i32
    return %arg0, %c0_i32, %c0_i32_0 : i32, i32, i32
  }
  func.func @transform_3(%arg0: i32) -> (i32, i32, i32) {
    %c0_i32 = arith.constant 0 : i32
    %c0_i32_0 = arith.constant 0 : i32
    %c0_i32_1 = arith.constant 0 : i32
    %c0_i32_2 = arith.constant 0 : i32
    return %c0_i32, %c0_i32_0, %c0_i32_1 : i32, i32, i32
  }
  func.func @transform_4(%arg0: i32) -> (i32, i32) {
    %c0_i32 = arith.constant 0 : i32
    %c0_i32_0 = arith.constant 0 : i32
    %c0_i32_1 = arith.constant 0 : i32
    return %c0_i32, %c0_i32_0 : i32, i32
  }
  func.func @transform_5(%arg0: i32) -> (i32, i32) {
    %c0_i32 = arith.constant 0 : i32
    %c0_i32_0 = arith.constant 0 : i32
    %c0_i32_1 = arith.constant 0 : i32
    return %c0_i32, %c0_i32_0 : i32, i32
  }
  func.func @transform_6(%arg0: i32) -> (i32, i32, i32) {
    %c0_i32 = arith.constant 0 : i32
    %c0_i32_0 = arith.constant 0 : i32
    %c0_i32_1 = arith.constant 0 : i32
    %c0_i32_2 = arith.constant 0 : i32
    return %c0_i32, %c0_i32_0, %c0_i32_1 : i32, i32, i32
  }
  func.func @transform_7(%arg0: i32) -> (i32, i32) {
    %c0_i32 = arith.constant 0 : i32
    %c0_i32_0 = arith.constant 0 : i32
    %c0_i32_1 = arith.constant 0 : i32
    return %c0_i32, %c0_i32_0 : i32, i32
  }
  func.func @transform_8(%arg0: i32) -> (i32, i32) {
    %c0_i32 = arith.constant 0 : i32
    %c0_i32_0 = arith.constant 0 : i32
    %c0_i32_1 = arith.constant 0 : i32
    return %c0_i32, %c0_i32_0 : i32, i32
  }
  func.func @transform_9(%arg0: i32) -> (i32, i32) {
    %c0_i32 = arith.constant 0 : i32
    %c0_i32_0 = arith.constant 0 : i32
    %c0_i32_1 = arith.constant 0 : i32
    return %c0_i32, %c0_i32_0 : i32, i32
  }
  func.func @transform_10(%arg0: i32) -> (i32, i32) {
    %c0_i32 = arith.constant 0 : i32
    %c0_i32_0 = arith.constant 0 : i32
    %c0_i32_1 = arith.constant 0 : i32
    return %c0_i32, %c0_i32_0 : i32, i32
  }
  func.func @transform_11(%arg0: i32) -> (i32, i32) {
    %c0_i32 = arith.constant 0 : i32
    %c0_i32_0 = arith.constant 0 : i32
    %c0_i32_1 = arith.constant 0 : i32
    return %c0_i32, %c0_i32_0 : i32, i32
  }
  func.func @transform_12(%arg0: i32) -> (i32, i32) {
    %c0_i32 = arith.constant 0 : i32
    %c0_i32_0 = arith.constant 0 : i32
    %c0_i32_1 = arith.constant 0 : i32
    return %c0_i32, %c0_i32_0 : i32, i32
  }
  func.func @transform_13(%arg0: i32) -> (i32, i32, i32) {
    %c0_i32 = arith.constant 0 : i32
    %c0_i32_0 = arith.constant 0 : i32
    %c0_i32_1 = arith.constant 0 : i32
    %c0_i32_2 = arith.constant 0 : i32
    return %c0_i32, %c0_i32_0, %c0_i32_1 : i32, i32, i32
  }
  func.func @transform_14(%arg0: i32) -> (i32, i32) {
    %c0_i32 = arith.constant 0 : i32
    %c0_i32_0 = arith.constant 0 : i32
    %c0_i32_1 = arith.constant 0 : i32
    return %c0_i32, %c0_i32_0 : i32, i32
  }
  func.func @transform_15(%arg0: i32) -> (i32, i32) {
    %c0_i32 = arith.constant 0 : i32
    %c0_i32_0 = arith.constant 0 : i32
    %c0_i32_1 = arith.constant 0 : i32
    return %c0_i32, %c0_i32_0 : i32, i32
  }
  func.func @transform_16(%arg0: i32) -> (i32, i32, i32) {
    %c0_i32 = arith.constant 0 : i32
    %c0_i32_0 = arith.constant 0 : i32
    %c0_i32_1 = arith.constant 0 : i32
    %c0_i32_2 = arith.constant 0 : i32
    return %c0_i32, %c0_i32_0, %c0_i32_1 : i32, i32, i32
  }
  func.func @transform_17(%arg0: i32) -> (i32, i32) {
    %c0_i32 = arith.constant 0 : i32
    %c0_i32_0 = arith.constant 0 : i32
    %c0_i32_1 = arith.constant 0 : i32
    return %c0_i32, %c0_i32_0 : i32, i32
  }
  func.func @transform_18(%arg0: i32) -> (i32, i32) {
    %c0_i32 = arith.constant 0 : i32
    %c0_i32_0 = arith.constant 0 : i32
    %c0_i32_1 = arith.constant 0 : i32
    return %c0_i32, %c0_i32_0 : i32, i32
  }
  func.func @transform_19(%arg0: i32) -> (i32, i32, i32) {
    %c0_i32 = arith.constant 0 : i32
    %c0_i32_0 = arith.constant 0 : i32
    %c0_i32_1 = arith.constant 0 : i32
    %c0_i32_2 = arith.constant 0 : i32
    return %c0_i32, %c0_i32_0, %c0_i32_1 : i32, i32, i32
  }
  func.func @transform_20(%arg0: i32) -> (i32, i32) {
    %c0_i32 = arith.constant 0 : i32
    %c0_i32_0 = arith.constant 0 : i32
    %c0_i32_1 = arith.constant 0 : i32
    return %c0_i32, %c0_i32_0 : i32, i32
  }
  func.func @transform_21(%arg0: i32) -> (i32, i32) {
    %c0_i32 = arith.constant 0 : i32
    %c0_i32_0 = arith.constant 0 : i32
    %c0_i32_1 = arith.constant 0 : i32
    return %c0_i32, %c0_i32_0 : i32, i32
  }
  func.func @transform_22(%arg0: i32) -> (i32, i32) {
    %c0_i32 = arith.constant 0 : i32
    %c0_i32_0 = arith.constant 0 : i32
    %c0_i32_1 = arith.constant 0 : i32
    return %c0_i32, %c0_i32_0 : i32, i32
  }
  func.func @transform_23(%arg0: i32) -> (i32, i32) {
    %c0_i32 = arith.constant 0 : i32
    %c0_i32_0 = arith.constant 0 : i32
    %c0_i32_1 = arith.constant 0 : i32
    return %c0_i32, %c0_i32_0 : i32, i32
  }
  func.func @transform_24(%arg0: i32) -> (i32, i32) {
    %c0_i32 = arith.constant 0 : i32
    %c0_i32_0 = arith.constant 0 : i32
    %c0_i32_1 = arith.constant 0 : i32
    return %c0_i32, %c0_i32_0 : i32, i32
  }
  func.func @transform_25(%arg0: i32) -> (i32, i32) {
    %c0_i32 = arith.constant 0 : i32
    %c0_i32_0 = arith.constant 0 : i32
    %c0_i32_1 = arith.constant 0 : i32
    return %c0_i32, %c0_i32_0 : i32, i32
  }
  func.func @transform_26(%arg0: i32) -> (i32, i32) {
    %c0_i32 = arith.constant 0 : i32
    %c0_i32_0 = arith.constant 0 : i32
    %c0_i32_1 = arith.constant 0 : i32
    return %c0_i32, %c0_i32_0 : i32, i32
  }
  func.func @transform_27(%arg0: i32) -> (i32, i32) {
    %c0_i32 = arith.constant 0 : i32
    %c0_i32_0 = arith.constant 0 : i32
    %c0_i32_1 = arith.constant 0 : i32
    return %c0_i32, %c0_i32_0 : i32, i32
  }
  func.func @transform_28(%arg0: i32) -> (i32, i32, i32) {
    %c0_i32 = arith.constant 0 : i32
    %c0_i32_0 = arith.constant 0 : i32
    %c0_i32_1 = arith.constant 0 : i32
    return %arg0, %c0_i32, %c0_i32_0 : i32, i32, i32
  }
}

</mosaic_0001>

<llo_original>
// kernel: combined_model_forward.1
$region0: #{combined_model_forward.1}
  #allocation0 [shape = 'u32[]', space=smem, size = 0x4, offset = 0x4, fixed_abs, tag = 'smem constant byte address 0x4 - core index']
  #allocation1 [shape = 'u32[72,128]{1,0:T(1,128)}', space=vmem, size = 0x9000, scoped, tag = 'internal scratch']
  %s0 = inlined_call_operand.hbm [shape: f32[2,16,16], index: 0, kind: input, shape index: {}]
  %s1 = inlined_call_operand.vmem [shape: f32[2,16,48], index: 1, kind: input, shape index: {}]
  %s2 = inlined_call_operand.vmem [shape: f32[2,16,48], index: 2, kind: input, shape index: {}]
  %s3 = inlined_call_operand.hbm [shape: f32[3,8,16], index: 3, kind: input, shape index: {}]
  %s4 = inlined_call_operand.hbm [shape: f32[48,64], index: 4, kind: input, shape index: {}]
  %s5 = inlined_call_operand.vmem [shape: f32[1,64], index: 5, kind: input, shape index: {}]
  %s6 = inlined_call_operand.hbm [shape: f32[3,4,8], index: 6, kind: input, shape index: {}]
  %s7 = inlined_call_operand.vmem [shape: f32[192,64], index: 7, kind: input, shape index: {}]
  %s8 = inlined_call_operand.hbm [shape: f32[1,64], index: 8, kind: input, shape index: {}]
  %s9 = inlined_call_operand.vmem [shape: f32[256,32], index: 9, kind: input, shape index: {}]
  %s10 = inlined_call_operand.hbm [shape: f32[1,32], index: 10, kind: input, shape index: {}]
  %s11 = inlined_call_operand.hbm [shape: f32[32,256], index: 11, kind: input, shape index: {}]
  %s12 = inlined_call_operand.vmem [shape: f32[1,256], index: 12, kind: input, shape index: {}]
  %s13 = inlined_call_operand.vmem [shape: f32[3,8,4], index: 13, kind: input, shape index: {}]
  %s14 = inlined_call_operand.vmem [shape: f32[192,64], index: 14, kind: input, shape index: {}]
  %s15 = inlined_call_operand.hbm [shape: f32[1,64], index: 15, kind: input, shape index: {}]
  %s16 = inlined_call_operand.vmem [shape: f32[3,16,8], index: 16, kind: input, shape index: {}]
  %s17 = inlined_call_operand.hbm [shape: f32[192,128], index: 17, kind: input, shape index: {}]
  %s18 = inlined_call_operand.hbm [shape: f32[1,128], index: 18, kind: input, shape index: {}]
  %s19 = inlined_call_operand.hbm [shape: f32[3,16,16], index: 19, kind: input, shape index: {}]
  %s20 = inlined_call_operand.vmem [shape: f32[384,256], index: 20, kind: input, shape index: {}]
  %s21 = inlined_call_operand.vmem [shape: f32[144,256], index: 21, kind: input, shape index: {}]
  %s22 = inlined_call_operand.hbm [shape: f32[144,256], index: 22, kind: input, shape index: {}]
  %s23 = inlined_call_operand.vmem [shape: f32[1,256], index: 23, kind: input, shape index: {}]
  %s24 = inlined_call_operand.vmem [shape: f32[768,256], index: 24, kind: input, shape index: {}]
  %s25 = inlined_call_operand.hbm [shape: f32[1,256], index: 25, kind: input, shape index: {}]
  %s26 = inlined_call_operand.vmem [shape: f32[768,48], index: 26, kind: input, shape index: {}]
  %s27 = inlined_call_operand.hbm [shape: f32[1,48], index: 27, kind: input, shape index: {}]
  %s28 = inlined_call_operand.vmem [shape: f32[2,16,48], index: 28, kind: output, shape index: {}]
  %s29 = sld [smem:[#allocation0]]
  $region201: #{combined_model_forward.1} parent=0
    _
  %s31 = ssub.s32 1, %s29
  %s32 = scalar_select 0, %s31, %s29
  $region1: #{combined_model_forward.1} parent=0
    #allocation2 [shape = 'u8[16384]{0}', space=vmem, size = 0x4000, scoped, tag = 'input window, operand 0']
    #allocation3 [shape = 's32[2]{0}', space=sflag, size = 0x8, scoped, tag = 'scoped memory for combined_model_forward.1']
    #allocation4 [shape = 'u8[12288]{0}', space=vmem, size = 0x3000, scoped, tag = 'input window, operand 3, single buffered']
    #allocation5 [shape = 's32[1]{0}', space=sflag, size = 0x4, scoped, tag = 'scoped memory for combined_model_forward.1']
    #allocation6 [shape = 'u8[24576]{0}', space=vmem, size = 0x6000, scoped, tag = 'input window, operand 4, single buffered']
    #allocation7 [shape = 'u8[6144]{0}', space=vmem, size = 0x1800, scoped, tag = 'input window, operand 6, single buffered']
    #allocation8 [shape = 's32[1]{0}', space=sflag, size = 0x4, scoped, tag = 'scoped memory for combined_model_forward.1']
    #allocation9 [shape = 'u8[512]{0}', space=vmem, size = 0x400, scoped, tag = 'input window, operand 8, single buffered']
    #allocation10 [shape = 'u8[512]{0}', space=vmem, size = 0x400, scoped, tag = 'input window, operand 10, single buffered']
    #allocation11 [shape = 's32[1]{0}', space=sflag, size = 0x4, scoped, tag = 'scoped memory for combined_model_forward.1']
    #allocation12 [shape = 'u8[32768]{0}', space=vmem, size = 0x8000, scoped, tag = 'input window, operand 11, single buffered']
    #allocation13 [shape = 'u8[512]{0}', space=vmem, size = 0x400, scoped, tag = 'input window, operand 15, single buffered']
    #allocation14 [shape = 's32[1]{0}', space=sflag, size = 0x4, scoped, tag = 'scoped memory for combined_model_forward.1']
    #allocation15 [shape = 'u8[98304]{0}', space=vmem, size = 0x18000, scoped, tag = 'input window, operand 17, single buffered']
    #allocation16 [shape = 'u8[512]{0}', space=vmem, size = 0x400, scoped, tag = 'input window, operand 18, single buffered']
    #allocation17 [shape = 's32[1]{0}', space=sflag, size = 0x4, scoped, tag = 'scoped memory for combined_model_forward.1']
    #allocation18 [shape = 'u8[24576]{0}', space=vmem, size = 0x6000, scoped, tag = 'input window, operand 19, single buffered']
    #allocation19 [shape = 'u8[147456]{0}', space=vmem, size = 0x24000, scoped, tag = 'input window, operand 22, single buffered']
    #allocation20 [shape = 's32[1]{0}', space=sflag, size = 0x4, scoped, tag = 'scoped memory for combined_model_forward.1']
    #allocation21 [shape = 'u8[1024]{0}', space=vmem, size = 0x400, scoped, tag = 'input window, operand 25, single buffered']
    #allocation22 [shape = 'u8[512]{0}', space=vmem, size = 0x400, scoped, tag = 'input window, operand 27, single buffered']
    #allocation23 [shape = 's32[1]{0}', space=sflag, size = 0x4, scoped, tag = 'scoped memory for combined_model_forward.1']
    %33 = vsyncpa [#allocation3], 0
    %s34 = scalar_lea.sflag [#allocation3], 1
    %35 = vsyncpa %s34, 0
    %36 = vsyncpa [#allocation5], 0
    %37 = vsyncpa [#allocation8], 0
    %38 = vsyncpa [#allocation11], 0
    %39 = vsyncpa [#allocation14], 0
    %40 = vsyncpa [#allocation17], 0
    %41 = vsyncpa [#allocation20], 0
    %42 = vsyncpa [#allocation23], 0
    loop: start=0, step=1, limit=4
    $region2: #{combined_model_forward.1} parent=1 // loop_pre_header
      _
    $region3: #{combined_model_forward.1} parent=1 // loop_header
      %s44 = sphi 0, %s48
      %p45 = scmp.ge.s32.totalorder %s44, 4
      %s54 = sphi 0, %s56
      %s57 = sphi 0, %s54
      %s58 = sphi 0, %s57
      %s74 = sphi 0, %s58
      %s80 = sphi 0, %s82
      %s83 = sphi 0, %s80
      %s84 = sphi 0, %s83
      %s100 = sphi 0, %s84
      %s106 = sphi 0, %s108
      %s109 = sphi 0, %s106
      %s110 = sphi 0, %s109
      %s126 = sphi 0, %s110
      %s130 = sphi 0, %s130
      %s132 = sphi 0, %s130
      %s133 = sphi 0, %s132
      %s147 = sphi 0, %s133
      %s151 = sphi 0, %s151
      %s153 = sphi 0, %s151
      %s154 = sphi 0, %s153
      %s168 = sphi 0, %s154
      %s172 = sphi 0, %s172
      %s174 = sphi 0, %s172
      %s175 = sphi 0, %s174
      %s189 = sphi 0, %s175
      %s193 = sphi 0, %s193
      %s195 = sphi 0, %s193
      %s196 = sphi 0, %s195
      %s210 = sphi 0, %s196
      %s214 = sphi 0, %s214
      %s216 = sphi 0, %s214
      %s217 = sphi 0, %s216
      %s231 = sphi 0, %s217
      %s235 = sphi 0, %s235
      %s237 = sphi 0, %s235
      %s238 = sphi 0, %s237
      %s252 = sphi 0, %s238
      %s256 = sphi 0, %s256
      %s258 = sphi 0, %s256
      %s259 = sphi 0, %s258
      %s273 = sphi 0, %s259
      %s277 = sphi 0, %s277
      %s279 = sphi 0, %s277
      %s280 = sphi 0, %s279
      %s294 = sphi 0, %s280
      %s298 = sphi 0, %s298
      %s300 = sphi 0, %s298
      %s301 = sphi 0, %s300
      %s315 = sphi 0, %s301
      %s319 = sphi 0, %s319
      %s321 = sphi 0, %s319
      %s322 = sphi 0, %s321
      %s336 = sphi 0, %s322
      %s340 = sphi 0, %s340
      %s342 = sphi 0, %s340
      %s343 = sphi 0, %s342
      %s357 = sphi 0, %s343
      %s361 = sphi 0, %s361
      %s363 = sphi 0, %s361
      %s364 = sphi 0, %s363
      %s378 = sphi 0, %s364
      %s382 = sphi 0, %s382
      %s384 = sphi 0, %s382
      %s385 = sphi 0, %s384
      %s399 = sphi 0, %s385
      %s403 = sphi 0, %s403
      %s405 = sphi 0, %s403
      %s406 = sphi 0, %s405
      %s420 = sphi 0, %s406
      %s424 = sphi 0, %s424
      %s426 = sphi 0, %s424
      %s427 = sphi 0, %s426
      %s441 = sphi 0, %s427
      %s445 = sphi 0, %s445
      %s447 = sphi 0, %s445
      %s448 = sphi 0, %s447
      %s462 = sphi 0, %s448
      %s466 = sphi 0, %s466
      %s468 = sphi 0, %s466
      %s469 = sphi 0, %s468
      %s483 = sphi 0, %s469
      %s487 = sphi 0, %s487
      %s489 = sphi 0, %s487
      %s490 = sphi 0, %s489
      %s504 = sphi 0, %s490
      %s508 = sphi 0, %s508
      %s510 = sphi 0, %s508
      %s511 = sphi 0, %s510
      %s525 = sphi 0, %s511
      %s529 = sphi 0, %s529
      %s531 = sphi 0, %s529
      %s532 = sphi 0, %s531
      %s546 = sphi 0, %s532
      %s550 = sphi 0, %s550
      %s552 = sphi 0, %s550
      %s553 = sphi 0, %s552
      %s567 = sphi 0, %s553
      %s571 = sphi 0, %s571
      %s573 = sphi 0, %s571
      %s574 = sphi 0, %s573
      %s588 = sphi 0, %s574
      %s592 = sphi 0, %s592
      %s594 = sphi 0, %s592
      %s595 = sphi 0, %s594
      %s609 = sphi 0, %s595
      %s613 = sphi 0, %s613
      %s615 = sphi 0, %s613
      %s616 = sphi 0, %s615
      %s630 = sphi 0, %s616
      %s634 = sphi 0, %s634
      %s636 = sphi 0, %s634
      %s637 = sphi 0, %s636
      %s651 = sphi 0, %s637
      %s657 = sphi 0, %s659
      %s660 = sphi 0, %s657
      %s661 = sphi 0, %s660
      %s677 = sphi 0, %s661
    $region4: #{combined_model_forward.1} parent=1 // loop_header_branch
      %47 = sbr.rel (%p45) target = $region8
    $region5: #{combined_model_forward.1} parent=1 // loop_body
      %s49 = ssub.s32 %s44, 1
      %s50 = ssub.s32 %s44, 2
      %s51 = sadd.s32 %s44, 1
      %s52 = ssub.s32 %s44, %s51
      %p53 = scmp.eq.s32.totalorder %s52, 0
      %s55 = sadd.s32 %s54, 1
      %s56 = scalar_select %p53, %s54, %s55
      %p59 = pneg %p53
      %p60 = scmp.eq.s32.totalorder %s44, 1
      %p61 = por %p59, %p60
      %p62 = scmp.ne.s32.totalorder %s54, %s57
      %p63 = scmp.eq.s32.totalorder %s44, 0
      %p64 = por %p62, %p63
      %p65 = scmp.ne.s32.totalorder %s54, %s57
      %p66 = scmp.eq.s32.totalorder %s49, 1
      %p67 = por %p65, %p66
      %p68 = scmp.ne.s32.totalorder %s57, %s58
      %p69 = scmp.eq.s32.totalorder %s49, 0
      %p70 = por %p68, %p69
      %p71 = scmp.ne.s32.totalorder %s57, %s58
      %p72 = scmp.eq.s32.totalorder %s50, 1
      %p73 = por %p71, %p72
      %p75 = scmp.ne.s32.totalorder %s58, %s74
      %p76 = scmp.eq.s32.totalorder %s50, 0
      %p77 = por %p75, %p76
      %s78 = ssub.s32 %s44, %s51
      %p79 = scmp.eq.s32.totalorder %s78, 0
      %s81 = sadd.s32 %s80, 1
      %s82 = scalar_select %p79, %s80, %s81
      %p85 = pneg %p79
      %p86 = scmp.eq.s32.totalorder %s44, 1
      %p87 = por %p85, %p86
      %p88 = scmp.ne.s32.totalorder %s80, %s83
      %p89 = scmp.eq.s32.totalorder %s44, 0
      %p90 = por %p88, %p89
      %p91 = scmp.ne.s32.totalorder %s80, %s83
      %p92 = scmp.eq.s32.totalorder %s49, 1
      %p93 = por %p91, %p92
      %p94 = scmp.ne.s32.totalorder %s83, %s84
      %p95 = scmp.eq.s32.totalorder %s49, 0
      %p96 = por %p94, %p95
      %p97 = scmp.ne.s32.totalorder %s83, %s84
      %p98 = scmp.eq.s32.totalorder %s50, 1
      %p99 = por %p97, %p98
      %p101 = scmp.ne.s32.totalorder %s84, %s100
      %p102 = scmp.eq.s32.totalorder %s50, 0
      %p103 = por %p101, %p102
      %s104 = ssub.s32 %s44, %s51
      %p105 = scmp.eq.s32.totalorder %s104, 0
      %s107 = sadd.s32 %s106, 1
      %s108 = scalar_select %p105, %s106, %s107
      %p111 = pneg %p105
      %p112 = scmp.eq.s32.totalorder %s44, 1
      %p113 = por %p111, %p112
      %p114 = scmp.ne.s32.totalorder %s106, %s109
      %p115 = scmp.eq.s32.totalorder %s44, 0
      %p116 = por %p114, %p115
      %p117 = scmp.ne.s32.totalorder %s106, %s109
      %p118 = scmp.eq.s32.totalorder %s49, 1
      %p119 = por %p117, %p118
      %p120 = scmp.ne.s32.totalorder %s109, %s110
      %p121 = scmp.eq.s32.totalorder %s49, 0
      %p122 = por %p120, %p121
      %p123 = scmp.ne.s32.totalorder %s109, %s110
      %p124 = scmp.eq.s32.totalorder %s50, 1
      %p125 = por %p123, %p124
      %p127 = scmp.ne.s32.totalorder %s110, %s126
      %p128 = scmp.eq.s32.totalorder %s50, 0
      %p129 = por %p127, %p128
      %s131 = sadd.s32 %s130, 1
      %p134 = scmp.eq.s32.totalorder %s44, 1
      %p135 = scmp.ne.s32.totalorder %s130, %s132
      %p136 = scmp.eq.s32.totalorder %s44, 0
      %p137 = por %p135, %p136
      %p138 = scmp.ne.s32.totalorder %s130, %s132
      %p139 = scmp.eq.s32.totalorder %s49, 1
      %p140 = por %p138, %p139
      %p141 = scmp.ne.s32.totalorder %s132, %s133
      %p142 = scmp.eq.s32.totalorder %s49, 0
      %p143 = por %p141, %p142
      %p144 = scmp.ne.s32.totalorder %s132, %s133
      %p145 = scmp.eq.s32.totalorder %s50, 1
      %p146 = por %p144, %p145
      %p148 = scmp.ne.s32.totalorder %s133, %s147
      %p149 = scmp.eq.s32.totalorder %s50, 0
      %p150 = por %p148, %p149
      %s152 = sadd.s32 %s151, 1
      %p155 = scmp.eq.s32.totalorder %s44, 1
      %p156 = scmp.ne.s32.totalorder %s151, %s153
      %p157 = scmp.eq.s32.totalorder %s44, 0
      %p158 = por %p156, %p157
      %p159 = scmp.ne.s32.totalorder %s151, %s153
      %p160 = scmp.eq.s32.totalorder %s49, 1
      %p161 = por %p159, %p160
      %p162 = scmp.ne.s32.totalorder %s153, %s154
      %p163 = scmp.eq.s32.totalorder %s49, 0
      %p164 = por %p162, %p163
      %p165 = scmp.ne.s32.totalorder %s153, %s154
      %p166 = scmp.eq.s32.totalorder %s50, 1
      %p167 = por %p165, %p166
      %p169 = scmp.ne.s32.totalorder %s154, %s168
      %p170 = scmp.eq.s32.totalorder %s50, 0
      %p171 = por %p169, %p170
      %s173 = sadd.s32 %s172, 1
      %p176 = scmp.eq.s32.totalorder %s44, 1
      %p177 = scmp.ne.s32.totalorder %s172, %s174
      %p178 = scmp.eq.s32.totalorder %s44, 0
      %p179 = por %p177, %p178
      %p180 = scmp.ne.s32.totalorder %s172, %s174
      %p181 = scmp.eq.s32.totalorder %s49, 1
      %p182 = por %p180, %p181
      %p183 = scmp.ne.s32.totalorder %s174, %s175
      %p184 = scmp.eq.s32.totalorder %s49, 0
      %p185 = por %p183, %p184
      %p186 = scmp.ne.s32.totalorder %s174, %s175
      %p187 = scmp.eq.s32.totalorder %s50, 1
      %p188 = por %p186, %p187
      %p190 = scmp.ne.s32.totalorder %s175, %s189
      %p191 = scmp.eq.s32.totalorder %s50, 0
      %p192 = por %p190, %p191
      %s194 = sadd.s32 %s193, 1
      %p197 = scmp.eq.s32.totalorder %s44, 1
      %p198 = scmp.ne.s32.totalorder %s193, %s195
      %p199 = scmp.eq.s32.totalorder %s44, 0
      %p200 = por %p198, %p199
      %p201 = scmp.ne.s32.totalorder %s193, %s195
      %p202 = scmp.eq.s32.totalorder %s49, 1
      %p203 = por %p201, %p202
      %p204 = scmp.ne.s32.totalorder %s195, %s196
      %p205 = scmp.eq.s32.totalorder %s49, 0
      %p206 = por %p204, %p205
      %p207 = scmp.ne.s32.totalorder %s195, %s196
      %p208 = scmp.eq.s32.totalorder %s50, 1
      %p209 = por %p207, %p208
      %p211 = scmp.ne.s32.totalorder %s196, %s210
      %p212 = scmp.eq.s32.totalorder %s50, 0
      %p213 = por %p211, %p212
      %s215 = sadd.s32 %s214, 1
      %p218 = scmp.eq.s32.totalorder %s44, 1
      %p219 = scmp.ne.s32.totalorder %s214, %s216
      %p220 = scmp.eq.s32.totalorder %s44, 0
      %p221 = por %p219, %p220
      %p222 = scmp.ne.s32.totalorder %s214, %s216
      %p223 = scmp.eq.s32.totalorder %s49, 1
      %p224 = por %p222, %p223
      %p225 = scmp.ne.s32.totalorder %s216, %s217
      %p226 = scmp.eq.s32.totalorder %s49, 0
      %p227 = por %p225, %p226
      %p228 = scmp.ne.s32.totalorder %s216, %s217
      %p229 = scmp.eq.s32.totalorder %s50, 1
      %p230 = por %p228, %p229
      %p232 = scmp.ne.s32.totalorder %s217, %s231
      %p233 = scmp.eq.s32.totalorder %s50, 0
      %p234 = por %p232, %p233
      %s236 = sadd.s32 %s235, 1
      %p239 = scmp.eq.s32.totalorder %s44, 1
      %p240 = scmp.ne.s32.totalorder %s235, %s237
      %p241 = scmp.eq.s32.totalorder %s44, 0
      %p242 = por %p240, %p241
      %p243 = scmp.ne.s32.totalorder %s235, %s237
      %p244 = scmp.eq.s32.totalorder %s49, 1
      %p245 = por %p243, %p244
      %p246 = scmp.ne.s32.totalorder %s237, %s238
      %p247 = scmp.eq.s32.totalorder %s49, 0
      %p248 = por %p246, %p247
      %p249 = scmp.ne.s32.totalorder %s237, %s238
      %p250 = scmp.eq.s32.totalorder %s50, 1
      %p251 = por %p249, %p250
      %p253 = scmp.ne.s32.totalorder %s238, %s252
      %p254 = scmp.eq.s32.totalorder %s50, 0
      %p255 = por %p253, %p254
      %s257 = sadd.s32 %s256, 1
      %p260 = scmp.eq.s32.totalorder %s44, 1
      %p261 = scmp.ne.s32.totalorder %s256, %s258
      %p262 = scmp.eq.s32.totalorder %s44, 0
      %p263 = por %p261, %p262
      %p264 = scmp.ne.s32.totalorder %s256, %s258
      %p265 = scmp.eq.s32.totalorder %s49, 1
      %p266 = por %p264, %p265
      %p267 = scmp.ne.s32.totalorder %s258, %s259
      %p268 = scmp.eq.s32.totalorder %s49, 0
      %p269 = por %p267, %p268
      %p270 = scmp.ne.s32.totalorder %s258, %s259
      %p271 = scmp.eq.s32.totalorder %s50, 1
      %p272 = por %p270, %p271
      %p274 = scmp.ne.s32.totalorder %s259, %s273
      %p275 = scmp.eq.s32.totalorder %s50, 0
      %p276 = por %p274, %p275
      %s278 = sadd.s32 %s277, 1
      %p281 = scmp.eq.s32.totalorder %s44, 1
      %p282 = scmp.ne.s32.totalorder %s277, %s279
      %p283 = scmp.eq.s32.totalorder %s44, 0
      %p284 = por %p282, %p283
      %p285 = scmp.ne.s32.totalorder %s277, %s279
      %p286 = scmp.eq.s32.totalorder %s49, 1
      %p287 = por %p285, %p286
      %p288 = scmp.ne.s32.totalorder %s279, %s280
      %p289 = scmp.eq.s32.totalorder %s49, 0
      %p290 = por %p288, %p289
      %p291 = scmp.ne.s32.totalorder %s279, %s280
      %p292 = scmp.eq.s32.totalorder %s50, 1
      %p293 = por %p291, %p292
      %p295 = scmp.ne.s32.totalorder %s280, %s294
      %p296 = scmp.eq.s32.totalorder %s50, 0
      %p297 = por %p295, %p296
      %s299 = sadd.s32 %s298, 1
      %p302 = scmp.eq.s32.totalorder %s44, 1
      %p303 = scmp.ne.s32.totalorder %s298, %s300
      %p304 = scmp.eq.s32.totalorder %s44, 0
      %p305 = por %p303, %p304
      %p306 = scmp.ne.s32.totalorder %s298, %s300
      %p307 = scmp.eq.s32.totalorder %s49, 1
      %p308 = por %p306, %p307
      %p309 = scmp.ne.s32.totalorder %s300, %s301
      %p310 = scmp.eq.s32.totalorder %s49, 0
      %p311 = por %p309, %p310
      %p312 = scmp.ne.s32.totalorder %s300, %s301
      %p313 = scmp.eq.s32.totalorder %s50, 1
      %p314 = por %p312, %p313
      %p316 = scmp.ne.s32.totalorder %s301, %s315
      %p317 = scmp.eq.s32.totalorder %s50, 0
      %p318 = por %p316, %p317
      %s320 = sadd.s32 %s319, 1
      %p323 = scmp.eq.s32.totalorder %s44, 1
      %p324 = scmp.ne.s32.totalorder %s319, %s321
      %p325 = scmp.eq.s32.totalorder %s44, 0
      %p326 = por %p324, %p325
      %p327 = scmp.ne.s32.totalorder %s319, %s321
      %p328 = scmp.eq.s32.totalorder %s49, 1
      %p329 = por %p327, %p328
      %p330 = scmp.ne.s32.totalorder %s321, %s322
      %p331 = scmp.eq.s32.totalorder %s49, 0
      %p332 = por %p330, %p331
      %p333 = scmp.ne.s32.totalorder %s321, %s322
      %p334 = scmp.eq.s32.totalorder %s50, 1
      %p335 = por %p333, %p334
      %p337 = scmp.ne.s32.totalorder %s322, %s336
      %p338 = scmp.eq.s32.totalorder %s50, 0
      %p339 = por %p337, %p338
      %s341 = sadd.s32 %s340, 1
      %p344 = scmp.eq.s32.totalorder %s44, 1
      %p345 = scmp.ne.s32.totalorder %s340, %s342
      %p346 = scmp.eq.s32.totalorder %s44, 0
      %p347 = por %p345, %p346
      %p348 = scmp.ne.s32.totalorder %s340, %s342
      %p349 = scmp.eq.s32.totalorder %s49, 1
      %p350 = por %p348, %p349
      %p351 = scmp.ne.s32.totalorder %s342, %s343
      %p352 = scmp.eq.s32.totalorder %s49, 0
      %p353 = por %p351, %p352
      %p354 = scmp.ne.s32.totalorder %s342, %s343
      %p355 = scmp.eq.s32.totalorder %s50, 1
      %p356 = por %p354, %p355
      %p358 = scmp.ne.s32.totalorder %s343, %s357
      %p359 = scmp.eq.s32.totalorder %s50, 0
      %p360 = por %p358, %p359
      %s362 = sadd.s32 %s361, 1
      %p365 = scmp.eq.s32.totalorder %s44, 1
      %p366 = scmp.ne.s32.totalorder %s361, %s363
      %p367 = scmp.eq.s32.totalorder %s44, 0
      %p368 = por %p366, %p367
      %p369 = scmp.ne.s32.totalorder %s361, %s363
      %p370 = scmp.eq.s32.totalorder %s49, 1
      %p371 = por %p369, %p370
      %p372 = scmp.ne.s32.totalorder %s363, %s364
      %p373 = scmp.eq.s32.totalorder %s49, 0
      %p374 = por %p372, %p373
      %p375 = scmp.ne.s32.totalorder %s363, %s364
      %p376 = scmp.eq.s32.totalorder %s50, 1
      %p377 = por %p375, %p376
      %p379 = scmp.ne.s32.totalorder %s364, %s378
      %p380 = scmp.eq.s32.totalorder %s50, 0
      %p381 = por %p379, %p380
      %s383 = sadd.s32 %s382, 1
      %p386 = scmp.eq.s32.totalorder %s44, 1
      %p387 = scmp.ne.s32.totalorder %s382, %s384
      %p388 = scmp.eq.s32.totalorder %s44, 0
      %p389 = por %p387, %p388
      %p390 = scmp.ne.s32.totalorder %s382, %s384
      %p391 = scmp.eq.s32.totalorder %s49, 1
      %p392 = por %p390, %p391
      %p393 = scmp.ne.s32.totalorder %s384, %s385
      %p394 = scmp.eq.s32.totalorder %s49, 0
      %p395 = por %p393, %p394
      %p396 = scmp.ne.s32.totalorder %s384, %s385
      %p397 = scmp.eq.s32.totalorder %s50, 1
      %p398 = por %p396, %p397
      %p400 = scmp.ne.s32.totalorder %s385, %s399
      %p401 = scmp.eq.s32.totalorder %s50, 0
      %p402 = por %p400, %p401
      %s404 = sadd.s32 %s403, 1
      %p407 = scmp.eq.s32.totalorder %s44, 1
      %p408 = scmp.ne.s32.totalorder %s403, %s405
      %p409 = scmp.eq.s32.totalorder %s44, 0
      %p410 = por %p408, %p409
      %p411 = scmp.ne.s32.totalorder %s403, %s405
      %p412 = scmp.eq.s32.totalorder %s49, 1
      %p413 = por %p411, %p412
      %p414 = scmp.ne.s32.totalorder %s405, %s406
      %p415 = scmp.eq.s32.totalorder %s49, 0
      %p416 = por %p414, %p415
      %p417 = scmp.ne.s32.totalorder %s405, %s406
      %p418 = scmp.eq.s32.totalorder %s50, 1
      %p419 = por %p417, %p418
      %p421 = scmp.ne.s32.totalorder %s406, %s420
      %p422 = scmp.eq.s32.totalorder %s50, 0
      %p423 = por %p421, %p422
      %s425 = sadd.s32 %s424, 1
      %p428 = scmp.eq.s32.totalorder %s44, 1
      %p429 = scmp.ne.s32.totalorder %s424, %s426
      %p430 = scmp.eq.s32.totalorder %s44, 0
      %p431 = por %p429, %p430
      %p432 = scmp.ne.s32.totalorder %s424, %s426
      %p433 = scmp.eq.s32.totalorder %s49, 1
      %p434 = por %p432, %p433
      %p435 = scmp.ne.s32.totalorder %s426, %s427
      %p436 = scmp.eq.s32.totalorder %s49, 0
      %p437 = por %p435, %p436
      %p438 = scmp.ne.s32.totalorder %s426, %s427
      %p439 = scmp.eq.s32.totalorder %s50, 1
      %p440 = por %p438, %p439
      %p442 = scmp.ne.s32.totalorder %s427, %s441
      %p443 = scmp.eq.s32.totalorder %s50, 0
      %p444 = por %p442, %p443
      %s446 = sadd.s32 %s445, 1
      %p449 = scmp.eq.s32.totalorder %s44, 1
      %p450 = scmp.ne.s32.totalorder %s445, %s447
      %p451 = scmp.eq.s32.totalorder %s44, 0
      %p452 = por %p450, %p451
      %p453 = scmp.ne.s32.totalorder %s445, %s447
      %p454 = scmp.eq.s32.totalorder %s49, 1
      %p455 = por %p453, %p454
      %p456 = scmp.ne.s32.totalorder %s447, %s448
      %p457 = scmp.eq.s32.totalorder %s49, 0
      %p458 = por %p456, %p457
      %p459 = scmp.ne.s32.totalorder %s447, %s448
      %p460 = scmp.eq.s32.totalorder %s50, 1
      %p461 = por %p459, %p460
      %p463 = scmp.ne.s32.totalorder %s448, %s462
      %p464 = scmp.eq.s32.totalorder %s50, 0
      %p465 = por %p463, %p464
      %s467 = sadd.s32 %s466, 1
      %p470 = scmp.eq.s32.totalorder %s44, 1
      %p471 = scmp.ne.s32.totalorder %s466, %s468
      %p472 = scmp.eq.s32.totalorder %s44, 0
      %p473 = por %p471, %p472
      %p474 = scmp.ne.s32.totalorder %s466, %s468
      %p475 = scmp.eq.s32.totalorder %s49, 1
      %p476 = por %p474, %p475
      %p477 = scmp.ne.s32.totalorder %s468, %s469
      %p478 = scmp.eq.s32.totalorder %s49, 0
      %p479 = por %p477, %p478
      %p480 = scmp.ne.s32.totalorder %s468, %s469
      %p481 = scmp.eq.s32.totalorder %s50, 1
      %p482 = por %p480, %p481
      %p484 = scmp.ne.s32.totalorder %s469, %s483
      %p485 = scmp.eq.s32.totalorder %s50, 0
      %p486 = por %p484, %p485
      %s488 = sadd.s32 %s487, 1
      %p491 = scmp.eq.s32.totalorder %s44, 1
      %p492 = scmp.ne.s32.totalorder %s487, %s489
      %p493 = scmp.eq.s32.totalorder %s44, 0
      %p494 = por %p492, %p493
      %p495 = scmp.ne.s32.totalorder %s487, %s489
      %p496 = scmp.eq.s32.totalorder %s49, 1
      %p497 = por %p495, %p496
      %p498 = scmp.ne.s32.totalorder %s489, %s490
      %p499 = scmp.eq.s32.totalorder %s49, 0
      %p500 = por %p498, %p499
      %p501 = scmp.ne.s32.totalorder %s489, %s490
      %p502 = scmp.eq.s32.totalorder %s50, 1
      %p503 = por %p501, %p502
      %p505 = scmp.ne.s32.totalorder %s490, %s504
      %p506 = scmp.eq.s32.totalorder %s50, 0
      %p507 = por %p505, %p506
      %s509 = sadd.s32 %s508, 1
      %p512 = scmp.eq.s32.totalorder %s44, 1
      %p513 = scmp.ne.s32.totalorder %s508, %s510
      %p514 = scmp.eq.s32.totalorder %s44, 0
      %p515 = por %p513, %p514
      %p516 = scmp.ne.s32.totalorder %s508, %s510
      %p517 = scmp.eq.s32.totalorder %s49, 1
      %p518 = por %p516, %p517
      %p519 = scmp.ne.s32.totalorder %s510, %s511
      %p520 = scmp.eq.s32.totalorder %s49, 0
      %p521 = por %p519, %p520
      %p522 = scmp.ne.s32.totalorder %s510, %s511
      %p523 = scmp.eq.s32.totalorder %s50, 1
      %p524 = por %p522, %p523
      %p526 = scmp.ne.s32.totalorder %s511, %s525
      %p527 = scmp.eq.s32.totalorder %s50, 0
      %p528 = por %p526, %p527
      %s530 = sadd.s32 %s529, 1
      %p533 = scmp.eq.s32.totalorder %s44, 1
      %p534 = scmp.ne.s32.totalorder %s529, %s531
      %p535 = scmp.eq.s32.totalorder %s44, 0
      %p536 = por %p534, %p535
      %p537 = scmp.ne.s32.totalorder %s529, %s531
      %p538 = scmp.eq.s32.totalorder %s49, 1
      %p539 = por %p537, %p538
      %p540 = scmp.ne.s32.totalorder %s531, %s532
      %p541 = scmp.eq.s32.totalorder %s49, 0
      %p542 = por %p540, %p541
      %p543 = scmp.ne.s32.totalorder %s531, %s532
      %p544 = scmp.eq.s32.totalorder %s50, 1
      %p545 = por %p543, %p544
      %p547 = scmp.ne.s32.totalorder %s532, %s546
      %p548 = scmp.eq.s32.totalorder %s50, 0
      %p549 = por %p547, %p548
      %s551 = sadd.s32 %s550, 1
      %p554 = scmp.eq.s32.totalorder %s44, 1
      %p555 = scmp.ne.s32.totalorder %s550, %s552
      %p556 = scmp.eq.s32.totalorder %s44, 0
      %p557 = por %p555, %p556
      %p558 = scmp.ne.s32.totalorder %s550, %s552
      %p559 = scmp.eq.s32.totalorder %s49, 1
      %p560 = por %p558, %p559
      %p561 = scmp.ne.s32.totalorder %s552, %s553
      %p562 = scmp.eq.s32.totalorder %s49, 0
      %p563 = por %p561, %p562
      %p564 = scmp.ne.s32.totalorder %s552, %s553
      %p565 = scmp.eq.s32.totalorder %s50, 1
      %p566 = por %p564, %p565
      %p568 = scmp.ne.s32.totalorder %s553, %s567
      %p569 = scmp.eq.s32.totalorder %s50, 0
      %p570 = por %p568, %p569
      %s572 = sadd.s32 %s571, 1
      %p575 = scmp.eq.s32.totalorder %s44, 1
      %p576 = scmp.ne.s32.totalorder %s571, %s573
      %p577 = scmp.eq.s32.totalorder %s44, 0
      %p578 = por %p576, %p577
      %p579 = scmp.ne.s32.totalorder %s571, %s573
      %p580 = scmp.eq.s32.totalorder %s49, 1
      %p581 = por %p579, %p580
      %p582 = scmp.ne.s32.totalorder %s573, %s574
      %p583 = scmp.eq.s32.totalorder %s49, 0
      %p584 = por %p582, %p583
      %p585 = scmp.ne.s32.totalorder %s573, %s574
      %p586 = scmp.eq.s32.totalorder %s50, 1
      %p587 = por %p585, %p586
      %p589 = scmp.ne.s32.totalorder %s574, %s588
      %p590 = scmp.eq.s32.totalorder %s50, 0
      %p591 = por %p589, %p590
      %s593 = sadd.s32 %s592, 1
      %p596 = scmp.eq.s32.totalorder %s44, 1
      %p597 = scmp.ne.s32.totalorder %s592, %s594
      %p598 = scmp.eq.s32.totalorder %s44, 0
      %p599 = por %p597, %p598
      %p600 = scmp.ne.s32.totalorder %s592, %s594
      %p601 = scmp.eq.s32.totalorder %s49, 1
      %p602 = por %p600, %p601
      %p603 = scmp.ne.s32.totalorder %s594, %s595
      %p604 = scmp.eq.s32.totalorder %s49, 0
      %p605 = por %p603, %p604
      %p606 = scmp.ne.s32.totalorder %s594, %s595
      %p607 = scmp.eq.s32.totalorder %s50, 1
      %p608 = por %p606, %p607
      %p610 = scmp.ne.s32.totalorder %s595, %s609
      %p611 = scmp.eq.s32.totalorder %s50, 0
      %p612 = por %p610, %p611
      %s614 = sadd.s32 %s613, 1
      %p617 = scmp.eq.s32.totalorder %s44, 1
      %p618 = scmp.ne.s32.totalorder %s613, %s615
      %p619 = scmp.eq.s32.totalorder %s44, 0
      %p620 = por %p618, %p619
      %p621 = scmp.ne.s32.totalorder %s613, %s615
      %p622 = scmp.eq.s32.totalorder %s49, 1
      %p623 = por %p621, %p622
      %p624 = scmp.ne.s32.totalorder %s615, %s616
      %p625 = scmp.eq.s32.totalorder %s49, 0
      %p626 = por %p624, %p625
      %p627 = scmp.ne.s32.totalorder %s615, %s616
      %p628 = scmp.eq.s32.totalorder %s50, 1
      %p629 = por %p627, %p628
      %p631 = scmp.ne.s32.totalorder %s616, %s630
      %p632 = scmp.eq.s32.totalorder %s50, 0
      %p633 = por %p631, %p632
      %s635 = sadd.s32 %s634, 1
      %p638 = scmp.eq.s32.totalorder %s44, 1
      %p639 = scmp.ne.s32.totalorder %s634, %s636
      %p640 = scmp.eq.s32.totalorder %s44, 0
      %p641 = por %p639, %p640
      %p642 = scmp.ne.s32.totalorder %s634, %s636
      %p643 = scmp.eq.s32.totalorder %s49, 1
      %p644 = por %p642, %p643
      %p645 = scmp.ne.s32.totalorder %s636, %s637
      %p646 = scmp.eq.s32.totalorder %s49, 0
      %p647 = por %p645, %p646
      %p648 = scmp.ne.s32.totalorder %s636, %s637
      %p649 = scmp.eq.s32.totalorder %s50, 1
      %p650 = por %p648, %p649
      %p652 = scmp.ne.s32.totalorder %s637, %s651
      %p653 = scmp.eq.s32.totalorder %s50, 0
      %p654 = por %p652, %p653
      %s655 = ssub.s32 %s44, %s51
      %p656 = scmp.eq.s32.totalorder %s655, 0
      %s658 = sadd.s32 %s657, 1
      %s659 = scalar_select %p656, %s657, %s658
      %p662 = pneg %p656
      %p663 = scmp.eq.s32.totalorder %s44, 1
      %p664 = por %p662, %p663
      %p665 = scmp.ne.s32.totalorder %s657, %s660
      %p666 = scmp.eq.s32.totalorder %s44, 0
      %p667 = por %p665, %p666
      %p668 = scmp.ne.s32.totalorder %s657, %s660
      %p669 = scmp.eq.s32.totalorder %s49, 1
      %p670 = por %p668, %p669
      %p671 = scmp.ne.s32.totalorder %s660, %s661
      %p672 = scmp.eq.s32.totalorder %s49, 0
      %p673 = por %p671, %p672
      %p674 = scmp.ne.s32.totalorder %s660, %s661
      %p675 = scmp.eq.s32.totalorder %s50, 1
      %p676 = por %p674, %p675
      %p678 = scmp.ne.s32.totalorder %s661, %s677
      %p679 = scmp.eq.s32.totalorder %s50, 0
      %p680 = por %p678, %p679
      %p681 = scmp.le.s32.totalorder 1, %s44
      %p682 = scmp.lt.s32.totalorder %s44, 3
      %p683 = pnand %p681, %p682
      %p684 = pneg %p683
      // Predicated region
      $region9: #{combined_model_forward.1} parent=5 // pred_check
        _
      $region10: #{combined_model_forward.1} parent=5 // pred_check_branch
        %686 = sbr.rel (%p683) target = $region12
      $region11: #{combined_model_forward.1} parent=5 // pred_region
        %s687 = ssub.s32 %s44, 1
        // Predicated region
        $region13: #{combined_model_forward.1} parent=11 // pred_check
          %p688 = pneg %p143
        $region14: #{combined_model_forward.1} parent=11 // pred_check_branch
          %690 = sbr.rel (%p688) target = $region16
        $region15: #{combined_model_forward.1} parent=11 // pred_region
          %692 = vsyncadd [#allocation5], 0
          %s693 = sshll.u32 %s3, 4
          %s694 = int_to_ptr.hbm [resolvable:$true] %s693
          %s695 = sshll.u32 [#allocation4], 4
          %s696 = int_to_ptr.vmem [resolvable:$true] %s695
          %701 = dma.hbm_to_vmem [thread:$0]  %s694, 384, %s696, [#allocation5], 128, 128, 8
        $region16: #{combined_model_forward.1} parent=11 // pred_fallthru
          _
        // Predicated region
        $region17: #{combined_model_forward.1} parent=11 // pred_check
          %p702 = pneg %p164
        $region18: #{combined_model_forward.1} parent=11 // pred_check_branch
          %704 = sbr.rel (%p702) target = $region20
        $region19: #{combined_model_forward.1} parent=11 // pred_region
          %706 = vsyncadd [#allocation5], 0
          %s707 = sshll.u32 %s4, 4
          %s708 = int_to_ptr.hbm [resolvable:$true] %s707
          %s709 = sshll.u32 [#allocation6], 4
          %s710 = int_to_ptr.vmem [resolvable:$true] %s709
          %715 = dma.hbm_to_vmem [thread:$0]  %s708, 768, %s710, [#allocation5], 128, 128, 8
        $region20: #{combined_model_forward.1} parent=11 // pred_fallthru
          _
        // Predicated region
        $region21: #{combined_model_forward.1} parent=11 // pred_check
          %p716 = pneg %p185
        $region22: #{combined_model_forward.1} parent=11 // pred_check_branch
          %718 = sbr.rel (%p716) target = $region24
        $region23: #{combined_model_forward.1} parent=11 // pred_region
          _
        $region24: #{combined_model_forward.1} parent=11 // pred_fallthru
          _
        // Predicated region
        $region25: #{combined_model_forward.1} parent=11 // pred_check
          %p719 = pneg %p206
        $region26: #{combined_model_forward.1} parent=11 // pred_check_branch
          %721 = sbr.rel (%p719) target = $region28
        $region27: #{combined_model_forward.1} parent=11 // pred_region
          %723 = vsyncadd [#allocation8], 0
          %s724 = sshll.u32 %s6, 4
          %s725 = int_to_ptr.hbm [resolvable:$true] %s724
          %s726 = sshll.u32 [#allocation7], 4
          %s727 = int_to_ptr.vmem [resolvable:$true] %s726
          %732 = dma.hbm_to_vmem [thread:$0]  %s725, 192, %s727, [#allocation8], 64, 64, 4
        $region28: #{combined_model_forward.1} parent=11 // pred_fallthru
          _
        // Predicated region
        $region29: #{combined_model_forward.1} parent=11 // pred_check
          %p733 = pneg %p227
        $region30: #{combined_model_forward.1} parent=11 // pred_check_branch
          %735 = sbr.rel (%p733) target = $region32
        $region31: #{combined_model_forward.1} parent=11 // pred_region
          _
        $region32: #{combined_model_forward.1} parent=11 // pred_fallthru
          _
        // Predicated region
        $region33: #{combined_model_forward.1} parent=11 // pred_check
          %p736 = pneg %p248
        $region34: #{combined_model_forward.1} parent=11 // pred_check_branch
          %738 = sbr.rel (%p736) target = $region36
        $region35: #{combined_model_forward.1} parent=11 // pred_region
          %740 = vsyncadd [#allocation8], 0
          %s742 = sshll.u32 %s8, 4
          %s743 = int_to_ptr.hbm [resolvable:$true] %s742
          %s744 = sshll.u32 [#allocation9], 4
          %s745 = int_to_ptr.vmem [resolvable:$true] %s744
          %747 = dma.hbm_to_vmem [thread:$0]  %s743, 16, %s745, [#allocation8]
        $region36: #{combined_model_forward.1} parent=11 // pred_fallthru
          _
        // Predicated region
        $region37: #{combined_model_forward.1} parent=11 // pred_check
          %p748 = pneg %p269
        $region38: #{combined_model_forward.1} parent=11 // pred_check_branch
          %750 = sbr.rel (%p748) target = $region40
        $region39: #{combined_model_forward.1} parent=11 // pred_region
          _
        $region40: #{combined_model_forward.1} parent=11 // pred_fallthru
          _
        // Predicated region
        $region41: #{combined_model_forward.1} parent=11 // pred_check
          %p751 = pneg %p290
        $region42: #{combined_model_forward.1} parent=11 // pred_check_branch
          %753 = sbr.rel (%p751) target = $region44
        $region43: #{combined_model_forward.1} parent=11 // pred_region
          %755 = vsyncadd [#allocation11], 0
          %s757 = sshll.u32 %s10, 4
          %s758 = int_to_ptr.hbm [resolvable:$true] %s757
          %s759 = sshll.u32 [#allocation10], 4
          %s760 = int_to_ptr.vmem [resolvable:$true] %s759
          %762 = dma.hbm_to_vmem [thread:$0]  %s758, 16, %s760, [#allocation11]
        $region44: #{combined_model_forward.1} parent=11 // pred_fallthru
          _
        // Predicated region
        $region45: #{combined_model_forward.1} parent=11 // pred_check
          %p763 = pneg %p311
        $region46: #{combined_model_forward.1} parent=11 // pred_check_branch
          %765 = sbr.rel (%p763) target = $region48
        $region47: #{combined_model_forward.1} parent=11 // pred_region
          %767 = vsyncadd [#allocation11], 0
          %s768 = sshll.u32 %s11, 4
          %s769 = int_to_ptr.hbm [resolvable:$true] %s768
          %s770 = sshll.u32 [#allocation12], 4
          %s771 = int_to_ptr.vmem [resolvable:$true] %s770
          %776 = dma.hbm_to_vmem [thread:$0]  %s769, 1024, %s771, [#allocation11], 256, 256, 16
        $region48: #{combined_model_forward.1} parent=11 // pred_fallthru
          _
        // Predicated region
        $region49: #{combined_model_forward.1} parent=11 // pred_check
          %p777 = pneg %p332
        $region50: #{combined_model_forward.1} parent=11 // pred_check_branch
          %779 = sbr.rel (%p777) target = $region52
        $region51: #{combined_model_forward.1} parent=11 // pred_region
          _
        $region52: #{combined_model_forward.1} parent=11 // pred_fallthru
          _
        // Predicated region
        $region53: #{combined_model_forward.1} parent=11 // pred_check
          %p780 = pneg %p353
        $region54: #{combined_model_forward.1} parent=11 // pred_check_branch
          %782 = sbr.rel (%p780) target = $region56
        $region55: #{combined_model_forward.1} parent=11 // pred_region
          _
        $region56: #{combined_model_forward.1} parent=11 // pred_fallthru
          _
        // Predicated region
        $region57: #{combined_model_forward.1} parent=11 // pred_check
          %p783 = pneg %p374
        $region58: #{combined_model_forward.1} parent=11 // pred_check_branch
          %785 = sbr.rel (%p783) target = $region60
        $region59: #{combined_model_forward.1} parent=11 // pred_region
          _
        $region60: #{combined_model_forward.1} parent=11 // pred_fallthru
          _
        // Predicated region
        $region61: #{combined_model_forward.1} parent=11 // pred_check
          %p786 = pneg %p395
        $region62: #{combined_model_forward.1} parent=11 // pred_check_branch
          %788 = sbr.rel (%p786) target = $region64
        $region63: #{combined_model_forward.1} parent=11 // pred_region
          %790 = vsyncadd [#allocation14], 0
          %s792 = sshll.u32 %s15, 4
          %s793 = int_to_ptr.hbm [resolvable:$true] %s792
          %s794 = sshll.u32 [#allocation13], 4
          %s795 = int_to_ptr.vmem [resolvable:$true] %s794
          %797 = dma.hbm_to_vmem [thread:$0]  %s793, 16, %s795, [#allocation14]
        $region64: #{combined_model_forward.1} parent=11 // pred_fallthru
          _
        // Predicated region
        $region65: #{combined_model_forward.1} parent=11 // pred_check
          %p798 = pneg %p416
        $region66: #{combined_model_forward.1} parent=11 // pred_check_branch
          %800 = sbr.rel (%p798) target = $region68
        $region67: #{combined_model_forward.1} parent=11 // pred_region
          _
        $region68: #{combined_model_forward.1} parent=11 // pred_fallthru
          _
        // Predicated region
        $region69: #{combined_model_forward.1} parent=11 // pred_check
          %p801 = pneg %p437
        $region70: #{combined_model_forward.1} parent=11 // pred_check_branch
          %803 = sbr.rel (%p801) target = $region72
        $region71: #{combined_model_forward.1} parent=11 // pred_region
          %805 = vsyncadd [#allocation14], 0
          %s806 = sshll.u32 %s17, 4
          %s807 = int_to_ptr.hbm [resolvable:$true] %s806
          %s808 = sshll.u32 [#allocation15], 4
          %s809 = int_to_ptr.vmem [resolvable:$true] %s808
          %814 = dma.hbm_to_vmem [thread:$0]  %s807, 3072, %s809, [#allocation14], 128, 128, 8
        $region72: #{combined_model_forward.1} parent=11 // pred_fallthru
          _
        // Predicated region
        $region73: #{combined_model_forward.1} parent=11 // pred_check
          %p815 = pneg %p458
        $region74: #{combined_model_forward.1} parent=11 // pred_check_branch
          %817 = sbr.rel (%p815) target = $region76
        $region75: #{combined_model_forward.1} parent=11 // pred_region
          %819 = vsyncadd [#allocation17], 0
          %s821 = sshll.u32 %s18, 4
          %s822 = int_to_ptr.hbm [resolvable:$true] %s821
          %s823 = sshll.u32 [#allocation16], 4
          %s824 = int_to_ptr.vmem [resolvable:$true] %s823
          %826 = dma.hbm_to_vmem [thread:$0]  %s822, 16, %s824, [#allocation17]
        $region76: #{combined_model_forward.1} parent=11 // pred_fallthru
          _
        // Predicated region
        $region77: #{combined_model_forward.1} parent=11 // pred_check
          %p827 = pneg %p479
        $region78: #{combined_model_forward.1} parent=11 // pred_check_branch
          %829 = sbr.rel (%p827) target = $region80
        $region79: #{combined_model_forward.1} parent=11 // pred_region
          %831 = vsyncadd [#allocation17], 0
          %s832 = sshll.u32 %s19, 4
          %s833 = int_to_ptr.hbm [resolvable:$true] %s832
          %s834 = sshll.u32 [#allocation18], 4
          %s835 = int_to_ptr.vmem [resolvable:$true] %s834
          %840 = dma.hbm_to_vmem [thread:$0]  %s833, 768, %s835, [#allocation17], 128, 128, 8
        $region80: #{combined_model_forward.1} parent=11 // pred_fallthru
          _
        // Predicated region
        $region81: #{combined_model_forward.1} parent=11 // pred_check
          %p841 = pneg %p500
        $region82: #{combined_model_forward.1} parent=11 // pred_check_branch
          %843 = sbr.rel (%p841) target = $region84
        $region83: #{combined_model_forward.1} parent=11 // pred_region
          _
        $region84: #{combined_model_forward.1} parent=11 // pred_fallthru
          _
        // Predicated region
        $region85: #{combined_model_forward.1} parent=11 // pred_check
          %p844 = pneg %p521
        $region86: #{combined_model_forward.1} parent=11 // pred_check_branch
          %846 = sbr.rel (%p844) target = $region88
        $region87: #{combined_model_forward.1} parent=11 // pred_region
          _
        $region88: #{combined_model_forward.1} parent=11 // pred_fallthru
          _
        // Predicated region
        $region89: #{combined_model_forward.1} parent=11 // pred_check
          %p847 = pneg %p542
        $region90: #{combined_model_forward.1} parent=11 // pred_check_branch
          %849 = sbr.rel (%p847) target = $region92
        $region91: #{combined_model_forward.1} parent=11 // pred_region
          %851 = vsyncadd [#allocation20], 0
          %s852 = sshll.u32 %s22, 4
          %s853 = int_to_ptr.hbm [resolvable:$true] %s852
          %s854 = sshll.u32 [#allocation19], 4
          %s855 = int_to_ptr.vmem [resolvable:$true] %s854
          %860 = dma.hbm_to_vmem [thread:$0]  %s853, 4608, %s855, [#allocation20], 256, 256, 16
        $region92: #{combined_model_forward.1} parent=11 // pred_fallthru
          _
        // Predicated region
        $region93: #{combined_model_forward.1} parent=11 // pred_check
          %p861 = pneg %p563
        $region94: #{combined_model_forward.1} parent=11 // pred_check_branch
          %863 = sbr.rel (%p861) target = $region96
        $region95: #{combined_model_forward.1} parent=11 // pred_region
          _
        $region96: #{combined_model_forward.1} parent=11 // pred_fallthru
          _
        // Predicated region
        $region97: #{combined_model_forward.1} parent=11 // pred_check
          %p864 = pneg %p584
        $region98: #{combined_model_forward.1} parent=11 // pred_check_branch
          %866 = sbr.rel (%p864) target = $region100
        $region99: #{combined_model_forward.1} parent=11 // pred_region
          _
        $region100: #{combined_model_forward.1} parent=11 // pred_fallthru
          _
        // Predicated region
        $region101: #{combined_model_forward.1} parent=11 // pred_check
          %p867 = pneg %p605
        $region102: #{combined_model_forward.1} parent=11 // pred_check_branch
          %869 = sbr.rel (%p867) target = $region104
        $region103: #{combined_model_forward.1} parent=11 // pred_region
          %871 = vsyncadd [#allocation20], 0
          %s873 = sshll.u32 %s25, 4
          %s874 = int_to_ptr.hbm [resolvable:$true] %s873
          %s875 = sshll.u32 [#allocation21], 4
          %s876 = int_to_ptr.vmem [resolvable:$true] %s875
          %878 = dma.hbm_to_vmem [thread:$0]  %s874, 32, %s876, [#allocation20]
        $region104: #{combined_model_forward.1} parent=11 // pred_fallthru
          _
        // Predicated region
        $region105: #{combined_model_forward.1} parent=11 // pred_check
          %p879 = pneg %p626
        $region106: #{combined_model_forward.1} parent=11 // pred_check_branch
          %881 = sbr.rel (%p879) target = $region108
        $region107: #{combined_model_forward.1} parent=11 // pred_region
          _
        $region108: #{combined_model_forward.1} parent=11 // pred_fallthru
          _
        // Predicated region
        $region109: #{combined_model_forward.1} parent=11 // pred_check
          %p882 = pneg %p647
        $region110: #{combined_model_forward.1} parent=11 // pred_check_branch
          %884 = sbr.rel (%p882) target = $region112
        $region111: #{combined_model_forward.1} parent=11 // pred_region
          %886 = vsyncadd [#allocation23], 0
          %s888 = sshll.u32 %s27, 4
          %s889 = int_to_ptr.hbm [resolvable:$true] %s888
          %s890 = sshll.u32 [#allocation22], 4
          %s891 = int_to_ptr.vmem [resolvable:$true] %s890
          %893 = dma.hbm_to_vmem [thread:$0]  %s889, 16, %s891, [#allocation23]
        $region112: #{combined_model_forward.1} parent=11 // pred_fallthru
          _
      $region12: #{combined_model_forward.1} parent=5 // pred_fallthru
        _
      %p894 = scmp.lt.s32.totalorder %s44, 2
      // Predicated region
      $region113: #{combined_model_forward.1} parent=5 // pred_check
        %p895 = pneg %p894
      $region114: #{combined_model_forward.1} parent=5 // pred_check_branch
        %897 = sbr.rel (%p895) target = $region116
      $region115: #{combined_model_forward.1} parent=5 // pred_region
        // Predicated region
        $region117: #{combined_model_forward.1} parent=115 // pred_check
          %p898 = pneg %p64
        $region118: #{combined_model_forward.1} parent=115 // pred_check_branch
          %900 = sbr.rel (%p898) target = $region120
        $region119: #{combined_model_forward.1} parent=115 // pred_region
          %s901 = sand.u32 %s54, 1
          %s902 = scalar_lea.sflag [#allocation3], %s901
          %s903 = sand.u32 %s54, 1
          %s904 = smul.addr %s903, 16
          %s905 = scalar_lea.vmem [#allocation2], %s904
          %907 = vsyncadd %s902, 0
          %s908 = smul.addr %s44, 2
          %s909 = smul.addr %s908, 8
          %s910 = scalar_lea.hbm %s0, %s909
          %s911 = sshll.u32 %s910, 4
          %s912 = int_to_ptr.hbm [resolvable:$true] %s911
          %s913 = sshll.u32 %s905, 4
          %s914 = int_to_ptr.vmem [resolvable:$true] %s913
          %919 = dma.hbm_to_vmem [thread:$0]  %s912, 256, %s914, %s902, 128, 128, 8
        $region120: #{combined_model_forward.1} parent=115 // pred_fallthru
          _
        // Predicated region
        $region121: #{combined_model_forward.1} parent=115 // pred_check
          %p920 = pneg %p90
        $region122: #{combined_model_forward.1} parent=115 // pred_check_branch
          %922 = sbr.rel (%p920) target = $region124
        $region123: #{combined_model_forward.1} parent=115 // pred_region
          %p923 = scmp.lt.s32.totalorder %s44, 1
          %s924 = scalar_select %p923, %s44, 1
          %s925 = smul.addr %s924, 2
          %s926 = smul.addr %s925, 8
          %s927 = scalar_lea.vmem %s1, %s926
        $region124: #{combined_model_forward.1} parent=115 // pred_fallthru
          _
        // Predicated region
        $region125: #{combined_model_forward.1} parent=115 // pred_check
          %p928 = pneg %p116
        $region126: #{combined_model_forward.1} parent=115 // pred_check_branch
          %930 = sbr.rel (%p928) target = $region128
        $region127: #{combined_model_forward.1} parent=115 // pred_region
          %p931 = scmp.lt.s32.totalorder %s44, 1
          %s932 = scalar_select %p931, %s44, 1
          %s933 = smul.addr %s932, 2
          %s934 = smul.addr %s933, 8
          %s935 = scalar_lea.vmem %s2, %s934
        $region128: #{combined_model_forward.1} parent=115 // pred_fallthru
          _
      $region116: #{combined_model_forward.1} parent=5 // pred_fallthru
        _
      %p936 = scmp.le.s32.totalorder 1, %s44
      %p937 = scmp.lt.s32.totalorder %s44, 3
      %p938 = pnand %p936, %p937
      %p939 = pneg %p938
      // Predicated region
      $region129: #{combined_model_forward.1} parent=5 // pred_check
        _
      $region130: #{combined_model_forward.1} parent=5 // pred_check_branch
        %941 = sbr.rel (%p938) target = $region132
      $region131: #{combined_model_forward.1} parent=5 // pred_region
        %s942 = ssub.s32 %s44, 1
        %s943 = sand.u32 %s57, 1
        %s944 = scalar_lea.sflag [#allocation3], %s943
        %s945 = sand.u32 %s57, 1
        %s946 = smul.addr %s945, 16
        %s947 = scalar_lea.vmem [#allocation2], %s946
        // Predicated region
        $region133: #{combined_model_forward.1} parent=131 // pred_check
          %p948 = pneg %p70
        $region134: #{combined_model_forward.1} parent=131 // pred_check_branch
          %950 = sbr.rel (%p948) target = $region136
        $region135: #{combined_model_forward.1} parent=131 // pred_region
          %952 = dma.done %s944, 256
        $region136: #{combined_model_forward.1} parent=131 // pred_fallthru
          _
        // Predicated region
        $region137: #{combined_model_forward.1} parent=131 // pred_check
          %p953 = pneg %p143
        $region138: #{combined_model_forward.1} parent=131 // pred_check_branch
          %955 = sbr.rel (%p953) target = $region140
        $region139: #{combined_model_forward.1} parent=131 // pred_region
          %957 = dma.done [#allocation5], 384
        $region140: #{combined_model_forward.1} parent=131 // pred_fallthru
          _
        // Predicated region
        $region141: #{combined_model_forward.1} parent=131 // pred_check
          %p958 = pneg %p164
        $region142: #{combined_model_forward.1} parent=131 // pred_check_branch
          %960 = sbr.rel (%p958) target = $region144
        $region143: #{combined_model_forward.1} parent=131 // pred_region
          %962 = dma.done [#allocation5], 768
        $region144: #{combined_model_forward.1} parent=131 // pred_fallthru
          _
        // Predicated region
        $region145: #{combined_model_forward.1} parent=131 // pred_check
          %p963 = pneg %p206
        $region146: #{combined_model_forward.1} parent=131 // pred_check_branch
          %965 = sbr.rel (%p963) target = $region148
        $region147: #{combined_model_forward.1} parent=131 // pred_region
          %967 = dma.done [#allocation8], 192
        $region148: #{combined_model_forward.1} parent=131 // pred_fallthru
          _
        // Predicated region
        $region149: #{combined_model_forward.1} parent=131 // pred_check
          %p968 = pneg %p248
        $region150: #{combined_model_forward.1} parent=131 // pred_check_branch
          %970 = sbr.rel (%p968) target = $region152
        $region151: #{combined_model_forward.1} parent=131 // pred_region
          %972 = dma.done [#allocation8], 16
        $region152: #{combined_model_forward.1} parent=131 // pred_fallthru
          _
        // Predicated region
        $region153: #{combined_model_forward.1} parent=131 // pred_check
          %p973 = pneg %p290
        $region154: #{combined_model_forward.1} parent=131 // pred_check_branch
          %975 = sbr.rel (%p973) target = $region156
        $region155: #{combined_model_forward.1} parent=131 // pred_region
          %977 = dma.done [#allocation11], 16
        $region156: #{combined_model_forward.1} parent=131 // pred_fallthru
          _
        // Predicated region
        $region157: #{combined_model_forward.1} parent=131 // pred_check
          %p978 = pneg %p311
        $region158: #{combined_model_forward.1} parent=131 // pred_check_branch
          %980 = sbr.rel (%p978) target = $region160
        $region159: #{combined_model_forward.1} parent=131 // pred_region
          %982 = dma.done [#allocation11], 1024
        $region160: #{combined_model_forward.1} parent=131 // pred_fallthru
          _
        // Predicated region
        $region161: #{combined_model_forward.1} parent=131 // pred_check
          %p983 = pneg %p395
        $region162: #{combined_model_forward.1} parent=131 // pred_check_branch
          %985 = sbr.rel (%p983) target = $region164
        $region163: #{combined_model_forward.1} parent=131 // pred_region
          %987 = dma.done [#allocation14], 16
        $region164: #{combined_model_forward.1} parent=131 // pred_fallthru
          _
        // Predicated region
        $region165: #{combined_model_forward.1} parent=131 // pred_check
          %p988 = pneg %p437
        $region166: #{combined_model_forward.1} parent=131 // pred_check_branch
          %990 = sbr.rel (%p988) target = $region168
        $region167: #{combined_model_forward.1} parent=131 // pred_region
          %992 = dma.done [#allocation14], 3072
        $region168: #{combined_model_forward.1} parent=131 // pred_fallthru
          _
        // Predicated region
        $region169: #{combined_model_forward.1} parent=131 // pred_check
          %p993 = pneg %p458
        $region170: #{combined_model_forward.1} parent=131 // pred_check_branch
          %995 = sbr.rel (%p993) target = $region172
        $region171: #{combined_model_forward.1} parent=131 // pred_region
          %997 = dma.done [#allocation17], 16
        $region172: #{combined_model_forward.1} parent=131 // pred_fallthru
          _
        // Predicated region
        $region173: #{combined_model_forward.1} parent=131 // pred_check
          %p998 = pneg %p479
        $region174: #{combined_model_forward.1} parent=131 // pred_check_branch
          %1000 = sbr.rel (%p998) target = $region176
        $region175: #{combined_model_forward.1} parent=131 // pred_region
          %1002 = dma.done [#allocation17], 768
        $region176: #{combined_model_forward.1} parent=131 // pred_fallthru
          _
        // Predicated region
        $region177: #{combined_model_forward.1} parent=131 // pred_check
          %p1003 = pneg %p542
        $region178: #{combined_model_forward.1} parent=131 // pred_check_branch
          %1005 = sbr.rel (%p1003) target = $region180
        $region179: #{combined_model_forward.1} parent=131 // pred_region
          %1007 = dma.done [#allocation20], 4608
        $region180: #{combined_model_forward.1} parent=131 // pred_fallthru
          _
        // Predicated region
        $region181: #{combined_model_forward.1} parent=131 // pred_check
          %p1008 = pneg %p605
        $region182: #{combined_model_forward.1} parent=131 // pred_check_branch
          %1010 = sbr.rel (%p1008) target = $region184
        $region183: #{combined_model_forward.1} parent=131 // pred_region
          %1012 = dma.done [#allocation20], 32
        $region184: #{combined_model_forward.1} parent=131 // pred_fallthru
          _
        // Predicated region
        $region185: #{combined_model_forward.1} parent=131 // pred_check
          %p1013 = pneg %p647
        $region186: #{combined_model_forward.1} parent=131 // pred_check_branch
          %1015 = sbr.rel (%p1013) target = $region188
        $region187: #{combined_model_forward.1} parent=131 // pred_region
          %1017 = dma.done [#allocation23], 16
        $region188: #{combined_model_forward.1} parent=131 // pred_fallthru
          _
        %s1018 = sand.u32 %s57, 1
        %s1019 = scalar_lea.sflag [#allocation3], %s1018
        %s1020 = sand.u32 %s57, 1
        %s1021 = smul.addr %s1020, 16
        %s1022 = scalar_lea.vmem [#allocation2], %s1021
        %p1023 = pneg %p70
        %p1024 = pneg %p67
        %p1025 = scmp.lt.s32.totalorder %s49, 1
        %s1026 = scalar_select %p1025, %s49, 1
        %s1027 = smul.addr %s1026, 2
        %s1028 = smul.addr %s1027, 8
        %s1029 = scalar_lea.vmem %s1, %s1028
        %p1030 = pneg %p96
        %p1031 = pneg %p93
        %p1032 = scmp.lt.s32.totalorder %s49, 1
        %s1033 = scalar_select %p1032, %s49, 1
        %s1034 = smul.addr %s1033, 2
        %s1035 = smul.addr %s1034, 8
        %s1036 = scalar_lea.vmem %s2, %s1035
        %p1037 = pneg %p122
        %p1038 = pneg %p119
        %p1039 = pneg %p143
        %p1040 = pneg %p140
        %p1041 = pneg %p164
        %p1042 = pneg %p161
        %p1043 = pneg %p185
        %p1044 = pneg %p182
        %p1045 = pneg %p206
        %p1046 = pneg %p203
        %p1047 = pneg %p227
        %p1048 = pneg %p224
        %p1049 = pneg %p248
        %p1050 = pneg %p245
        %p1051 = pneg %p269
        %p1052 = pneg %p266
        %p1053 = pneg %p290
        %p1054 = pneg %p287
        %p1055 = pneg %p311
        %p1056 = pneg %p308
        %p1057 = pneg %p332
        %p1058 = pneg %p329
        %p1059 = pneg %p353
        %p1060 = pneg %p350
        %p1061 = pneg %p374
        %p1062 = pneg %p371
        %p1063 = pneg %p395
        %p1064 = pneg %p392
        %p1065 = pneg %p416
        %p1066 = pneg %p413
        %p1067 = pneg %p437
        %p1068 = pneg %p434
        %p1069 = pneg %p458
        %p1070 = pneg %p455
        %p1071 = pneg %p479
        %p1072 = pneg %p476
        %p1073 = pneg %p500
        %p1074 = pneg %p497
        %p1075 = pneg %p521
        %p1076 = pneg %p518
        %p1077 = pneg %p542
        %p1078 = pneg %p539
        %p1079 = pneg %p563
        %p1080 = pneg %p560
        %p1081 = pneg %p584
        %p1082 = pneg %p581
        %p1083 = pneg %p605
        %p1084 = pneg %p602
        %p1085 = pneg %p626
        %p1086 = pneg %p623
        %p1087 = pneg %p647
        %p1088 = pneg %p644
        %p1089 = pneg %p673
        %p1090 = pneg %p670
        %p1091 = scmp.lt.s32.totalorder %s49, 1
        %s1092 = scalar_select %p1091, %s49, 1
        %s1093 = smul.addr %s1092, 2
        %s1094 = smul.addr %s1093, 8
        %s1095 = scalar_lea.vmem %s28, %s1094
        %p1096 = scmp.lt.s32.totalorder %s49, 1
        %s1097 = scalar_select %p1096, %s49, 1
        %s1098 = smul.addr %s1097, 2
        %s1099 = smul.addr %s1098, 8
        %s1100 = scalar_lea.vmem %s1, %s1099
        %p1101 = scmp.lt.s32.totalorder %s49, 1
        %s1102 = scalar_select %p1101, %s49, 1
        %s1103 = smul.addr %s1102, 2
        %s1104 = smul.addr %s1103, 8
        %s1105 = scalar_lea.vmem %s2, %s1104
        %p1106 = scmp.lt.s32.totalorder %s49, 1
        %s1107 = scalar_select %p1106, %s49, 1
        %s1108 = smul.addr %s1107, 2
        %s1109 = smul.addr %s1108, 8
        %s1110 = scalar_lea.vmem %s28, %s1109
        %v1111 = vld [vmem:[%s947] sm:$0xff]
        %v1112 = vld [vmem:[%s947 + $0x8] sm:$0xff]
        %v1113 = vld [vmem:[%s1100] sm:$0xff]
        %v1114 = vld [vmem:[%s1100 + $0x8] sm:$0xff]
        %v1115 = vld [vmem:[%s1105] sm:$0xff]
        %v1116 = vld [vmem:[%s1105 + $0x8] sm:$0xff]
        %v1117 = vld [vmem:[#allocation4] sm:$0xff]
        %vm1118 = vcmask 130048
        %v1120 = vsel %vm1118, %v1117, 0
        %1122 = vmatpush.msra.mxu0 0.0
        %1123 = vmatpush.msra.mxu0 0.0
        %1124 = vmatpush.msra.mxu0 0.0
        %1125 = vmatpush.msra.mxu0 0.0
        %1126 = vmatpush.msra.mxu0 0.0
        %1127 = vmatpush.msra.mxu0 0.0
        %1128 = vmatpush.msra.mxu0 0.0
        %1129 = vmatpush.msra.mxu0 0.0
        %1130 = vmatpush.msra.mxu0 0.0
        %1131 = vmatpush.msra.mxu0 0.0
        %1132 = vmatpush.msra.mxu0 0.0
        %1133 = vmatpush.msra.mxu0 0.0
        %1134 = vmatpush.msra.mxu0 0.0
        %1135 = vmatpush.msra.mxu0 0.0
        %1136 = vmatpush.msra.mxu0 %v1112
        %1137 = vmatpush.msra.mxu0 %v1111
        %1138 = vmatmul.f32.gmra.mxu0 %v1120
        %v1139 = vpop.f32.mrf.mxu0
        %v1140 = vadd.f32 0.0, %v1139
        %1141 = vdwg.mxu0
        %s1142 = scalar_lea.vmem [#allocation4], 8
        %v1143 = vld [vmem:[%s1142] sm:$0xff]
        %v1145 = vsel %vm1118, %v1143, 0
        %1147 = vmatpush.msra.mxu0 0.0
        %1148 = vmatpush.msra.mxu0 0.0
        %1149 = vmatpush.msra.mxu0 0.0
        %1150 = vmatpush.msra.mxu0 0.0
        %1151 = vmatpush.msra.mxu0 0.0
        %1152 = vmatpush.msra.mxu0 0.0
        %1153 = vmatpush.msra.mxu0 0.0
        %1154 = vmatpush.msra.mxu0 0.0
        %1155 = vmatpush.msra.mxu0 0.0
        %1156 = vmatpush.msra.mxu0 0.0
        %1157 = vmatpush.msra.mxu0 0.0
        %1158 = vmatpush.msra.mxu0 0.0
        %1159 = vmatpush.msra.mxu0 0.0
        %1160 = vmatpush.msra.mxu0 0.0
        %1161 = vmatpush.msra.mxu0 %v1112
        %1162 = vmatpush.msra.mxu0 %v1111
        %1163 = vmatmul.f32.gmra.mxu0 %v1145
        %v1164 = vpop.f32.mrf.mxu0
        %v1165 = vadd.f32 0.0, %v1164
        %1166 = vdwg.mxu0
        %s1167 = scalar_lea.vmem [#allocation4], 16
        %v1168 = vld [vmem:[%s1167] sm:$0xff]
        %v1170 = vsel %vm1118, %v1168, 0
        %1172 = vmatpush.msra.mxu0 0.0
        %1173 = vmatpush.msra.mxu0 0.0
        %1174 = vmatpush.msra.mxu0 0.0
        %1175 = vmatpush.msra.mxu0 0.0
        %1176 = vmatpush.msra.mxu0 0.0
        %1177 = vmatpush.msra.mxu0 0.0
        %1178 = vmatpush.msra.mxu0 0.0
        %1179 = vmatpush.msra.mxu0 0.0
        %1180 = vmatpush.msra.mxu0 0.0
        %1181 = vmatpush.msra.mxu0 0.0
        %1182 = vmatpush.msra.mxu0 0.0
        %1183 = vmatpush.msra.mxu0 0.0
        %1184 = vmatpush.msra.mxu0 0.0
        %1185 = vmatpush.msra.mxu0 0.0
        %1186 = vmatpush.msra.mxu0 %v1112
        %1187 = vmatpush.msra.mxu0 %v1111
        %1188 = vmatmul.f32.gmra.mxu0 %v1170
        %v1189 = vpop.f32.mrf.mxu0
        %v1190 = vadd.f32 0.0, %v1189
        %1191 = vdwg.mxu0
        %1193 = vrot.lane.b32.xlu0 %v1165, 16
        %v1194 = vpop.permute.xlu0 %1193
        %1197 = vrot.lane.b32.xlu0 %v1190, 32
        %v1198 = vpop.permute.xlu0 %1197
        %v1200 = vsel %vm1118, %v1140, %v1194
        %vm1201 = vcmask 261120
        %v1202 = vsel %vm1201, %v1200, %v1198
        %v1203 = vld [vmem:[#allocation6] sm:$0xff]
        %v1204 = vld [vmem:[#allocation6 + $0x8] sm:$0xff]
        %v1205 = vld [vmem:[#allocation6 + $0x10] sm:$0xff]
        %v1206 = vld [vmem:[#allocation6 + $0x18] sm:$0xff]
        %v1207 = vld [vmem:[#allocation6 + $0x20] sm:$0xff]
        %v1208 = vld [vmem:[#allocation6 + $0x28] sm:$0xff]
        %v1209 = vld [vmem:[%s5] sm:$0x1]
        %v1211 = vperm.slane %v1209, 0
        %vm1213 = vcmask 392192
        %v1215 = vsel %vm1213, %v1202, 0
        %1217 = vmatpush.msra.mxu0 0.0
        %1218 = vmatpush.msra.mxu0 0.0
        %1219 = vmatpush.msra.mxu0 0.0
        %1220 = vmatpush.msra.mxu0 0.0
        %1221 = vmatpush.msra.mxu0 0.0
        %1222 = vmatpush.msra.mxu0 0.0
        %1223 = vmatpush.msra.mxu0 0.0
        %1224 = vmatpush.msra.mxu0 0.0
        %1225 = vmatpush.msra.mxu0 0.0
        %1226 = vmatpush.msra.mxu0 0.0
        %1227 = vmatpush.msra.mxu0 %v1208
        %1228 = vmatpush.msra.mxu0 %v1207
        %1229 = vmatpush.msra.mxu0 %v1206
        %1230 = vmatpush.msra.mxu0 %v1205
        %1231 = vmatpush.msra.mxu0 %v1204
        %1232 = vmatpush.msra.mxu0 %v1203
        %1233 = vmatmul.f32.gmra.mxu0 %v1215
        %v1234 = vpop.f32.mrf.mxu0
        %v1235 = vadd.f32 %v1211, %v1234
        %1236 = vdwg.mxu0
        %v1237 = vmax.f32 %v1235, 0.0
        %v1238 = vld [vmem:[#allocation7] sm:$0xf]
        %vm1239 = vcmask 64512
        %v1241 = vsel %vm1239, %v1238, 0
        %1243 = vmatpush.msra.mxu0 0.0
        %1244 = vmatpush.msra.mxu0 0.0
        %1245 = vmatpush.msra.mxu0 0.0
        %1246 = vmatpush.msra.mxu0 0.0
        %1247 = vmatpush.msra.mxu0 0.0
        %1248 = vmatpush.msra.mxu0 0.0
        %1249 = vmatpush.msra.mxu0 0.0
        %1250 = vmatpush.msra.mxu0 0.0
        %1251 = vmatpush.msra.mxu0 0.0
        %1252 = vmatpush.msra.mxu0 0.0
        %1253 = vmatpush.msra.mxu0 0.0
        %1254 = vmatpush.msra.mxu0 0.0
        %1255 = vmatpush.msra.mxu0 0.0
        %1256 = vmatpush.msra.mxu0 0.0
        %1257 = vmatpush.msra.mxu0 0.0
        %1258 = vmatpush.msra.mxu0 %v1237
        %1259 = vmatmul.f32.gmra.mxu0 %v1241
        %v1260 = vpop.f32.mrf.mxu0
        %v1261 = vadd.f32 0.0, %v1260
        %1262 = vdwg.mxu0
        %s1263 = scalar_lea.vmem [#allocation7], 4
        %v1264 = vld [vmem:[%s1263] sm:$0xf]
        %v1266 = vsel %vm1239, %v1264, 0
        %1268 = vmatpush.msra.mxu0 0.0
        %1269 = vmatpush.msra.mxu0 0.0
        %1270 = vmatpush.msra.mxu0 0.0
        %1271 = vmatpush.msra.mxu0 0.0
        %1272 = vmatpush.msra.mxu0 0.0
        %1273 = vmatpush.msra.mxu0 0.0
        %1274 = vmatpush.msra.mxu0 0.0
        %1275 = vmatpush.msra.mxu0 0.0
        %1276 = vmatpush.msra.mxu0 0.0
        %1277 = vmatpush.msra.mxu0 0.0
        %1278 = vmatpush.msra.mxu0 0.0
        %1279 = vmatpush.msra.mxu0 0.0
        %1280 = vmatpush.msra.mxu0 0.0
        %1281 = vmatpush.msra.mxu0 0.0
        %1282 = vmatpush.msra.mxu0 0.0
        %1283 = vmatpush.msra.mxu0 %v1237
        %1284 = vmatmul.f32.gmra.mxu0 %v1266
        %v1285 = vpop.f32.mrf.mxu0
        %v1286 = vadd.f32 0.0, %v1285
        %1287 = vdwg.mxu0
        %s1288 = scalar_lea.vmem [#allocation7], 8
        %v1289 = vld [vmem:[%s1288] sm:$0xf]
        %v1291 = vsel %vm1239, %v1289, 0
        %1293 = vmatpush.msra.mxu0 0.0
        %1294 = vmatpush.msra.mxu0 0.0
        %1295 = vmatpush.msra.mxu0 0.0
        %1296 = vmatpush.msra.mxu0 0.0
        %1297 = vmatpush.msra.mxu0 0.0
        %1298 = vmatpush.msra.mxu0 0.0
        %1299 = vmatpush.msra.mxu0 0.0
        %1300 = vmatpush.msra.mxu0 0.0
        %1301 = vmatpush.msra.mxu0 0.0
        %1302 = vmatpush.msra.mxu0 0.0
        %1303 = vmatpush.msra.mxu0 0.0
        %1304 = vmatpush.msra.mxu0 0.0
        %1305 = vmatpush.msra.mxu0 0.0
        %1306 = vmatpush.msra.mxu0 0.0
        %1307 = vmatpush.msra.mxu0 0.0
        %1308 = vmatpush.msra.mxu0 %v1237
        %1309 = vmatmul.f32.gmra.mxu0 %v1291
        %v1310 = vpop.f32.mrf.mxu0
        %v1311 = vadd.f32 0.0, %v1310
        %1312 = vdwg.mxu0
        %1314 = vrot.lane.b32.xlu0 %v1286, 64
        %v1315 = vpop.permute.xlu0 %1314
        %vm1317 = vcmask 523264
        %v1318 = vsel %vm1317, %v1261, %v1315
        %v1319 = vld [vmem:[%s7] sm:$0xff]
        %v1320 = vld [vmem:[%s7 + $0x8] sm:$0xff]
        %v1321 = vld [vmem:[%s7 + $0x10] sm:$0xff]
        %v1322 = vld [vmem:[%s7 + $0x18] sm:$0xff]
        %v1323 = vld [vmem:[%s7 + $0x20] sm:$0xff]
        %v1324 = vld [vmem:[%s7 + $0x28] sm:$0xff]
        %v1325 = vld [vmem:[%s7 + $0x30] sm:$0xff]
        %v1326 = vld [vmem:[%s7 + $0x38] sm:$0xff]
        %v1327 = vld [vmem:[%s7 + $0x40] sm:$0xff]
        %v1328 = vld [vmem:[%s7 + $0x48] sm:$0xff]
        %v1329 = vld [vmem:[%s7 + $0x50] sm:$0xff]
        %v1330 = vld [vmem:[%s7 + $0x58] sm:$0xff]
        %v1331 = vld [vmem:[%s7 + $0x60] sm:$0xff]
        %v1332 = vld [vmem:[%s7 + $0x68] sm:$0xff]
        %v1333 = vld [vmem:[%s7 + $0x70] sm:$0xff]
        %v1334 = vld [vmem:[%s7 + $0x78] sm:$0xff]
        %v1335 = vld [vmem:[%s7 + $0x80] sm:$0xff]
        %v1336 = vld [vmem:[%s7 + $0x88] sm:$0xff]
        %v1337 = vld [vmem:[%s7 + $0x90] sm:$0xff]
        %v1338 = vld [vmem:[%s7 + $0x98] sm:$0xff]
        %v1339 = vld [vmem:[%s7 + $0xa0] sm:$0xff]
        %v1340 = vld [vmem:[%s7 + $0xa8] sm:$0xff]
        %v1341 = vld [vmem:[%s7 + $0xb0] sm:$0xff]
        %v1342 = vld [vmem:[%s7 + $0xb8] sm:$0xff]
        %v1343 = vld [vmem:[#allocation9] sm:$0x1]
        %v1345 = vperm.slane %v1343, 0
        %v1348 = vsel %vm1317, %v1311, 0
        %1350 = vmatpush.msra.mxu0 %v1334
        %1351 = vmatpush.msra.mxu0 %v1333
        %1352 = vmatpush.msra.mxu0 %v1332
        %1353 = vmatpush.msra.mxu0 %v1331
        %1354 = vmatpush.msra.mxu0 %v1330
        %1355 = vmatpush.msra.mxu0 %v1329
        %1356 = vmatpush.msra.mxu0 %v1328
        %1357 = vmatpush.msra.mxu0 %v1327
        %1358 = vmatpush.msra.mxu0 %v1326
        %1359 = vmatpush.msra.mxu0 %v1325
        %1360 = vmatpush.msra.mxu0 %v1324
        %1361 = vmatpush.msra.mxu0 %v1323
        %1362 = vmatpush.msra.mxu0 %v1322
        %1363 = vmatpush.msra.mxu0 %v1321
        %1364 = vmatpush.msra.mxu0 %v1320
        %1365 = vmatpush.msra.mxu0 %v1319
        %1366 = vmatmul.f32.gmra.mxu0 %v1318
        %v1367 = vpop.f32.mrf.mxu0
        %v1368 = vadd.f32 %v1345, %v1367
        %1369 = vdwg.mxu0
        %1370 = vmatpush.msra.mxu0 0.0
        %1371 = vmatpush.msra.mxu0 0.0
        %1372 = vmatpush.msra.mxu0 0.0
        %1373 = vmatpush.msra.mxu0 0.0
        %1374 = vmatpush.msra.mxu0 0.0
        %1375 = vmatpush.msra.mxu0 0.0
        %1376 = vmatpush.msra.mxu0 0.0
        %1377 = vmatpush.msra.mxu0 0.0
        %1378 = vmatpush.msra.mxu0 %v1342
        %1379 = vmatpush.msra.mxu0 %v1341
        %1380 = vmatpush.msra.mxu0 %v1340
        %1381 = vmatpush.msra.mxu0 %v1339
        %1382 = vmatpush.msra.mxu0 %v1338
        %1383 = vmatpush.msra.mxu0 %v1337
        %1384 = vmatpush.msra.mxu0 %v1336
        %1385 = vmatpush.msra.mxu0 %v1335
        %1386 = vmatmul.f32.gmra.mxu0 %v1348
        %v1387 = vpop.f32.mrf.mxu0
        %v1388 = vadd.f32 %v1368, %v1387
        %1389 = vdwg.mxu0
        %v1390 = vmax.f32 %v1388, 0.0
        %v1392 = vrot.slane %v1390, 1
        %1393 = vrot.lane.b32.xlu0 %v1392, 64
        %v1394 = vpop.permute.xlu0 %1393
        %v1396 = vrot.slane %v1390, 2
        %v1398 = vrot.slane %v1390, 3
        %1399 = vrot.lane.b32.xlu0 %v1398, 64
        %v1400 = vpop.permute.xlu0 %1399
        %v1402 = vsel %vm1317, %v1390, %v1394
        %v1403 = vsel %vm1317, %v1396, %v1400
        %v1404 = vld [vmem:[%s9] sm:$0xff]
        %v1405 = vld [vmem:[%s9 + $0x8] sm:$0xff]
        %v1406 = vld [vmem:[%s9 + $0x10] sm:$0xff]
        %v1407 = vld [vmem:[%s9 + $0x18] sm:$0xff]
        %v1408 = vld [vmem:[%s9 + $0x20] sm:$0xff]
        %v1409 = vld [vmem:[%s9 + $0x28] sm:$0xff]
        %v1410 = vld [vmem:[%s9 + $0x30] sm:$0xff]
        %v1411 = vld [vmem:[%s9 + $0x38] sm:$0xff]
        %v1412 = vld [vmem:[%s9 + $0x40] sm:$0xff]
        %v1413 = vld [vmem:[%s9 + $0x48] sm:$0xff]
        %v1414 = vld [vmem:[%s9 + $0x50] sm:$0xff]
        %v1415 = vld [vmem:[%s9 + $0x58] sm:$0xff]
        %v1416 = vld [vmem:[%s9 + $0x60] sm:$0xff]
        %v1417 = vld [vmem:[%s9 + $0x68] sm:$0xff]
        %v1418 = vld [vmem:[%s9 + $0x70] sm:$0xff]
        %v1419 = vld [vmem:[%s9 + $0x78] sm:$0xff]
        %v1420 = vld [vmem:[%s9 + $0x80] sm:$0xff]
        %v1421 = vld [vmem:[%s9 + $0x88] sm:$0xff]
        %v1422 = vld [vmem:[%s9 + $0x90] sm:$0xff]
        %v1423 = vld [vmem:[%s9 + $0x98] sm:$0xff]
        %v1424 = vld [vmem:[%s9 + $0xa0] sm:$0xff]
        %v1425 = vld [vmem:[%s9 + $0xa8] sm:$0xff]
        %v1426 = vld [vmem:[%s9 + $0xb0] sm:$0xff]
        %v1427 = vld [vmem:[%s9 + $0xb8] sm:$0xff]
        %v1428 = vld [vmem:[%s9 + $0xc0] sm:$0xff]
        %v1429 = vld [vmem:[%s9 + $0xc8] sm:$0xff]
        %v1430 = vld [vmem:[%s9 + $0xd0] sm:$0xff]
        %v1431 = vld [vmem:[%s9 + $0xd8] sm:$0xff]
        %v1432 = vld [vmem:[%s9 + $0xe0] sm:$0xff]
        %v1433 = vld [vmem:[%s9 + $0xe8] sm:$0xff]
        %v1434 = vld [vmem:[%s9 + $0xf0] sm:$0xff]
        %v1435 = vld [vmem:[%s9 + $0xf8] sm:$0xff]
        %v1436 = vld [vmem:[#allocation10] sm:$0x1]
        %1437 = vmatpush.msra.mxu0 %v1419
        %1438 = vmatpush.msra.mxu0 %v1418
        %1439 = vmatpush.msra.mxu0 %v1417
        %1440 = vmatpush.msra.mxu0 %v1416
        %1441 = vmatpush.msra.mxu0 %v1415
        %1442 = vmatpush.msra.mxu0 %v1414
        %1443 = vmatpush.msra.mxu0 %v1413
        %1444 = vmatpush.msra.mxu0 %v1412
        %1445 = vmatpush.msra.mxu0 %v1411
        %1446 = vmatpush.msra.mxu0 %v1410
        %1447 = vmatpush.msra.mxu0 %v1409
        %1448 = vmatpush.msra.mxu0 %v1408
        %1449 = vmatpush.msra.mxu0 %v1407
        %1450 = vmatpush.msra.mxu0 %v1406
        %1451 = vmatpush.msra.mxu0 %v1405
        %1452 = vmatpush.msra.mxu0 %v1404
        %1453 = vmatmul.f32.gmra.mxu0 %v1402
        %v1454 = vpop.f32.mrf.mxu0
        %v1455 = vadd.f32 %v1436, %v1454
        %1456 = vdwg.mxu0
        %1457 = vmatpush.msra.mxu0 %v1435
        %1458 = vmatpush.msra.mxu0 %v1434
        %1459 = vmatpush.msra.mxu0 %v1433
        %1460 = vmatpush.msra.mxu0 %v1432
        %1461 = vmatpush.msra.mxu0 %v1431
        %1462 = vmatpush.msra.mxu0 %v1430
        %1463 = vmatpush.msra.mxu0 %v1429
        %1464 = vmatpush.msra.mxu0 %v1428
        %1465 = vmatpush.msra.mxu0 %v1427
        %1466 = vmatpush.msra.mxu0 %v1426
        %1467 = vmatpush.msra.mxu0 %v1425
        %1468 = vmatpush.msra.mxu0 %v1424
        %1469 = vmatpush.msra.mxu0 %v1423
        %1470 = vmatpush.msra.mxu0 %v1422
        %1471 = vmatpush.msra.mxu0 %v1421
        %1472 = vmatpush.msra.mxu0 %v1420
        %1473 = vmatmul.f32.gmra.mxu0 %v1403
        %v1474 = vpop.f32.mrf.mxu0
        %v1475 = vadd.f32 %v1455, %v1474
        %1476 = vdwg.mxu0
        %v1477 = vld [vmem:[#allocation12] sm:$0xff]
        %v1478 = vld [vmem:[#allocation12 + $0x8] sm:$0xff]
        %v1479 = vld [vmem:[#allocation12 + $0x10] sm:$0xff]
        %v1480 = vld [vmem:[#allocation12 + $0x18] sm:$0xff]
        %v1481 = vld [vmem:[#allocation12 + $0x20] sm:$0xff]
        %v1482 = vld [vmem:[#allocation12 + $0x28] sm:$0xff]
        %v1483 = vld [vmem:[#allocation12 + $0x30] sm:$0xff]
        %v1484 = vld [vmem:[#allocation12 + $0x38] sm:$0xff]
        %v1485 = vld [vmem:[%s12] sm:$0x3]
        %v1487 = vperm.slane %v1485, 0
        %v1488 = vperm.slane %v1485, 1
        %v1492 = vsel %vm1201, %v1475, 0
        %1494 = vmatpush.msra.mxu0 0.0
        %1495 = vmatpush.msra.mxu0 0.0
        %1496 = vmatpush.msra.mxu0 0.0
        %1497 = vmatpush.msra.mxu0 0.0
        %1498 = vmatpush.msra.mxu0 0.0
        %1499 = vmatpush.msra.mxu0 0.0
        %1500 = vmatpush.msra.mxu0 0.0
        %1501 = vmatpush.msra.mxu0 0.0
        %1502 = vmatpush.msra.mxu0 0.0
        %1503 = vmatpush.msra.mxu0 0.0
        %1504 = vmatpush.msra.mxu0 0.0
        %1505 = vmatpush.msra.mxu0 0.0
        %1506 = vmatpush.msra.mxu0 %v1483
        %1507 = vmatpush.msra.mxu0 %v1481
        %1508 = vmatpush.msra.mxu0 %v1479
        %1509 = vmatpush.msra.mxu0 %v1477
        %1510 = vmatmul.f32.gmra.mxu0 %v1492
        %v1511 = vpop.f32.mrf.mxu0
        %v1512 = vadd.f32 %v1487, %v1511
        %1513 = vdwg.mxu0
        %1514 = vmatpush.msra.mxu0 0.0
        %1515 = vmatpush.msra.mxu0 0.0
        %1516 = vmatpush.msra.mxu0 0.0
        %1517 = vmatpush.msra.mxu0 0.0
        %1518 = vmatpush.msra.mxu0 0.0
        %1519 = vmatpush.msra.mxu0 0.0
        %1520 = vmatpush.msra.mxu0 0.0
        %1521 = vmatpush.msra.mxu0 0.0
        %1522 = vmatpush.msra.mxu0 0.0
        %1523 = vmatpush.msra.mxu0 0.0
        %1524 = vmatpush.msra.mxu0 0.0
        %1525 = vmatpush.msra.mxu0 0.0
        %1526 = vmatpush.msra.mxu0 %v1484
        %1527 = vmatpush.msra.mxu0 %v1482
        %1528 = vmatpush.msra.mxu0 %v1480
        %1529 = vmatpush.msra.mxu0 %v1478
        %1530 = vmatmul.f32.gmra.mxu0 %v1492
        %v1531 = vpop.f32.mrf.mxu0
        %v1532 = vadd.f32 %v1488, %v1531
        %1533 = vdwg.mxu0
        %v1534 = vmax.f32 %v1512, 0.0
        %v1535 = vmax.f32 %v1532, 0.0
        %v1537 = vrot.slane %v1534, 7
        %1538 = vrot.lane.b32.xlu0 %v1537, 64
        %v1539 = vpop.permute.xlu0 %1538
        %v1542 = vrot.slane %v1535, 6
        %v1544 = vrot.slane %v1535, 5
        %1545 = vrot.lane.b32.xlu0 %v1544, 64
        %v1546 = vpop.permute.xlu0 %1545
        %vm1548 = vcmask 1040384
        %v1549 = vsel %vm1548, %v1534, %v1539
        %vm1550 = vcmask 1041408
        %v1551 = vsel %vm1550, %v1549, %v1542
        %vm1552 = vcmask 1042432
        %v1553 = vsel %vm1552, %v1551, %v1546
        %v1554 = vld [vmem:[%s13] sm:$0xff]
        %vm1555 = vcmask 31744
        %v1557 = vsel %vm1555, %v1554, 0
        %vm1559 = vcmask 1043456
        %v1561 = vsel %vm1559, %v1553, 0
        %1563 = vmatpush.msra.mxu0 0.0
        %1564 = vmatpush.msra.mxu0 0.0
        %1565 = vmatpush.msra.mxu0 0.0
        %1566 = vmatpush.msra.mxu0 0.0
        %1567 = vmatpush.msra.mxu0 0.0
        %1568 = vmatpush.msra.mxu0 0.0
        %1569 = vmatpush.msra.mxu0 0.0
        %1570 = vmatpush.msra.mxu0 0.0
        %1571 = vmatpush.msra.mxu0 0.0
        %1572 = vmatpush.msra.mxu0 0.0
        %1573 = vmatpush.msra.mxu0 0.0
        %1574 = vmatpush.msra.mxu0 0.0
        %1575 = vmatpush.msra.mxu0 0.0
        %1576 = vmatpush.msra.mxu0 0.0
        %1577 = vmatpush.msra.mxu0 0.0
        %1578 = vmatpush.msra.mxu0 %v1561
        %1579 = vmatmul.f32.gmra.mxu0 %v1557
        %v1580 = vpop.f32.mrf.mxu0
        %v1581 = vadd.f32 0.0, %v1580
        %1582 = vdwg.mxu0
        %s1583 = scalar_lea.vmem %s13, 8
        %v1584 = vld [vmem:[%s1583] sm:$0xff]
        %v1586 = vsel %vm1555, %v1584, 0
        %1588 = vmatpush.msra.mxu0 0.0
        %1589 = vmatpush.msra.mxu0 0.0
        %1590 = vmatpush.msra.mxu0 0.0
        %1591 = vmatpush.msra.mxu0 0.0
        %1592 = vmatpush.msra.mxu0 0.0
        %1593 = vmatpush.msra.mxu0 0.0
        %1594 = vmatpush.msra.mxu0 0.0
        %1595 = vmatpush.msra.mxu0 0.0
        %1596 = vmatpush.msra.mxu0 0.0
        %1597 = vmatpush.msra.mxu0 0.0
        %1598 = vmatpush.msra.mxu0 0.0
        %1599 = vmatpush.msra.mxu0 0.0
        %1600 = vmatpush.msra.mxu0 0.0
        %1601 = vmatpush.msra.mxu0 0.0
        %1602 = vmatpush.msra.mxu0 0.0
        %1603 = vmatpush.msra.mxu0 %v1561
        %1604 = vmatmul.f32.gmra.mxu0 %v1586
        %v1605 = vpop.f32.mrf.mxu0
        %v1606 = vadd.f32 0.0, %v1605
        %1607 = vdwg.mxu0
        %s1608 = scalar_lea.vmem %s13, 16
        %v1609 = vld [vmem:[%s1608] sm:$0xff]
        %v1611 = vsel %vm1555, %v1609, 0
        %1613 = vmatpush.msra.mxu0 0.0
        %1614 = vmatpush.msra.mxu0 0.0
        %1615 = vmatpush.msra.mxu0 0.0
        %1616 = vmatpush.msra.mxu0 0.0
        %1617 = vmatpush.msra.mxu0 0.0
        %1618 = vmatpush.msra.mxu0 0.0
        %1619 = vmatpush.msra.mxu0 0.0
        %1620 = vmatpush.msra.mxu0 0.0
        %1621 = vmatpush.msra.mxu0 0.0
        %1622 = vmatpush.msra.mxu0 0.0
        %1623 = vmatpush.msra.mxu0 0.0
        %1624 = vmatpush.msra.mxu0 0.0
        %1625 = vmatpush.msra.mxu0 0.0
        %1626 = vmatpush.msra.mxu0 0.0
        %1627 = vmatpush.msra.mxu0 0.0
        %1628 = vmatpush.msra.mxu0 %v1561
        %1629 = vmatmul.f32.gmra.mxu0 %v1611
        %v1630 = vpop.f32.mrf.mxu0
        %v1631 = vadd.f32 0.0, %v1630
        %1632 = vdwg.mxu0
        %1634 = vrot.lane.b32.xlu0 %v1606, 64
        %v1635 = vpop.permute.xlu0 %1634
        %v1637 = vsel %vm1317, %v1581, %v1635
        %v1638 = vld [vmem:[%s14] sm:$0xff]
        %v1639 = vld [vmem:[%s14 + $0x8] sm:$0xff]
        %v1640 = vld [vmem:[%s14 + $0x10] sm:$0xff]
        %v1641 = vld [vmem:[%s14 + $0x18] sm:$0xff]
        %v1642 = vld [vmem:[%s14 + $0x20] sm:$0xff]
        %v1643 = vld [vmem:[%s14 + $0x28] sm:$0xff]
        %v1644 = vld [vmem:[%s14 + $0x30] sm:$0xff]
        %v1645 = vld [vmem:[%s14 + $0x38] sm:$0xff]
        %v1646 = vld [vmem:[%s14 + $0x40] sm:$0xff]
        %v1647 = vld [vmem:[%s14 + $0x48] sm:$0xff]
        %v1648 = vld [vmem:[%s14 + $0x50] sm:$0xff]
        %v1649 = vld [vmem:[%s14 + $0x58] sm:$0xff]
        %v1650 = vld [vmem:[%s14 + $0x60] sm:$0xff]
        %v1651 = vld [vmem:[%s14 + $0x68] sm:$0xff]
        %v1652 = vld [vmem:[%s14 + $0x70] sm:$0xff]
        %v1653 = vld [vmem:[%s14 + $0x78] sm:$0xff]
        %v1654 = vld [vmem:[%s14 + $0x80] sm:$0xff]
        %v1655 = vld [vmem:[%s14 + $0x88] sm:$0xff]
        %v1656 = vld [vmem:[%s14 + $0x90] sm:$0xff]
        %v1657 = vld [vmem:[%s14 + $0x98] sm:$0xff]
        %v1658 = vld [vmem:[%s14 + $0xa0] sm:$0xff]
        %v1659 = vld [vmem:[%s14 + $0xa8] sm:$0xff]
        %v1660 = vld [vmem:[%s14 + $0xb0] sm:$0xff]
        %v1661 = vld [vmem:[%s14 + $0xb8] sm:$0xff]
        %v1662 = vld [vmem:[#allocation13] sm:$0x1]
        %v1664 = vperm.slane %v1662, 0
        %v1667 = vsel %vm1317, %v1631, 0
        %1669 = vmatpush.msra.mxu0 %v1653
        %1670 = vmatpush.msra.mxu0 %v1652
        %1671 = vmatpush.msra.mxu0 %v1651
        %1672 = vmatpush.msra.mxu0 %v1650
        %1673 = vmatpush.msra.mxu0 %v1649
        %1674 = vmatpush.msra.mxu0 %v1648
        %1675 = vmatpush.msra.mxu0 %v1647
        %1676 = vmatpush.msra.mxu0 %v1646
        %1677 = vmatpush.msra.mxu0 %v1645
        %1678 = vmatpush.msra.mxu0 %v1644
        %1679 = vmatpush.msra.mxu0 %v1643
        %1680 = vmatpush.msra.mxu0 %v1642
        %1681 = vmatpush.msra.mxu0 %v1641
        %1682 = vmatpush.msra.mxu0 %v1640
        %1683 = vmatpush.msra.mxu0 %v1639
        %1684 = vmatpush.msra.mxu0 %v1638
        %1685 = vmatmul.f32.gmra.mxu0 %v1637
        %v1686 = vpop.f32.mrf.mxu0
        %v1687 = vadd.f32 %v1664, %v1686
        %1688 = vdwg.mxu0
        %1689 = vmatpush.msra.mxu0 0.0
        %1690 = vmatpush.msra.mxu0 0.0
        %1691 = vmatpush.msra.mxu0 0.0
        %1692 = vmatpush.msra.mxu0 0.0
        %1693 = vmatpush.msra.mxu0 0.0
        %1694 = vmatpush.msra.mxu0 0.0
        %1695 = vmatpush.msra.mxu0 0.0
        %1696 = vmatpush.msra.mxu0 0.0
        %1697 = vmatpush.msra.mxu0 %v1661
        %1698 = vmatpush.msra.mxu0 %v1660
        %1699 = vmatpush.msra.mxu0 %v1659
        %1700 = vmatpush.msra.mxu0 %v1658
        %1701 = vmatpush.msra.mxu0 %v1657
        %1702 = vmatpush.msra.mxu0 %v1656
        %1703 = vmatpush.msra.mxu0 %v1655
        %1704 = vmatpush.msra.mxu0 %v1654
        %1705 = vmatmul.f32.gmra.mxu0 %v1667
        %v1706 = vpop.f32.mrf.mxu0
        %v1707 = vadd.f32 %v1687, %v1706
        %1708 = vdwg.mxu0
        %v1709 = vmax.f32 %v1707, 0.0
        %v1710 = vld [vmem:[%s16] sm:$0xff]
        %v1711 = vld [vmem:[%s16 + $0x8] sm:$0xff]
        %v1713 = vsel %vm1239, %v1710, 0
        %v1716 = vsel %vm1239, %v1711, 0
        %1718 = vmatpush.msra.mxu0 0.0
        %1719 = vmatpush.msra.mxu0 0.0
        %1720 = vmatpush.msra.mxu0 0.0
        %1721 = vmatpush.msra.mxu0 0.0
        %1722 = vmatpush.msra.mxu0 0.0
        %1723 = vmatpush.msra.mxu0 0.0
        %1724 = vmatpush.msra.mxu0 0.0
        %1725 = vmatpush.msra.mxu0 0.0
        %1726 = vmatpush.msra.mxu0 0.0
        %1727 = vmatpush.msra.mxu0 0.0
        %1728 = vmatpush.msra.mxu0 0.0
        %1729 = vmatpush.msra.mxu0 0.0
        %1730 = vmatpush.msra.mxu0 0.0
        %1731 = vmatpush.msra.mxu0 0.0
        %1732 = vmatpush.msra.mxu0 0.0
        %1733 = vmatpush.msra.mxu0 %v1709
        %1734 = vmatmul.f32.gmra.mxu0 %v1713
        %v1735 = vpop.f32.mrf.mxu0
        %v1736 = vadd.f32 0.0, %v1735
        %1737 = vmatmul.f32.gmra.mxu0 %v1716
        %v1738 = vpop.f32.mrf.mxu0
        %v1739 = vadd.f32 0.0, %v1738
        %1740 = vdwg.mxu0
        %s1741 = scalar_lea.vmem %s16, 16
        %v1742 = vld [vmem:[%s1741] sm:$0xff]
        %v1743 = vld [vmem:[%s1741 + $0x8] sm:$0xff]
        %v1745 = vsel %vm1239, %v1742, 0
        %v1748 = vsel %vm1239, %v1743, 0
        %1750 = vmatpush.msra.mxu0 0.0
        %1751 = vmatpush.msra.mxu0 0.0
        %1752 = vmatpush.msra.mxu0 0.0
        %1753 = vmatpush.msra.mxu0 0.0
        %1754 = vmatpush.msra.mxu0 0.0
        %1755 = vmatpush.msra.mxu0 0.0
        %1756 = vmatpush.msra.mxu0 0.0
        %1757 = vmatpush.msra.mxu0 0.0
        %1758 = vmatpush.msra.mxu0 0.0
        %1759 = vmatpush.msra.mxu0 0.0
        %1760 = vmatpush.msra.mxu0 0.0
        %1761 = vmatpush.msra.mxu0 0.0
        %1762 = vmatpush.msra.mxu0 0.0
        %1763 = vmatpush.msra.mxu0 0.0
        %1764 = vmatpush.msra.mxu0 0.0
        %1765 = vmatpush.msra.mxu0 %v1709
        %1766 = vmatmul.f32.gmra.mxu0 %v1745
        %v1767 = vpop.f32.mrf.mxu0
        %v1768 = vadd.f32 0.0, %v1767
        %1769 = vmatmul.f32.gmra.mxu0 %v1748
        %v1770 = vpop.f32.mrf.mxu0
        %v1771 = vadd.f32 0.0, %v1770
        %1772 = vdwg.mxu0
        %s1773 = scalar_lea.vmem %s16, 32
        %v1774 = vld [vmem:[%s1773] sm:$0xff]
        %v1775 = vld [vmem:[%s1773 + $0x8] sm:$0xff]
        %v1777 = vsel %vm1239, %v1774, 0
        %v1780 = vsel %vm1239, %v1775, 0
        %1782 = vmatpush.msra.mxu0 0.0
        %1783 = vmatpush.msra.mxu0 0.0
        %1784 = vmatpush.msra.mxu0 0.0
        %1785 = vmatpush.msra.mxu0 0.0
        %1786 = vmatpush.msra.mxu0 0.0
        %1787 = vmatpush.msra.mxu0 0.0
        %1788 = vmatpush.msra.mxu0 0.0
        %1789 = vmatpush.msra.mxu0 0.0
        %1790 = vmatpush.msra.mxu0 0.0
        %1791 = vmatpush.msra.mxu0 0.0
        %1792 = vmatpush.msra.mxu0 0.0
        %1793 = vmatpush.msra.mxu0 0.0
        %1794 = vmatpush.msra.mxu0 0.0
        %1795 = vmatpush.msra.mxu0 0.0
        %1796 = vmatpush.msra.mxu0 0.0
        %1797 = vmatpush.msra.mxu0 %v1709
        %1798 = vmatmul.f32.gmra.mxu0 %v1777
        %v1799 = vpop.f32.mrf.mxu0
        %v1800 = vadd.f32 0.0, %v1799
        %1801 = vmatmul.f32.gmra.mxu0 %v1780
        %v1802 = vpop.f32.mrf.mxu0
        %v1803 = vadd.f32 0.0, %v1802
        %1804 = vdwg.mxu0
        %1807 = vrot.lane.b32.xlu0 %v1768, 64
        %v1808 = vpop.permute.xlu0 %1807
        %1809 = vrot.lane.b32.xlu0 %v1771, 64
        %v1810 = vpop.permute.xlu0 %1809
        %v1813 = vsel %vm1317, %v1736, %v1808
        %v1814 = vsel %vm1317, %v1739, %v1810
        %v1815 = vld [vmem:[#allocation15] sm:$0xff]
        %v1816 = vld [vmem:[#allocation15 + $0x8] sm:$0xff]
        %v1817 = vld [vmem:[#allocation15 + $0x10] sm:$0xff]
        %v1818 = vld [vmem:[#allocation15 + $0x18] sm:$0xff]
        %v1819 = vld [vmem:[#allocation15 + $0x20] sm:$0xff]
        %v1820 = vld [vmem:[#allocation15 + $0x28] sm:$0xff]
        %v1821 = vld [vmem:[#allocation15 + $0x30] sm:$0xff]
        %v1822 = vld [vmem:[#allocation15 + $0x38] sm:$0xff]
        %v1823 = vld [vmem:[#allocation15 + $0x40] sm:$0xff]
        %v1824 = vld [vmem:[#allocation15 + $0x48] sm:$0xff]
        %v1825 = vld [vmem:[#allocation15 + $0x50] sm:$0xff]
        %v1826 = vld [vmem:[#allocation15 + $0x58] sm:$0xff]
        %v1827 = vld [vmem:[#allocation15 + $0x60] sm:$0xff]
        %v1828 = vld [vmem:[#allocation15 + $0x68] sm:$0xff]
        %v1829 = vld [vmem:[#allocation15 + $0x70] sm:$0xff]
        %v1830 = vld [vmem:[#allocation15 + $0x78] sm:$0xff]
        %v1831 = vld [vmem:[#allocation15 + $0x80] sm:$0xff]
        %v1832 = vld [vmem:[#allocation15 + $0x88] sm:$0xff]
        %v1833 = vld [vmem:[#allocation15 + $0x90] sm:$0xff]
        %v1834 = vld [vmem:[#allocation15 + $0x98] sm:$0xff]
        %v1835 = vld [vmem:[#allocation15 + $0xa0] sm:$0xff]
        %v1836 = vld [vmem:[#allocation15 + $0xa8] sm:$0xff]
        %v1837 = vld [vmem:[#allocation15 + $0xb0] sm:$0xff]
        %v1838 = vld [vmem:[#allocation15 + $0xb8] sm:$0xff]
        %v1839 = vld [vmem:[#allocation16] sm:$0x1]
        %v1841 = vperm.slane %v1839, 0
        %v1844 = vsel %vm1317, %v1800, 0
        %v1847 = vsel %vm1317, %v1803, 0
        %1849 = vmatpush.msra.mxu0 %v1830
        %1850 = vmatpush.msra.mxu0 %v1829
        %1851 = vmatpush.msra.mxu0 %v1828
        %1852 = vmatpush.msra.mxu0 %v1827
        %1853 = vmatpush.msra.mxu0 %v1826
        %1854 = vmatpush.msra.mxu0 %v1825
        %1855 = vmatpush.msra.mxu0 %v1824
        %1856 = vmatpush.msra.mxu0 %v1823
        %1857 = vmatpush.msra.mxu0 %v1822
        %1858 = vmatpush.msra.mxu0 %v1821
        %1859 = vmatpush.msra.mxu0 %v1820
        %1860 = vmatpush.msra.mxu0 %v1819
        %1861 = vmatpush.msra.mxu0 %v1818
        %1862 = vmatpush.msra.mxu0 %v1817
        %1863 = vmatpush.msra.mxu0 %v1816
        %1864 = vmatpush.msra.mxu0 %v1815
        %1865 = vmatmul.f32.gmra.mxu0 %v1813
        %v1866 = vpop.f32.mrf.mxu0
        %v1867 = vadd.f32 %v1841, %v1866
        %1868 = vmatmul.f32.gmra.mxu0 %v1814
        %v1869 = vpop.f32.mrf.mxu0
        %v1870 = vadd.f32 %v1841, %v1869
        %1871 = vdwg.mxu0
        %1872 = vmatpush.msra.mxu0 0.0
        %1873 = vmatpush.msra.mxu0 0.0
        %1874 = vmatpush.msra.mxu0 0.0
        %1875 = vmatpush.msra.mxu0 0.0
        %1876 = vmatpush.msra.mxu0 0.0
        %1877 = vmatpush.msra.mxu0 0.0
        %1878 = vmatpush.msra.mxu0 0.0
        %1879 = vmatpush.msra.mxu0 0.0
        %1880 = vmatpush.msra.mxu0 %v1838
        %1881 = vmatpush.msra.mxu0 %v1837
        %1882 = vmatpush.msra.mxu0 %v1836
        %1883 = vmatpush.msra.mxu0 %v1835
        %1884 = vmatpush.msra.mxu0 %v1834
        %1885 = vmatpush.msra.mxu0 %v1833
        %1886 = vmatpush.msra.mxu0 %v1832
        %1887 = vmatpush.msra.mxu0 %v1831
        %1888 = vmatmul.f32.gmra.mxu0 %v1844
        %v1889 = vpop.f32.mrf.mxu0
        %v1890 = vadd.f32 %v1867, %v1889
        %1891 = vmatmul.f32.gmra.mxu0 %v1847
        %v1892 = vpop.f32.mrf.mxu0
        %v1893 = vadd.f32 %v1870, %v1892
        %1894 = vdwg.mxu0
        %v1895 = vmax.f32 %v1890, 0.0
        %v1896 = vmax.f32 %v1893, 0.0
        %v1897 = vld [vmem:[#allocation18] sm:$0xff]
        %v1898 = vld [vmem:[#allocation18 + $0x8] sm:$0xff]
        %v1900 = vsel %vm1118, %v1897, 0
        %v1903 = vsel %vm1118, %v1898, 0
        %1905 = vmatpush.msra.mxu0 0.0
        %1906 = vmatpush.msra.mxu0 0.0
        %1907 = vmatpush.msra.mxu0 0.0
        %1908 = vmatpush.msra.mxu0 0.0
        %1909 = vmatpush.msra.mxu0 0.0
        %1910 = vmatpush.msra.mxu0 0.0
        %1911 = vmatpush.msra.mxu0 0.0
        %1912 = vmatpush.msra.mxu0 0.0
        %1913 = vmatpush.msra.mxu0 0.0
        %1914 = vmatpush.msra.mxu0 0.0
        %1915 = vmatpush.msra.mxu0 0.0
        %1916 = vmatpush.msra.mxu0 0.0
        %1917 = vmatpush.msra.mxu0 0.0
        %1918 = vmatpush.msra.mxu0 0.0
        %1919 = vmatpush.msra.mxu0 %v1896
        %1920 = vmatpush.msra.mxu0 %v1895
        %1921 = vmatmul.f32.gmra.mxu0 %v1900
        %v1922 = vpop.f32.mrf.mxu0
        %v1923 = vadd.f32 0.0, %v1922
        %1924 = vmatmul.f32.gmra.mxu0 %v1903
        %v1925 = vpop.f32.mrf.mxu0
        %v1926 = vadd.f32 0.0, %v1925
        %1927 = vdwg.mxu0
        %s1928 = scalar_lea.vmem [#allocation18], 16
        %v1929 = vld [vmem:[%s1928] sm:$0xff]
        %v1930 = vld [vmem:[%s1928 + $0x8] sm:$0xff]
        %v1932 = vsel %vm1118, %v1929, 0
        %v1935 = vsel %vm1118, %v1930, 0
        %1937 = vmatpush.msra.mxu0 0.0
        %1938 = vmatpush.msra.mxu0 0.0
        %1939 = vmatpush.msra.mxu0 0.0
        %1940 = vmatpush.msra.mxu0 0.0
        %1941 = vmatpush.msra.mxu0 0.0
        %1942 = vmatpush.msra.mxu0 0.0
        %1943 = vmatpush.msra.mxu0 0.0
        %1944 = vmatpush.msra.mxu0 0.0
        %1945 = vmatpush.msra.mxu0 0.0
        %1946 = vmatpush.msra.mxu0 0.0
        %1947 = vmatpush.msra.mxu0 0.0
        %1948 = vmatpush.msra.mxu0 0.0
        %1949 = vmatpush.msra.mxu0 0.0
        %1950 = vmatpush.msra.mxu0 0.0
        %1951 = vmatpush.msra.mxu0 %v1896
        %1952 = vmatpush.msra.mxu0 %v1895
        %1953 = vmatmul.f32.gmra.mxu0 %v1932
        %v1954 = vpop.f32.mrf.mxu0
        %v1955 = vadd.f32 0.0, %v1954
        %1956 = vmatmul.f32.gmra.mxu0 %v1935
        %v1957 = vpop.f32.mrf.mxu0
        %v1958 = vadd.f32 0.0, %v1957
        %1959 = vdwg.mxu0
        %s1960 = scalar_lea.vmem [#allocation18], 32
        %v1961 = vld [vmem:[%s1960] sm:$0xff]
        %v1962 = vld [vmem:[%s1960 + $0x8] sm:$0xff]
        %v1964 = vsel %vm1118, %v1961, 0
        %v1967 = vsel %vm1118, %v1962, 0
        %1969 = vmatpush.msra.mxu0 0.0
        %1970 = vmatpush.msra.mxu0 0.0
        %1971 = vmatpush.msra.mxu0 0.0
        %1972 = vmatpush.msra.mxu0 0.0
        %1973 = vmatpush.msra.mxu0 0.0
        %1974 = vmatpush.msra.mxu0 0.0
        %1975 = vmatpush.msra.mxu0 0.0
        %1976 = vmatpush.msra.mxu0 0.0
        %1977 = vmatpush.msra.mxu0 0.0
        %1978 = vmatpush.msra.mxu0 0.0
        %1979 = vmatpush.msra.mxu0 0.0
        %1980 = vmatpush.msra.mxu0 0.0
        %1981 = vmatpush.msra.mxu0 0.0
        %1982 = vmatpush.msra.mxu0 0.0
        %1983 = vmatpush.msra.mxu0 %v1896
        %1984 = vmatpush.msra.mxu0 %v1895
        %1985 = vmatmul.f32.gmra.mxu0 %v1964
        %v1986 = vpop.f32.mrf.mxu0
        %v1987 = vadd.f32 0.0, %v1986
        %1988 = vmatmul.f32.gmra.mxu0 %v1967
        %v1989 = vpop.f32.mrf.mxu0
        %v1990 = vadd.f32 0.0, %v1989
        %1991 = vdwg.mxu0
        %v1992 = vld [vmem:[%s20] sm:$0xff]
        %v1993 = vld [vmem:[%s20 + $0x8] sm:$0xff]
        %v1994 = vld [vmem:[%s20 + $0x10] sm:$0xff]
        %v1995 = vld [vmem:[%s20 + $0x18] sm:$0xff]
        %v1996 = vld [vmem:[%s20 + $0x20] sm:$0xff]
        %v1997 = vld [vmem:[%s20 + $0x28] sm:$0xff]
        %v1998 = vld [vmem:[%s20 + $0x30] sm:$0xff]
        %v1999 = vld [vmem:[%s20 + $0x38] sm:$0xff]
        %v2000 = vld [vmem:[%s20 + $0x40] sm:$0xff]
        %v2001 = vld [vmem:[%s20 + $0x48] sm:$0xff]
        %v2002 = vld [vmem:[%s20 + $0x50] sm:$0xff]
        %v2003 = vld [vmem:[%s20 + $0x58] sm:$0xff]
        %v2004 = vld [vmem:[%s20 + $0x60] sm:$0xff]
        %v2005 = vld [vmem:[%s20 + $0x68] sm:$0xff]
        %v2006 = vld [vmem:[%s20 + $0x70] sm:$0xff]
        %v2007 = vld [vmem:[%s20 + $0x78] sm:$0xff]
        %v2008 = vld [vmem:[%s20 + $0x80] sm:$0xff]
        %v2009 = vld [vmem:[%s20 + $0x88] sm:$0xff]
        %v2010 = vld [vmem:[%s20 + $0x90] sm:$0xff]
        %v2011 = vld [vmem:[%s20 + $0x98] sm:$0xff]
        %v2012 = vld [vmem:[%s20 + $0xa0] sm:$0xff]
        %v2013 = vld [vmem:[%s20 + $0xa8] sm:$0xff]
        %v2014 = vld [vmem:[%s20 + $0xb0] sm:$0xff]
        %v2015 = vld [vmem:[%s20 + $0xb8] sm:$0xff]
        %v2016 = vld [vmem:[%s20 + $0xc0] sm:$0xff]
        %v2017 = vld [vmem:[%s20 + $0xc8] sm:$0xff]
        %v2018 = vld [vmem:[%s20 + $0xd0] sm:$0xff]
        %v2019 = vld [vmem:[%s20 + $0xd8] sm:$0xff]
        %v2020 = vld [vmem:[%s20 + $0xe0] sm:$0xff]
        %v2021 = vld [vmem:[%s20 + $0xe8] sm:$0xff]
        %v2022 = vld [vmem:[%s20 + $0xf0] sm:$0xff]
        %v2023 = vld [vmem:[%s20 + $0xf8] sm:$0xff]
        %v2024 = vld [vmem:[%s20 + $0x100] sm:$0xff]
        %v2025 = vld [vmem:[%s20 + $0x108] sm:$0xff]
        %v2026 = vld [vmem:[%s20 + $0x110] sm:$0xff]
        %v2027 = vld [vmem:[%s20 + $0x118] sm:$0xff]
        %v2028 = vld [vmem:[%s20 + $0x120] sm:$0xff]
        %v2029 = vld [vmem:[%s20 + $0x128] sm:$0xff]
        %v2030 = vld [vmem:[%s20 + $0x130] sm:$0xff]
        %v2031 = vld [vmem:[%s20 + $0x138] sm:$0xff]
        %v2032 = vld [vmem:[%s20 + $0x140] sm:$0xff]
        %v2033 = vld [vmem:[%s20 + $0x148] sm:$0xff]
        %v2034 = vld [vmem:[%s20 + $0x150] sm:$0xff]
        %v2035 = vld [vmem:[%s20 + $0x158] sm:$0xff]
        %v2036 = vld [vmem:[%s20 + $0x160] sm:$0xff]
        %v2037 = vld [vmem:[%s20 + $0x168] sm:$0xff]
        %v2038 = vld [vmem:[%s20 + $0x170] sm:$0xff]
        %v2039 = vld [vmem:[%s20 + $0x178] sm:$0xff]
        %v2040 = vld [vmem:[%s20 + $0x180] sm:$0xff]
        %v2041 = vld [vmem:[%s20 + $0x188] sm:$0xff]
        %v2042 = vld [vmem:[%s20 + $0x190] sm:$0xff]
        %v2043 = vld [vmem:[%s20 + $0x198] sm:$0xff]
        %v2044 = vld [vmem:[%s20 + $0x1a0] sm:$0xff]
        %v2045 = vld [vmem:[%s20 + $0x1a8] sm:$0xff]
        %v2046 = vld [vmem:[%s20 + $0x1b0] sm:$0xff]
        %v2047 = vld [vmem:[%s20 + $0x1b8] sm:$0xff]
        %v2048 = vld [vmem:[%s20 + $0x1c0] sm:$0xff]
        %v2049 = vld [vmem:[%s20 + $0x1c8] sm:$0xff]
        %v2050 = vld [vmem:[%s20 + $0x1d0] sm:$0xff]
        %v2051 = vld [vmem:[%s20 + $0x1d8] sm:$0xff]
        %v2052 = vld [vmem:[%s20 + $0x1e0] sm:$0xff]
        %v2053 = vld [vmem:[%s20 + $0x1e8] sm:$0xff]
        %v2054 = vld [vmem:[%s20 + $0x1f0] sm:$0xff]
        %v2055 = vld [vmem:[%s20 + $0x1f8] sm:$0xff]
        %v2056 = vld [vmem:[%s20 + $0x200] sm:$0xff]
        %v2057 = vld [vmem:[%s20 + $0x208] sm:$0xff]
        %v2058 = vld [vmem:[%s20 + $0x210] sm:$0xff]
        %v2059 = vld [vmem:[%s20 + $0x218] sm:$0xff]
        %v2060 = vld [vmem:[%s20 + $0x220] sm:$0xff]
        %v2061 = vld [vmem:[%s20 + $0x228] sm:$0xff]
        %v2062 = vld [vmem:[%s20 + $0x230] sm:$0xff]
        %v2063 = vld [vmem:[%s20 + $0x238] sm:$0xff]
        %v2064 = vld [vmem:[%s20 + $0x240] sm:$0xff]
        %v2065 = vld [vmem:[%s20 + $0x248] sm:$0xff]
        %v2066 = vld [vmem:[%s20 + $0x250] sm:$0xff]
        %v2067 = vld [vmem:[%s20 + $0x258] sm:$0xff]
        %v2068 = vld [vmem:[%s20 + $0x260] sm:$0xff]
        %v2069 = vld [vmem:[%s20 + $0x268] sm:$0xff]
        %v2070 = vld [vmem:[%s20 + $0x270] sm:$0xff]
        %v2071 = vld [vmem:[%s20 + $0x278] sm:$0xff]
        %v2072 = vld [vmem:[%s20 + $0x280] sm:$0xff]
        %v2073 = vld [vmem:[%s20 + $0x288] sm:$0xff]
        %v2074 = vld [vmem:[%s20 + $0x290] sm:$0xff]
        %v2075 = vld [vmem:[%s20 + $0x298] sm:$0xff]
        %v2076 = vld [vmem:[%s20 + $0x2a0] sm:$0xff]
        %v2077 = vld [vmem:[%s20 + $0x2a8] sm:$0xff]
        %v2078 = vld [vmem:[%s20 + $0x2b0] sm:$0xff]
        %v2079 = vld [vmem:[%s20 + $0x2b8] sm:$0xff]
        %v2080 = vld [vmem:[%s20 + $0x2c0] sm:$0xff]
        %v2081 = vld [vmem:[%s20 + $0x2c8] sm:$0xff]
        %v2082 = vld [vmem:[%s20 + $0x2d0] sm:$0xff]
        %v2083 = vld [vmem:[%s20 + $0x2d8] sm:$0xff]
        %v2084 = vld [vmem:[%s20 + $0x2e0] sm:$0xff]
        %v2085 = vld [vmem:[%s20 + $0x2e8] sm:$0xff]
        %v2086 = vld [vmem:[%s20 + $0x2f0] sm:$0xff]
        %v2087 = vld [vmem:[%s20 + $0x2f8] sm:$0xff]
        %2088 = vmatpush.msra.mxu0 0.0
        %2089 = vmatpush.msra.mxu0 0.0
        %2090 = vmatpush.msra.mxu0 0.0
        %2091 = vmatpush.msra.mxu0 0.0
        %2092 = vmatpush.msra.mxu0 0.0
        %2093 = vmatpush.msra.mxu0 0.0
        %2094 = vmatpush.msra.mxu0 0.0
        %2095 = vmatpush.msra.mxu0 0.0
        %2096 = vmatpush.msra.mxu0 0.0
        %2097 = vmatpush.msra.mxu0 0.0
        %2098 = vmatpush.msra.mxu0 0.0
        %2099 = vmatpush.msra.mxu0 0.0
        %2100 = vmatpush.msra.mxu0 0.0
        %2101 = vmatpush.msra.mxu0 0.0
        %2102 = vmatpush.msra.mxu0 %v1114
        %2103 = vmatpush.msra.mxu0 %v1113
        %2104 = vmatmul.f32.gmra.mxu0 %v1900
        %v2105 = vpop.f32.mrf.mxu0
        %v2106 = vadd.f32 0.0, %v2105
        %2107 = vmatmul.f32.gmra.mxu0 %v1903
        %v2108 = vpop.f32.mrf.mxu0
        %v2109 = vadd.f32 0.0, %v2108
        %2110 = vdwg.mxu0
        %2111 = vmatpush.msra.mxu0 0.0
        %2112 = vmatpush.msra.mxu0 0.0
        %2113 = vmatpush.msra.mxu0 0.0
        %2114 = vmatpush.msra.mxu0 0.0
        %2115 = vmatpush.msra.mxu0 0.0
        %2116 = vmatpush.msra.mxu0 0.0
        %2117 = vmatpush.msra.mxu0 0.0
        %2118 = vmatpush.msra.mxu0 0.0
        %2119 = vmatpush.msra.mxu0 0.0
        %2120 = vmatpush.msra.mxu0 0.0
        %2121 = vmatpush.msra.mxu0 0.0
        %2122 = vmatpush.msra.mxu0 0.0
        %2123 = vmatpush.msra.mxu0 0.0
        %2124 = vmatpush.msra.mxu0 0.0
        %2125 = vmatpush.msra.mxu0 %v1114
        %2126 = vmatpush.msra.mxu0 %v1113
        %2127 = vmatmul.f32.gmra.mxu0 %v1932
        %v2128 = vpop.f32.mrf.mxu0
        %v2129 = vadd.f32 0.0, %v2128
        %2130 = vmatmul.f32.gmra.mxu0 %v1935
        %v2131 = vpop.f32.mrf.mxu0
        %v2132 = vadd.f32 0.0, %v2131
        %2133 = vdwg.mxu0
        %2134 = vmatpush.msra.mxu0 0.0
        %2135 = vmatpush.msra.mxu0 0.0
        %2136 = vmatpush.msra.mxu0 0.0
        %2137 = vmatpush.msra.mxu0 0.0
        %2138 = vmatpush.msra.mxu0 0.0
        %2139 = vmatpush.msra.mxu0 0.0
        %2140 = vmatpush.msra.mxu0 0.0
        %2141 = vmatpush.msra.mxu0 0.0
        %2142 = vmatpush.msra.mxu0 0.0
        %2143 = vmatpush.msra.mxu0 0.0
        %2144 = vmatpush.msra.mxu0 0.0
        %2145 = vmatpush.msra.mxu0 0.0
        %2146 = vmatpush.msra.mxu0 0.0
        %2147 = vmatpush.msra.mxu0 0.0
        %2148 = vmatpush.msra.mxu0 %v1114
        %2149 = vmatpush.msra.mxu0 %v1113
        %2150 = vmatmul.f32.gmra.mxu0 %v1964
        %v2151 = vpop.f32.mrf.mxu0
        %v2152 = vadd.f32 0.0, %v2151
        %2153 = vmatmul.f32.gmra.mxu0 %v1967
        %v2154 = vpop.f32.mrf.mxu0
        %v2155 = vadd.f32 0.0, %v2154
        %2156 = vdwg.mxu0
        %2159 = vrot.lane.b32.xlu0 %v2129, 48
        %v2160 = vpop.permute.xlu0 %2159
        %2161 = vrot.lane.b32.xlu0 %v2132, 48
        %v2162 = vpop.permute.xlu0 %2161
        %2167 = vrot.lane.b32.xlu0 %v2152, 96
        %v2168 = vpop.permute.xlu0 %2167
        %2169 = vrot.lane.b32.xlu0 %v2155, 96
        %v2170 = vpop.permute.xlu0 %2169
        %v2173 = vsel %vm1213, %v2106, %v2160
        %v2174 = vsel %vm1213, %v2109, %v2162
        %vm2175 = vcmask 785408
        %v2176 = vsel %vm2175, %v2173, %v2168
        %v2177 = vsel %vm2175, %v2174, %v2170
        %v2178 = vld [vmem:[%s21] sm:$0xff]
        %v2179 = vld [vmem:[%s21 + $0x8] sm:$0xff]
        %v2180 = vld [vmem:[%s21 + $0x10] sm:$0xff]
        %v2181 = vld [vmem:[%s21 + $0x18] sm:$0xff]
        %v2182 = vld [vmem:[%s21 + $0x20] sm:$0xff]
        %v2183 = vld [vmem:[%s21 + $0x28] sm:$0xff]
        %v2184 = vld [vmem:[%s21 + $0x30] sm:$0xff]
        %v2185 = vld [vmem:[%s21 + $0x38] sm:$0xff]
        %v2186 = vld [vmem:[%s21 + $0x40] sm:$0xff]
        %v2187 = vld [vmem:[%s21 + $0x48] sm:$0xff]
        %v2188 = vld [vmem:[%s21 + $0x50] sm:$0xff]
        %v2189 = vld [vmem:[%s21 + $0x58] sm:$0xff]
        %v2190 = vld [vmem:[%s21 + $0x60] sm:$0xff]
        %v2191 = vld [vmem:[%s21 + $0x68] sm:$0xff]
        %v2192 = vld [vmem:[%s21 + $0x70] sm:$0xff]
        %v2193 = vld [vmem:[%s21 + $0x78] sm:$0xff]
        %v2194 = vld [vmem:[%s21 + $0x80] sm:$0xff]
        %v2195 = vld [vmem:[%s21 + $0x88] sm:$0xff]
        %v2196 = vld [vmem:[%s21 + $0x90] sm:$0xff]
        %v2197 = vld [vmem:[%s21 + $0x98] sm:$0xff]
        %v2198 = vld [vmem:[%s21 + $0xa0] sm:$0xff]
        %v2199 = vld [vmem:[%s21 + $0xa8] sm:$0xff]
        %v2200 = vld [vmem:[%s21 + $0xb0] sm:$0xff]
        %v2201 = vld [vmem:[%s21 + $0xb8] sm:$0xff]
        %v2202 = vld [vmem:[%s21 + $0xc0] sm:$0xff]
        %v2203 = vld [vmem:[%s21 + $0xc8] sm:$0xff]
        %v2204 = vld [vmem:[%s21 + $0xd0] sm:$0xff]
        %v2205 = vld [vmem:[%s21 + $0xd8] sm:$0xff]
        %v2206 = vld [vmem:[%s21 + $0xe0] sm:$0xff]
        %v2207 = vld [vmem:[%s21 + $0xe8] sm:$0xff]
        %v2208 = vld [vmem:[%s21 + $0xf0] sm:$0xff]
        %v2209 = vld [vmem:[%s21 + $0xf8] sm:$0xff]
        %v2210 = vld [vmem:[%s21 + $0x100] sm:$0xff]
        %v2211 = vld [vmem:[%s21 + $0x108] sm:$0xff]
        %v2212 = vld [vmem:[%s21 + $0x110] sm:$0xff]
        %v2213 = vld [vmem:[%s21 + $0x118] sm:$0xff]
        %v2214 = vsel %vm1118, %v2168, 0
        %v2216 = vsel %vm1118, %v2170, 0
        %2218 = vmatpush.msra.mxu0 %v2208
        %2219 = vmatpush.msra.mxu0 %v2206
        %2220 = vmatpush.msra.mxu0 %v2204
        %2221 = vmatpush.msra.mxu0 %v2202
        %2222 = vmatpush.msra.mxu0 %v2200
        %2223 = vmatpush.msra.mxu0 %v2198
        %2224 = vmatpush.msra.mxu0 %v2196
        %2225 = vmatpush.msra.mxu0 %v2194
        %2226 = vmatpush.msra.mxu0 %v2192
        %2227 = vmatpush.msra.mxu0 %v2190
        %2228 = vmatpush.msra.mxu0 %v2188
        %2229 = vmatpush.msra.mxu0 %v2186
        %2230 = vmatpush.msra.mxu0 %v2184
        %2231 = vmatpush.msra.mxu0 %v2182
        %2232 = vmatpush.msra.mxu0 %v2180
        %2233 = vmatpush.msra.mxu0 %v2178
        %2234 = vmatmul.f32.gmra.mxu0 %v2176
        %v2235 = vpop.f32.mrf.mxu0
        %v2236 = vadd.f32 0.0, %v2235
        %2237 = vmatmul.f32.gmra.mxu0 %v2177
        %v2238 = vpop.f32.mrf.mxu0
        %v2239 = vadd.f32 0.0, %v2238
        %2240 = vdwg.mxu0
        %2241 = vmatpush.msra.mxu0 0.0
        %2242 = vmatpush.msra.mxu0 0.0
        %2243 = vmatpush.msra.mxu0 0.0
        %2244 = vmatpush.msra.mxu0 0.0
        %2245 = vmatpush.msra.mxu0 0.0
        %2246 = vmatpush.msra.mxu0 0.0
        %2247 = vmatpush.msra.mxu0 0.0
        %2248 = vmatpush.msra.mxu0 0.0
        %2249 = vmatpush.msra.mxu0 0.0
        %2250 = vmatpush.msra.mxu0 0.0
        %2251 = vmatpush.msra.mxu0 0.0
        %2252 = vmatpush.msra.mxu0 0.0
        %2253 = vmatpush.msra.mxu0 0.0
        %2254 = vmatpush.msra.mxu0 0.0
        %2255 = vmatpush.msra.mxu0 %v2212
        %2256 = vmatpush.msra.mxu0 %v2210
        %2257 = vmatmul.f32.gmra.mxu0 %v2214
        %v2258 = vpop.f32.mrf.mxu0
        %v2259 = vadd.f32 %v2236, %v2258
        %2260 = vmatmul.f32.gmra.mxu0 %v2216
        %v2261 = vpop.f32.mrf.mxu0
        %v2262 = vadd.f32 %v2239, %v2261
        %2263 = vdwg.mxu0
        %2264 = vmatpush.msra.mxu0 %v2209
        %2265 = vmatpush.msra.mxu0 %v2207
        %2266 = vmatpush.msra.mxu0 %v2205
        %2267 = vmatpush.msra.mxu0 %v2203
        %2268 = vmatpush.msra.mxu0 %v2201
        %2269 = vmatpush.msra.mxu0 %v2199
        %2270 = vmatpush.msra.mxu0 %v2197
        %2271 = vmatpush.msra.mxu0 %v2195
        %2272 = vmatpush.msra.mxu0 %v2193
        %2273 = vmatpush.msra.mxu0 %v2191
        %2274 = vmatpush.msra.mxu0 %v2189
        %2275 = vmatpush.msra.mxu0 %v2187
        %2276 = vmatpush.msra.mxu0 %v2185
        %2277 = vmatpush.msra.mxu0 %v2183
        %2278 = vmatpush.msra.mxu0 %v2181
        %2279 = vmatpush.msra.mxu0 %v2179
        %2280 = vmatmul.f32.gmra.mxu0 %v2176
        %v2281 = vpop.f32.mrf.mxu0
        %v2282 = vadd.f32 0.0, %v2281
        %2283 = vmatmul.f32.gmra.mxu0 %v2177
        %v2284 = vpop.f32.mrf.mxu0
        %v2285 = vadd.f32 0.0, %v2284
        %2286 = vdwg.mxu0
        %2287 = vmatpush.msra.mxu0 0.0
        %2288 = vmatpush.msra.mxu0 0.0
        %2289 = vmatpush.msra.mxu0 0.0
        %2290 = vmatpush.msra.mxu0 0.0
        %2291 = vmatpush.msra.mxu0 0.0
        %2292 = vmatpush.msra.mxu0 0.0
        %2293 = vmatpush.msra.mxu0 0.0
        %2294 = vmatpush.msra.mxu0 0.0
        %2295 = vmatpush.msra.mxu0 0.0
        %2296 = vmatpush.msra.mxu0 0.0
        %2297 = vmatpush.msra.mxu0 0.0
        %2298 = vmatpush.msra.mxu0 0.0
        %2299 = vmatpush.msra.mxu0 0.0
        %2300 = vmatpush.msra.mxu0 0.0
        %2301 = vmatpush.msra.mxu0 %v2213
        %2302 = vmatpush.msra.mxu0 %v2211
        %2303 = vmatmul.f32.gmra.mxu0 %v2214
        %v2304 = vpop.f32.mrf.mxu0
        %v2305 = vadd.f32 %v2282, %v2304
        %2306 = vmatmul.f32.gmra.mxu0 %v2216
        %v2307 = vpop.f32.mrf.mxu0
        %v2308 = vadd.f32 %v2285, %v2307
        %2309 = vdwg.mxu0
        %2310 = vmatpush.msra.mxu0 %v2022
        %2311 = vmatpush.msra.mxu0 %v2020
        %2312 = vmatpush.msra.mxu0 %v2018
        %2313 = vmatpush.msra.mxu0 %v2016
        %2314 = vmatpush.msra.mxu0 %v2014
        %2315 = vmatpush.msra.mxu0 %v2012
        %2316 = vmatpush.msra.mxu0 %v2010
        %2317 = vmatpush.msra.mxu0 %v2008
        %2318 = vmatpush.msra.mxu0 %v2006
        %2319 = vmatpush.msra.mxu0 %v2004
        %2320 = vmatpush.msra.mxu0 %v2002
        %2321 = vmatpush.msra.mxu0 %v2000
        %2322 = vmatpush.msra.mxu0 %v1998
        %2323 = vmatpush.msra.mxu0 %v1996
        %2324 = vmatpush.msra.mxu0 %v1994
        %2325 = vmatpush.msra.mxu0 %v1992
        %2326 = vmatmul.f32.gmra.mxu0 %v1923
        %v2327 = vpop.f32.mrf.mxu0
        %v2328 = vadd.f32 %v2259, %v2327
        %2329 = vmatmul.f32.gmra.mxu0 %v1926
        %v2330 = vpop.f32.mrf.mxu0
        %v2331 = vadd.f32 %v2262, %v2330
        %2332 = vdwg.mxu0
        %2333 = vmatpush.msra.mxu0 %v2054
        %2334 = vmatpush.msra.mxu0 %v2052
        %2335 = vmatpush.msra.mxu0 %v2050
        %2336 = vmatpush.msra.mxu0 %v2048
        %2337 = vmatpush.msra.mxu0 %v2046
        %2338 = vmatpush.msra.mxu0 %v2044
        %2339 = vmatpush.msra.mxu0 %v2042
        %2340 = vmatpush.msra.mxu0 %v2040
        %2341 = vmatpush.msra.mxu0 %v2038
        %2342 = vmatpush.msra.mxu0 %v2036
        %2343 = vmatpush.msra.mxu0 %v2034
        %2344 = vmatpush.msra.mxu0 %v2032
        %2345 = vmatpush.msra.mxu0 %v2030
        %2346 = vmatpush.msra.mxu0 %v2028
        %2347 = vmatpush.msra.mxu0 %v2026
        %2348 = vmatpush.msra.mxu0 %v2024
        %2349 = vmatmul.f32.gmra.mxu0 %v1955
        %v2350 = vpop.f32.mrf.mxu0
        %v2351 = vadd.f32 %v2328, %v2350
        %2352 = vmatmul.f32.gmra.mxu0 %v1958
        %v2353 = vpop.f32.mrf.mxu0
        %v2354 = vadd.f32 %v2331, %v2353
        %2355 = vdwg.mxu0
        %2356 = vmatpush.msra.mxu0 %v2086
        %2357 = vmatpush.msra.mxu0 %v2084
        %2358 = vmatpush.msra.mxu0 %v2082
        %2359 = vmatpush.msra.mxu0 %v2080
        %2360 = vmatpush.msra.mxu0 %v2078
        %2361 = vmatpush.msra.mxu0 %v2076
        %2362 = vmatpush.msra.mxu0 %v2074
        %2363 = vmatpush.msra.mxu0 %v2072
        %2364 = vmatpush.msra.mxu0 %v2070
        %2365 = vmatpush.msra.mxu0 %v2068
        %2366 = vmatpush.msra.mxu0 %v2066
        %2367 = vmatpush.msra.mxu0 %v2064
        %2368 = vmatpush.msra.mxu0 %v2062
        %2369 = vmatpush.msra.mxu0 %v2060
        %2370 = vmatpush.msra.mxu0 %v2058
        %2371 = vmatpush.msra.mxu0 %v2056
        %2372 = vmatmul.f32.gmra.mxu0 %v1987
        %v2373 = vpop.f32.mrf.mxu0
        %v2374 = vadd.f32 %v2351, %v2373
        %2375 = vmatmul.f32.gmra.mxu0 %v1990
        %v2376 = vpop.f32.mrf.mxu0
        %v2377 = vadd.f32 %v2354, %v2376
        %2378 = vdwg.mxu0
        %2379 = vmatpush.msra.mxu0 %v2023
        %2380 = vmatpush.msra.mxu0 %v2021
        %2381 = vmatpush.msra.mxu0 %v2019
        %2382 = vmatpush.msra.mxu0 %v2017
        %2383 = vmatpush.msra.mxu0 %v2015
        %2384 = vmatpush.msra.mxu0 %v2013
        %2385 = vmatpush.msra.mxu0 %v2011
        %2386 = vmatpush.msra.mxu0 %v2009
        %2387 = vmatpush.msra.mxu0 %v2007
        %2388 = vmatpush.msra.mxu0 %v2005
        %2389 = vmatpush.msra.mxu0 %v2003
        %2390 = vmatpush.msra.mxu0 %v2001
        %2391 = vmatpush.msra.mxu0 %v1999
        %2392 = vmatpush.msra.mxu0 %v1997
        %2393 = vmatpush.msra.mxu0 %v1995
        %2394 = vmatpush.msra.mxu0 %v1993
        %2395 = vmatmul.f32.gmra.mxu0 %v1923
        %v2396 = vpop.f32.mrf.mxu0
        %v2397 = vadd.f32 %v2305, %v2396
        %2398 = vmatmul.f32.gmra.mxu0 %v1926
        %v2399 = vpop.f32.mrf.mxu0
        %v2400 = vadd.f32 %v2308, %v2399
        %2401 = vdwg.mxu0
        %2402 = vmatpush.msra.mxu0 %v2055
        %2403 = vmatpush.msra.mxu0 %v2053
        %2404 = vmatpush.msra.mxu0 %v2051
        %2405 = vmatpush.msra.mxu0 %v2049
        %2406 = vmatpush.msra.mxu0 %v2047
        %2407 = vmatpush.msra.mxu0 %v2045
        %2408 = vmatpush.msra.mxu0 %v2043
        %2409 = vmatpush.msra.mxu0 %v2041
        %2410 = vmatpush.msra.mxu0 %v2039
        %2411 = vmatpush.msra.mxu0 %v2037
        %2412 = vmatpush.msra.mxu0 %v2035
        %2413 = vmatpush.msra.mxu0 %v2033
        %2414 = vmatpush.msra.mxu0 %v2031
        %2415 = vmatpush.msra.mxu0 %v2029
        %2416 = vmatpush.msra.mxu0 %v2027
        %2417 = vmatpush.msra.mxu0 %v2025
        %2418 = vmatmul.f32.gmra.mxu0 %v1955
        %v2419 = vpop.f32.mrf.mxu0
        %v2420 = vadd.f32 %v2397, %v2419
        %2421 = vmatmul.f32.gmra.mxu0 %v1958
        %v2422 = vpop.f32.mrf.mxu0
        %v2423 = vadd.f32 %v2400, %v2422
        %2424 = vdwg.mxu0
        %2425 = vmatpush.msra.mxu0 %v2087
        %2426 = vmatpush.msra.mxu0 %v2085
        %2427 = vmatpush.msra.mxu0 %v2083
        %2428 = vmatpush.msra.mxu0 %v2081
        %2429 = vmatpush.msra.mxu0 %v2079
        %2430 = vmatpush.msra.mxu0 %v2077
        %2431 = vmatpush.msra.mxu0 %v2075
        %2432 = vmatpush.msra.mxu0 %v2073
        %2433 = vmatpush.msra.mxu0 %v2071
        %2434 = vmatpush.msra.mxu0 %v2069
        %2435 = vmatpush.msra.mxu0 %v2067
        %2436 = vmatpush.msra.mxu0 %v2065
        %2437 = vmatpush.msra.mxu0 %v2063
        %2438 = vmatpush.msra.mxu0 %v2061
        %2439 = vmatpush.msra.mxu0 %v2059
        %2440 = vmatpush.msra.mxu0 %v2057
        %2441 = vmatmul.f32.gmra.mxu0 %v1987
        %v2442 = vpop.f32.mrf.mxu0
        %v2443 = vadd.f32 %v2420, %v2442
        %2444 = vmatmul.f32.gmra.mxu0 %v1990
        %v2445 = vpop.f32.mrf.mxu0
        %v2446 = vadd.f32 %v2423, %v2445
        %2447 = vdwg.mxu0
        %2448 = vmatpush.msra.mxu0 0.0
        %2449 = vmatpush.msra.mxu0 0.0
        %2450 = vmatpush.msra.mxu0 0.0
        %2451 = vmatpush.msra.mxu0 0.0
        %2452 = vmatpush.msra.mxu0 0.0
        %2453 = vmatpush.msra.mxu0 0.0
        %2454 = vmatpush.msra.mxu0 0.0
        %2455 = vmatpush.msra.mxu0 0.0
        %2456 = vmatpush.msra.mxu0 0.0
        %2457 = vmatpush.msra.mxu0 0.0
        %2458 = vmatpush.msra.mxu0 0.0
        %2459 = vmatpush.msra.mxu0 0.0
        %2460 = vmatpush.msra.mxu0 0.0
        %2461 = vmatpush.msra.mxu0 0.0
        %2462 = vmatpush.msra.mxu0 %v1116
        %2463 = vmatpush.msra.mxu0 %v1115
        %2464 = vmatmul.f32.gmra.mxu0 %v1900
        %v2465 = vpop.f32.mrf.mxu0
        %v2466 = vadd.f32 0.0, %v2465
        %2467 = vmatmul.f32.gmra.mxu0 %v1903
        %v2468 = vpop.f32.mrf.mxu0
        %v2469 = vadd.f32 0.0, %v2468
        %2470 = vdwg.mxu0
        %2471 = vmatpush.msra.mxu0 0.0
        %2472 = vmatpush.msra.mxu0 0.0
        %2473 = vmatpush.msra.mxu0 0.0
        %2474 = vmatpush.msra.mxu0 0.0
        %2475 = vmatpush.msra.mxu0 0.0
        %2476 = vmatpush.msra.mxu0 0.0
        %2477 = vmatpush.msra.mxu0 0.0
        %2478 = vmatpush.msra.mxu0 0.0
        %2479 = vmatpush.msra.mxu0 0.0
        %2480 = vmatpush.msra.mxu0 0.0
        %2481 = vmatpush.msra.mxu0 0.0
        %2482 = vmatpush.msra.mxu0 0.0
        %2483 = vmatpush.msra.mxu0 0.0
        %2484 = vmatpush.msra.mxu0 0.0
        %2485 = vmatpush.msra.mxu0 %v1116
        %2486 = vmatpush.msra.mxu0 %v1115
        %2487 = vmatmul.f32.gmra.mxu0 %v1932
        %v2488 = vpop.f32.mrf.mxu0
        %v2489 = vadd.f32 0.0, %v2488
        %2490 = vmatmul.f32.gmra.mxu0 %v1935
        %v2491 = vpop.f32.mrf.mxu0
        %v2492 = vadd.f32 0.0, %v2491
        %2493 = vdwg.mxu0
        %2494 = vmatpush.msra.mxu0 0.0
        %2495 = vmatpush.msra.mxu0 0.0
        %2496 = vmatpush.msra.mxu0 0.0
        %2497 = vmatpush.msra.mxu0 0.0
        %2498 = vmatpush.msra.mxu0 0.0
        %2499 = vmatpush.msra.mxu0 0.0
        %2500 = vmatpush.msra.mxu0 0.0
        %2501 = vmatpush.msra.mxu0 0.0
        %2502 = vmatpush.msra.mxu0 0.0
        %2503 = vmatpush.msra.mxu0 0.0
        %2504 = vmatpush.msra.mxu0 0.0
        %2505 = vmatpush.msra.mxu0 0.0
        %2506 = vmatpush.msra.mxu0 0.0
        %2507 = vmatpush.msra.mxu0 0.0
        %2508 = vmatpush.msra.mxu0 %v1116
        %2509 = vmatpush.msra.mxu0 %v1115
        %2510 = vmatmul.f32.gmra.mxu0 %v1964
        %v2511 = vpop.f32.mrf.mxu0
        %v2512 = vadd.f32 0.0, %v2511
        %2513 = vmatmul.f32.gmra.mxu0 %v1967
        %v2514 = vpop.f32.mrf.mxu0
        %v2515 = vadd.f32 0.0, %v2514
        %2516 = vdwg.mxu0
        %2519 = vrot.lane.b32.xlu0 %v2489, 48
        %v2520 = vpop.permute.xlu0 %2519
        %2521 = vrot.lane.b32.xlu0 %v2492, 48
        %v2522 = vpop.permute.xlu0 %2521
        %2527 = vrot.lane.b32.xlu0 %v2512, 96
        %v2528 = vpop.permute.xlu0 %2527
        %2529 = vrot.lane.b32.xlu0 %v2515, 96
        %v2530 = vpop.permute.xlu0 %2529
        %v2533 = vsel %vm1213, %v2466, %v2520
        %v2534 = vsel %vm1213, %v2469, %v2522
        %v2535 = vsel %vm2175, %v2533, %v2528
        %v2536 = vsel %vm2175, %v2534, %v2530
        %v2537 = vld [vmem:[#allocation19] sm:$0xff]
        %v2538 = vld [vmem:[#allocation19 + $0x8] sm:$0xff]
        %v2539 = vld [vmem:[#allocation19 + $0x10] sm:$0xff]
        %v2540 = vld [vmem:[#allocation19 + $0x18] sm:$0xff]
        %v2541 = vld [vmem:[#allocation19 + $0x20] sm:$0xff]
        %v2542 = vld [vmem:[#allocation19 + $0x28] sm:$0xff]
        %v2543 = vld [vmem:[#allocation19 + $0x30] sm:$0xff]
        %v2544 = vld [vmem:[#allocation19 + $0x38] sm:$0xff]
        %v2545 = vld [vmem:[#allocation19 + $0x40] sm:$0xff]
        %v2546 = vld [vmem:[#allocation19 + $0x48] sm:$0xff]
        %v2547 = vld [vmem:[#allocation19 + $0x50] sm:$0xff]
        %v2548 = vld [vmem:[#allocation19 + $0x58] sm:$0xff]
        %v2549 = vld [vmem:[#allocation19 + $0x60] sm:$0xff]
        %v2550 = vld [vmem:[#allocation19 + $0x68] sm:$0xff]
        %v2551 = vld [vmem:[#allocation19 + $0x70] sm:$0xff]
        %v2552 = vld [vmem:[#allocation19 + $0x78] sm:$0xff]
        %v2553 = vld [vmem:[#allocation19 + $0x80] sm:$0xff]
        %v2554 = vld [vmem:[#allocation19 + $0x88] sm:$0xff]
        %v2555 = vld [vmem:[#allocation19 + $0x90] sm:$0xff]
        %v2556 = vld [vmem:[#allocation19 + $0x98] sm:$0xff]
        %v2557 = vld [vmem:[#allocation19 + $0xa0] sm:$0xff]
        %v2558 = vld [vmem:[#allocation19 + $0xa8] sm:$0xff]
        %v2559 = vld [vmem:[#allocation19 + $0xb0] sm:$0xff]
        %v2560 = vld [vmem:[#allocation19 + $0xb8] sm:$0xff]
        %v2561 = vld [vmem:[#allocation19 + $0xc0] sm:$0xff]
        %v2562 = vld [vmem:[#allocation19 + $0xc8] sm:$0xff]
        %v2563 = vld [vmem:[#allocation19 + $0xd0] sm:$0xff]
        %v2564 = vld [vmem:[#allocation19 + $0xd8] sm:$0xff]
        %v2565 = vld [vmem:[#allocation19 + $0xe0] sm:$0xff]
        %v2566 = vld [vmem:[#allocation19 + $0xe8] sm:$0xff]
        %v2567 = vld [vmem:[#allocation19 + $0xf0] sm:$0xff]
        %v2568 = vld [vmem:[#allocation19 + $0xf8] sm:$0xff]
        %v2569 = vld [vmem:[#allocation19 + $0x100] sm:$0xff]
        %v2570 = vld [vmem:[#allocation19 + $0x108] sm:$0xff]
        %v2571 = vld [vmem:[#allocation19 + $0x110] sm:$0xff]
        %v2572 = vld [vmem:[#allocation19 + $0x118] sm:$0xff]
        %v2573 = vsel %vm1118, %v2528, 0
        %v2575 = vsel %vm1118, %v2530, 0
        %2577 = vmatpush.msra.mxu0 %v2567
        %2578 = vmatpush.msra.mxu0 %v2565
        %2579 = vmatpush.msra.mxu0 %v2563
        %2580 = vmatpush.msra.mxu0 %v2561
        %2581 = vmatpush.msra.mxu0 %v2559
        %2582 = vmatpush.msra.mxu0 %v2557
        %2583 = vmatpush.msra.mxu0 %v2555
        %2584 = vmatpush.msra.mxu0 %v2553
        %2585 = vmatpush.msra.mxu0 %v2551
        %2586 = vmatpush.msra.mxu0 %v2549
        %2587 = vmatpush.msra.mxu0 %v2547
        %2588 = vmatpush.msra.mxu0 %v2545
        %2589 = vmatpush.msra.mxu0 %v2543
        %2590 = vmatpush.msra.mxu0 %v2541
        %2591 = vmatpush.msra.mxu0 %v2539
        %2592 = vmatpush.msra.mxu0 %v2537
        %2593 = vmatmul.f32.gmra.mxu0 %v2535
        %v2594 = vpop.f32.mrf.mxu0
        %v2595 = vadd.f32 0.0, %v2594
        %2596 = vmatmul.f32.gmra.mxu0 %v2536
        %v2597 = vpop.f32.mrf.mxu0
        %v2598 = vadd.f32 0.0, %v2597
        %2599 = vdwg.mxu0
        %2600 = vmatpush.msra.mxu0 0.0
        %2601 = vmatpush.msra.mxu0 0.0
        %2602 = vmatpush.msra.mxu0 0.0
        %2603 = vmatpush.msra.mxu0 0.0
        %2604 = vmatpush.msra.mxu0 0.0
        %2605 = vmatpush.msra.mxu0 0.0
        %2606 = vmatpush.msra.mxu0 0.0
        %2607 = vmatpush.msra.mxu0 0.0
        %2608 = vmatpush.msra.mxu0 0.0
        %2609 = vmatpush.msra.mxu0 0.0
        %2610 = vmatpush.msra.mxu0 0.0
        %2611 = vmatpush.msra.mxu0 0.0
        %2612 = vmatpush.msra.mxu0 0.0
        %2613 = vmatpush.msra.mxu0 0.0
        %2614 = vmatpush.msra.mxu0 %v2571
        %2615 = vmatpush.msra.mxu0 %v2569
        %2616 = vmatmul.f32.gmra.mxu0 %v2573
        %v2617 = vpop.f32.mrf.mxu0
        %v2618 = vadd.f32 %v2595, %v2617
        %2619 = vmatmul.f32.gmra.mxu0 %v2575
        %v2620 = vpop.f32.mrf.mxu0
        %v2621 = vadd.f32 %v2598, %v2620
        %2622 = vdwg.mxu0
        %2623 = vmatpush.msra.mxu0 %v2568
        %2624 = vmatpush.msra.mxu0 %v2566
        %2625 = vmatpush.msra.mxu0 %v2564
        %2626 = vmatpush.msra.mxu0 %v2562
        %2627 = vmatpush.msra.mxu0 %v2560
        %2628 = vmatpush.msra.mxu0 %v2558
        %2629 = vmatpush.msra.mxu0 %v2556
        %2630 = vmatpush.msra.mxu0 %v2554
        %2631 = vmatpush.msra.mxu0 %v2552
        %2632 = vmatpush.msra.mxu0 %v2550
        %2633 = vmatpush.msra.mxu0 %v2548
        %2634 = vmatpush.msra.mxu0 %v2546
        %2635 = vmatpush.msra.mxu0 %v2544
        %2636 = vmatpush.msra.mxu0 %v2542
        %2637 = vmatpush.msra.mxu0 %v2540
        %2638 = vmatpush.msra.mxu0 %v2538
        %2639 = vmatmul.f32.gmra.mxu0 %v2535
        %v2640 = vpop.f32.mrf.mxu0
        %v2641 = vadd.f32 0.0, %v2640
        %2642 = vmatmul.f32.gmra.mxu0 %v2536
        %v2643 = vpop.f32.mrf.mxu0
        %v2644 = vadd.f32 0.0, %v2643
        %2645 = vdwg.mxu0
        %2646 = vmatpush.msra.mxu0 0.0
        %2647 = vmatpush.msra.mxu0 0.0
        %2648 = vmatpush.msra.mxu0 0.0
        %2649 = vmatpush.msra.mxu0 0.0
        %2650 = vmatpush.msra.mxu0 0.0
        %2651 = vmatpush.msra.mxu0 0.0
        %2652 = vmatpush.msra.mxu0 0.0
        %2653 = vmatpush.msra.mxu0 0.0
        %2654 = vmatpush.msra.mxu0 0.0
        %2655 = vmatpush.msra.mxu0 0.0
        %2656 = vmatpush.msra.mxu0 0.0
        %2657 = vmatpush.msra.mxu0 0.0
        %2658 = vmatpush.msra.mxu0 0.0
        %2659 = vmatpush.msra.mxu0 0.0
        %2660 = vmatpush.msra.mxu0 %v2572
        %2661 = vmatpush.msra.mxu0 %v2570
        %2662 = vmatmul.f32.gmra.mxu0 %v2573
        %v2663 = vpop.f32.mrf.mxu0
        %v2664 = vadd.f32 %v2641, %v2663
        %2665 = vmatmul.f32.gmra.mxu0 %v2575
        %v2666 = vpop.f32.mrf.mxu0
        %v2667 = vadd.f32 %v2644, %v2666
        %2668 = vdwg.mxu0
        %v2669 = vadd.f32 %v2374, %v2618
        %v2670 = vadd.f32 %v2443, %v2664
        %v2671 = vadd.f32 %v2377, %v2621
        %v2672 = vadd.f32 %v2446, %v2667
        %v2673 = vld [vmem:[%s23] sm:$0x3]
        %v2675 = vperm.slane %v2673, 0
        %v2676 = vperm.slane %v2673, 1
        %v2679 = vadd.f32 %v2669, %v2675
        %v2680 = vadd.f32 %v2670, %v2676
        %v2681 = vadd.f32 %v2671, %v2675
        %v2682 = vadd.f32 %v2672, %v2676
        %v2683 = vmax.f32 %v2679, 0.0
        %v2684 = vmax.f32 %v2680, 0.0
        %v2685 = vmax.f32 %v2681, 0.0
        %v2686 = vmax.f32 %v2682, 0.0
        %2687 = vmatpush.msra.mxu0 0.0
        %2688 = vmatpush.msra.mxu0 0.0
        %2689 = vmatpush.msra.mxu0 0.0
        %2690 = vmatpush.msra.mxu0 0.0
        %2691 = vmatpush.msra.mxu0 0.0
        %2692 = vmatpush.msra.mxu0 0.0
        %2693 = vmatpush.msra.mxu0 0.0
        %2694 = vmatpush.msra.mxu0 0.0
        %2695 = vmatpush.msra.mxu0 0.0
        %2696 = vmatpush.msra.mxu0 0.0
        %2697 = vmatpush.msra.mxu0 0.0
        %2698 = vmatpush.msra.mxu0 0.0
        %2699 = vmatpush.msra.mxu0 0.0
        %2700 = vmatpush.msra.mxu0 0.0
        %2701 = vmatpush.msra.mxu0 %v2685
        %2702 = vmatpush.msra.mxu0 %v2683
        %2703 = vmatmul.f32.gmra.mxu0 %v1900
        %v2704 = vpop.f32.mrf.mxu0
        %v2705 = vadd.f32 0.0, %v2704
        %2706 = vmatmul.f32.gmra.mxu0 %v1903
        %v2707 = vpop.f32.mrf.mxu0
        %v2708 = vadd.f32 0.0, %v2707
        %2709 = vdwg.mxu0
        %2710 = vmatpush.msra.mxu0 0.0
        %2711 = vmatpush.msra.mxu0 0.0
        %2712 = vmatpush.msra.mxu0 0.0
        %2713 = vmatpush.msra.mxu0 0.0
        %2714 = vmatpush.msra.mxu0 0.0
        %2715 = vmatpush.msra.mxu0 0.0
        %2716 = vmatpush.msra.mxu0 0.0
        %2717 = vmatpush.msra.mxu0 0.0
        %2718 = vmatpush.msra.mxu0 0.0
        %2719 = vmatpush.msra.mxu0 0.0
        %2720 = vmatpush.msra.mxu0 0.0
        %2721 = vmatpush.msra.mxu0 0.0
        %2722 = vmatpush.msra.mxu0 0.0
        %2723 = vmatpush.msra.mxu0 0.0
        %2724 = vmatpush.msra.mxu0 %v2686
        %2725 = vmatpush.msra.mxu0 %v2684
        %2726 = vmatmul.f32.gmra.mxu0 %v1900
        %v2727 = vpop.f32.mrf.mxu0
        %v2728 = vadd.f32 0.0, %v2727
        %2729 = vmatmul.f32.gmra.mxu0 %v1903
        %v2730 = vpop.f32.mrf.mxu0
        %v2731 = vadd.f32 0.0, %v2730
        %2732 = vdwg.mxu0
        %2733 = vmatpush.msra.mxu0 0.0
        %2734 = vmatpush.msra.mxu0 0.0
        %2735 = vmatpush.msra.mxu0 0.0
        %2736 = vmatpush.msra.mxu0 0.0
        %2737 = vmatpush.msra.mxu0 0.0
        %2738 = vmatpush.msra.mxu0 0.0
        %2739 = vmatpush.msra.mxu0 0.0
        %2740 = vmatpush.msra.mxu0 0.0
        %2741 = vmatpush.msra.mxu0 0.0
        %2742 = vmatpush.msra.mxu0 0.0
        %2743 = vmatpush.msra.mxu0 0.0
        %2744 = vmatpush.msra.mxu0 0.0
        %2745 = vmatpush.msra.mxu0 0.0
        %2746 = vmatpush.msra.mxu0 0.0
        %2747 = vmatpush.msra.mxu0 %v2685
        %2748 = vmatpush.msra.mxu0 %v2683
        %2749 = vmatmul.f32.gmra.mxu0 %v1932
        %v2750 = vpop.f32.mrf.mxu0
        %v2751 = vadd.f32 0.0, %v2750
        %2752 = vmatmul.f32.gmra.mxu0 %v1935
        %v2753 = vpop.f32.mrf.mxu0
        %v2754 = vadd.f32 0.0, %v2753
        %2755 = vdwg.mxu0
        %2756 = vmatpush.msra.mxu0 0.0
        %2757 = vmatpush.msra.mxu0 0.0
        %2758 = vmatpush.msra.mxu0 0.0
        %2759 = vmatpush.msra.mxu0 0.0
        %2760 = vmatpush.msra.mxu0 0.0
        %2761 = vmatpush.msra.mxu0 0.0
        %2762 = vmatpush.msra.mxu0 0.0
        %2763 = vmatpush.msra.mxu0 0.0
        %2764 = vmatpush.msra.mxu0 0.0
        %2765 = vmatpush.msra.mxu0 0.0
        %2766 = vmatpush.msra.mxu0 0.0
        %2767 = vmatpush.msra.mxu0 0.0
        %2768 = vmatpush.msra.mxu0 0.0
        %2769 = vmatpush.msra.mxu0 0.0
        %2770 = vmatpush.msra.mxu0 %v2686
        %2771 = vmatpush.msra.mxu0 %v2684
        %2772 = vmatmul.f32.gmra.mxu0 %v1932
        %v2773 = vpop.f32.mrf.mxu0
        %v2774 = vadd.f32 0.0, %v2773
        %2775 = vmatmul.f32.gmra.mxu0 %v1935
        %v2776 = vpop.f32.mrf.mxu0
        %v2777 = vadd.f32 0.0, %v2776
        %2778 = vdwg.mxu0
        %2779 = vmatpush.msra.mxu0 0.0
        %2780 = vmatpush.msra.mxu0 0.0
        %2781 = vmatpush.msra.mxu0 0.0
        %2782 = vmatpush.msra.mxu0 0.0
        %2783 = vmatpush.msra.mxu0 0.0
        %2784 = vmatpush.msra.mxu0 0.0
        %2785 = vmatpush.msra.mxu0 0.0
        %2786 = vmatpush.msra.mxu0 0.0
        %2787 = vmatpush.msra.mxu0 0.0
        %2788 = vmatpush.msra.mxu0 0.0
        %2789 = vmatpush.msra.mxu0 0.0
        %2790 = vmatpush.msra.mxu0 0.0
        %2791 = vmatpush.msra.mxu0 0.0
        %2792 = vmatpush.msra.mxu0 0.0
        %2793 = vmatpush.msra.mxu0 %v2685
        %2794 = vmatpush.msra.mxu0 %v2683
        %2795 = vmatmul.f32.gmra.mxu0 %v1964
        %v2796 = vpop.f32.mrf.mxu0
        %v2797 = vadd.f32 0.0, %v2796
        %2798 = vmatmul.f32.gmra.mxu0 %v1967
        %v2799 = vpop.f32.mrf.mxu0
        %v2800 = vadd.f32 0.0, %v2799
        %2801 = vdwg.mxu0
        %2802 = vmatpush.msra.mxu0 0.0
        %2803 = vmatpush.msra.mxu0 0.0
        %2804 = vmatpush.msra.mxu0 0.0
        %2805 = vmatpush.msra.mxu0 0.0
        %2806 = vmatpush.msra.mxu0 0.0
        %2807 = vmatpush.msra.mxu0 0.0
        %2808 = vmatpush.msra.mxu0 0.0
        %2809 = vmatpush.msra.mxu0 0.0
        %2810 = vmatpush.msra.mxu0 0.0
        %2811 = vmatpush.msra.mxu0 0.0
        %2812 = vmatpush.msra.mxu0 0.0
        %2813 = vmatpush.msra.mxu0 0.0
        %2814 = vmatpush.msra.mxu0 0.0
        %2815 = vmatpush.msra.mxu0 0.0
        %2816 = vmatpush.msra.mxu0 %v2686
        %2817 = vmatpush.msra.mxu0 %v2684
        %2818 = vmatmul.f32.gmra.mxu0 %v1964
        %v2819 = vpop.f32.mrf.mxu0
        %v2820 = vadd.f32 0.0, %v2819
        %2821 = vmatmul.f32.gmra.mxu0 %v1967
        %v2822 = vpop.f32.mrf.mxu0
        %v2823 = vadd.f32 0.0, %v2822
        %2824 = vdwg.mxu0
        %v2825 = vld [vmem:[%s24] sm:$0xff]
        %v2826 = vld [vmem:[%s24 + $0x8] sm:$0xff]
        %v2827 = vld [vmem:[%s24 + $0x10] sm:$0xff]
        %v2828 = vld [vmem:[%s24 + $0x18] sm:$0xff]
        %v2829 = vld [vmem:[%s24 + $0x20] sm:$0xff]
        %v2830 = vld [vmem:[%s24 + $0x28] sm:$0xff]
        %v2831 = vld [vmem:[%s24 + $0x30] sm:$0xff]
        %v2832 = vld [vmem:[%s24 + $0x38] sm:$0xff]
        %v2833 = vld [vmem:[%s24 + $0x40] sm:$0xff]
        %v2834 = vld [vmem:[%s24 + $0x48] sm:$0xff]
        %v2835 = vld [vmem:[%s24 + $0x50] sm:$0xff]
        %v2836 = vld [vmem:[%s24 + $0x58] sm:$0xff]
        %v2837 = vld [vmem:[%s24 + $0x60] sm:$0xff]
        %v2838 = vld [vmem:[%s24 + $0x68] sm:$0xff]
        %v2839 = vld [vmem:[%s24 + $0x70] sm:$0xff]
        %v2840 = vld [vmem:[%s24 + $0x78] sm:$0xff]
        %v2841 = vld [vmem:[%s24 + $0x80] sm:$0xff]
        %v2842 = vld [vmem:[%s24 + $0x88] sm:$0xff]
        %v2843 = vld [vmem:[%s24 + $0x90] sm:$0xff]
        %v2844 = vld [vmem:[%s24 + $0x98] sm:$0xff]
        %v2845 = vld [vmem:[%s24 + $0xa0] sm:$0xff]
        %v2846 = vld [vmem:[%s24 + $0xa8] sm:$0xff]
        %v2847 = vld [vmem:[%s24 + $0xb0] sm:$0xff]
        %v2848 = vld [vmem:[%s24 + $0xb8] sm:$0xff]
        %v2849 = vld [vmem:[%s24 + $0xc0] sm:$0xff]
        %v2850 = vld [vmem:[%s24 + $0xc8] sm:$0xff]
        %v2851 = vld [vmem:[%s24 + $0xd0] sm:$0xff]
        %v2852 = vld [vmem:[%s24 + $0xd8] sm:$0xff]
        %v2853 = vld [vmem:[%s24 + $0xe0] sm:$0xff]
        %v2854 = vld [vmem:[%s24 + $0xe8] sm:$0xff]
        %v2855 = vld [vmem:[%s24 + $0xf0] sm:$0xff]
        %v2856 = vld [vmem:[%s24 + $0xf8] sm:$0xff]
        %v2857 = vld [vmem:[%s24 + $0x100] sm:$0xff]
        %v2858 = vld [vmem:[%s24 + $0x108] sm:$0xff]
        %v2859 = vld [vmem:[%s24 + $0x110] sm:$0xff]
        %v2860 = vld [vmem:[%s24 + $0x118] sm:$0xff]
        %v2861 = vld [vmem:[%s24 + $0x120] sm:$0xff]
        %v2862 = vld [vmem:[%s24 + $0x128] sm:$0xff]
        %v2863 = vld [vmem:[%s24 + $0x130] sm:$0xff]
        %v2864 = vld [vmem:[%s24 + $0x138] sm:$0xff]
        %v2865 = vld [vmem:[%s24 + $0x140] sm:$0xff]
        %v2866 = vld [vmem:[%s24 + $0x148] sm:$0xff]
        %v2867 = vld [vmem:[%s24 + $0x150] sm:$0xff]
        %v2868 = vld [vmem:[%s24 + $0x158] sm:$0xff]
        %v2869 = vld [vmem:[%s24 + $0x160] sm:$0xff]
        %v2870 = vld [vmem:[%s24 + $0x168] sm:$0xff]
        %v2871 = vld [vmem:[%s24 + $0x170] sm:$0xff]
        %v2872 = vld [vmem:[%s24 + $0x178] sm:$0xff]
        %v2873 = vld [vmem:[%s24 + $0x180] sm:$0xff]
        %v2874 = vld [vmem:[%s24 + $0x188] sm:$0xff]
        %v2875 = vld [vmem:[%s24 + $0x190] sm:$0xff]
        %v2876 = vld [vmem:[%s24 + $0x198] sm:$0xff]
        %v2877 = vld [vmem:[%s24 + $0x1a0] sm:$0xff]
        %v2878 = vld [vmem:[%s24 + $0x1a8] sm:$0xff]
        %v2879 = vld [vmem:[%s24 + $0x1b0] sm:$0xff]
        %v2880 = vld [vmem:[%s24 + $0x1b8] sm:$0xff]
        %v2881 = vld [vmem:[%s24 + $0x1c0] sm:$0xff]
        %v2882 = vld [vmem:[%s24 + $0x1c8] sm:$0xff]
        %v2883 = vld [vmem:[%s24 + $0x1d0] sm:$0xff]
        %v2884 = vld [vmem:[%s24 + $0x1d8] sm:$0xff]
        %v2885 = vld [vmem:[%s24 + $0x1e0] sm:$0xff]
        %v2886 = vld [vmem:[%s24 + $0x1e8] sm:$0xff]
        %v2887 = vld [vmem:[%s24 + $0x1f0] sm:$0xff]
        %v2888 = vld [vmem:[%s24 + $0x1f8] sm:$0xff]
        %v2889 = vld [vmem:[%s24 + $0x200] sm:$0xff]
        %v2890 = vld [vmem:[%s24 + $0x208] sm:$0xff]
        %v2891 = vld [vmem:[%s24 + $0x210] sm:$0xff]
        %v2892 = vld [vmem:[%s24 + $0x218] sm:$0xff]
        %v2893 = vld [vmem:[%s24 + $0x220] sm:$0xff]
        %v2894 = vld [vmem:[%s24 + $0x228] sm:$0xff]
        %v2895 = vld [vmem:[%s24 + $0x230] sm:$0xff]
        %v2896 = vld [vmem:[%s24 + $0x238] sm:$0xff]
        %v2897 = vld [vmem:[%s24 + $0x240] sm:$0xff]
        %v2898 = vld [vmem:[%s24 + $0x248] sm:$0xff]
        %v2899 = vld [vmem:[%s24 + $0x250] sm:$0xff]
        %v2900 = vld [vmem:[%s24 + $0x258] sm:$0xff]
        %v2901 = vld [vmem:[%s24 + $0x260] sm:$0xff]
        %v2902 = vld [vmem:[%s24 + $0x268] sm:$0xff]
        %v2903 = vld [vmem:[%s24 + $0x270] sm:$0xff]
        %v2904 = vld [vmem:[%s24 + $0x278] sm:$0xff]
        %v2905 = vld [vmem:[%s24 + $0x280] sm:$0xff]
        %v2906 = vld [vmem:[%s24 + $0x288] sm:$0xff]
        %v2907 = vld [vmem:[%s24 + $0x290] sm:$0xff]
        %v2908 = vld [vmem:[%s24 + $0x298] sm:$0xff]
        %v2909 = vld [vmem:[%s24 + $0x2a0] sm:$0xff]
        %v2910 = vld [vmem:[%s24 + $0x2a8] sm:$0xff]
        %v2911 = vld [vmem:[%s24 + $0x2b0] sm:$0xff]
        %v2912 = vld [vmem:[%s24 + $0x2b8] sm:$0xff]
        %v2913 = vld [vmem:[%s24 + $0x2c0] sm:$0xff]
        %v2914 = vld [vmem:[%s24 + $0x2c8] sm:$0xff]
        %v2915 = vld [vmem:[%s24 + $0x2d0] sm:$0xff]
        %v2916 = vld [vmem:[%s24 + $0x2d8] sm:$0xff]
        %v2917 = vld [vmem:[%s24 + $0x2e0] sm:$0xff]
        %v2918 = vld [vmem:[%s24 + $0x2e8] sm:$0xff]
        %v2919 = vld [vmem:[%s24 + $0x2f0] sm:$0xff]
        %v2920 = vld [vmem:[%s24 + $0x2f8] sm:$0xff]
        %v2921 = vld [vmem:[%s24 + $0x300] sm:$0xff]
        %v2922 = vld [vmem:[%s24 + $0x308] sm:$0xff]
        %v2923 = vld [vmem:[%s24 + $0x310] sm:$0xff]
        %v2924 = vld [vmem:[%s24 + $0x318] sm:$0xff]
        %v2925 = vld [vmem:[%s24 + $0x320] sm:$0xff]
        %v2926 = vld [vmem:[%s24 + $0x328] sm:$0xff]
        %v2927 = vld [vmem:[%s24 + $0x330] sm:$0xff]
        %v2928 = vld [vmem:[%s24 + $0x338] sm:$0xff]
        %v2929 = vld [vmem:[%s24 + $0x340] sm:$0xff]
        %v2930 = vld [vmem:[%s24 + $0x348] sm:$0xff]
        %v2931 = vld [vmem:[%s24 + $0x350] sm:$0xff]
        %v2932 = vld [vmem:[%s24 + $0x358] sm:$0xff]
        %v2933 = vld [vmem:[%s24 + $0x360] sm:$0xff]
        %v2934 = vld [vmem:[%s24 + $0x368] sm:$0xff]
        %v2935 = vld [vmem:[%s24 + $0x370] sm:$0xff]
        %v2936 = vld [vmem:[%s24 + $0x378] sm:$0xff]
        %v2937 = vld [vmem:[%s24 + $0x380] sm:$0xff]
        %v2938 = vld [vmem:[%s24 + $0x388] sm:$0xff]
        %v2939 = vld [vmem:[%s24 + $0x390] sm:$0xff]
        %v2940 = vld [vmem:[%s24 + $0x398] sm:$0xff]
        %v2941 = vld [vmem:[%s24 + $0x3a0] sm:$0xff]
        %v2942 = vld [vmem:[%s24 + $0x3a8] sm:$0xff]
        %v2943 = vld [vmem:[%s24 + $0x3b0] sm:$0xff]
        %v2944 = vld [vmem:[%s24 + $0x3b8] sm:$0xff]
        %v2945 = vld [vmem:[%s24 + $0x3c0] sm:$0xff]
        %v2946 = vld [vmem:[%s24 + $0x3c8] sm:$0xff]
        %v2947 = vld [vmem:[%s24 + $0x3d0] sm:$0xff]
        %v2948 = vld [vmem:[%s24 + $0x3d8] sm:$0xff]
        %v2949 = vld [vmem:[%s24 + $0x3e0] sm:$0xff]
        %v2950 = vld [vmem:[%s24 + $0x3e8] sm:$0xff]
        %v2951 = vld [vmem:[%s24 + $0x3f0] sm:$0xff]
        %v2952 = vld [vmem:[%s24 + $0x3f8] sm:$0xff]
        %v2953 = vld [vmem:[%s24 + $0x400] sm:$0xff]
        %v2954 = vld [vmem:[%s24 + $0x408] sm:$0xff]
        %v2955 = vld [vmem:[%s24 + $0x410] sm:$0xff]
        %v2956 = vld [vmem:[%s24 + $0x418] sm:$0xff]
        %v2957 = vld [vmem:[%s24 + $0x420] sm:$0xff]
        %v2958 = vld [vmem:[%s24 + $0x428] sm:$0xff]
        %v2959 = vld [vmem:[%s24 + $0x430] sm:$0xff]
        %v2960 = vld [vmem:[%s24 + $0x438] sm:$0xff]
        %v2961 = vld [vmem:[%s24 + $0x440] sm:$0xff]
        %v2962 = vld [vmem:[%s24 + $0x448] sm:$0xff]
        %v2963 = vld [vmem:[%s24 + $0x450] sm:$0xff]
        %v2964 = vld [vmem:[%s24 + $0x458] sm:$0xff]
        %v2965 = vld [vmem:[%s24 + $0x460] sm:$0xff]
        %v2966 = vld [vmem:[%s24 + $0x468] sm:$0xff]
        %v2967 = vld [vmem:[%s24 + $0x470] sm:$0xff]
        %v2968 = vld [vmem:[%s24 + $0x478] sm:$0xff]
        %v2969 = vld [vmem:[%s24 + $0x480] sm:$0xff]
        %v2970 = vld [vmem:[%s24 + $0x488] sm:$0xff]
        %v2971 = vld [vmem:[%s24 + $0x490] sm:$0xff]
        %v2972 = vld [vmem:[%s24 + $0x498] sm:$0xff]
        %v2973 = vld [vmem:[%s24 + $0x4a0] sm:$0xff]
        %v2974 = vld [vmem:[%s24 + $0x4a8] sm:$0xff]
        %v2975 = vld [vmem:[%s24 + $0x4b0] sm:$0xff]
        %v2976 = vld [vmem:[%s24 + $0x4b8] sm:$0xff]
        %v2977 = vld [vmem:[%s24 + $0x4c0] sm:$0xff]
        %v2978 = vld [vmem:[%s24 + $0x4c8] sm:$0xff]
        %v2979 = vld [vmem:[%s24 + $0x4d0] sm:$0xff]
        %v2980 = vld [vmem:[%s24 + $0x4d8] sm:$0xff]
        %v2981 = vld [vmem:[%s24 + $0x4e0] sm:$0xff]
        %v2982 = vld [vmem:[%s24 + $0x4e8] sm:$0xff]
        %v2983 = vld [vmem:[%s24 + $0x4f0] sm:$0xff]
        %v2984 = vld [vmem:[%s24 + $0x4f8] sm:$0xff]
        %v2985 = vld [vmem:[%s24 + $0x500] sm:$0xff]
        %v2986 = vld [vmem:[%s24 + $0x508] sm:$0xff]
        %v2987 = vld [vmem:[%s24 + $0x510] sm:$0xff]
        %v2988 = vld [vmem:[%s24 + $0x518] sm:$0xff]
        %v2989 = vld [vmem:[%s24 + $0x520] sm:$0xff]
        %v2990 = vld [vmem:[%s24 + $0x528] sm:$0xff]
        %v2991 = vld [vmem:[%s24 + $0x530] sm:$0xff]
        %v2992 = vld [vmem:[%s24 + $0x538] sm:$0xff]
        %v2993 = vld [vmem:[%s24 + $0x540] sm:$0xff]
        %v2994 = vld [vmem:[%s24 + $0x548] sm:$0xff]
        %v2995 = vld [vmem:[%s24 + $0x550] sm:$0xff]
        %v2996 = vld [vmem:[%s24 + $0x558] sm:$0xff]
        %v2997 = vld [vmem:[%s24 + $0x560] sm:$0xff]
        %v2998 = vld [vmem:[%s24 + $0x568] sm:$0xff]
        %v2999 = vld [vmem:[%s24 + $0x570] sm:$0xff]
        %v3000 = vld [vmem:[%s24 + $0x578] sm:$0xff]
        %v3001 = vld [vmem:[%s24 + $0x580] sm:$0xff]
        %v3002 = vld [vmem:[%s24 + $0x588] sm:$0xff]
        %v3003 = vld [vmem:[%s24 + $0x590] sm:$0xff]
        %v3004 = vld [vmem:[%s24 + $0x598] sm:$0xff]
        %v3005 = vld [vmem:[%s24 + $0x5a0] sm:$0xff]
        %v3006 = vld [vmem:[%s24 + $0x5a8] sm:$0xff]
        %v3007 = vld [vmem:[%s24 + $0x5b0] sm:$0xff]
        %v3008 = vld [vmem:[%s24 + $0x5b8] sm:$0xff]
        %v3009 = vld [vmem:[%s24 + $0x5c0] sm:$0xff]
        %v3010 = vld [vmem:[%s24 + $0x5c8] sm:$0xff]
        %v3011 = vld [vmem:[%s24 + $0x5d0] sm:$0xff]
        %v3012 = vld [vmem:[%s24 + $0x5d8] sm:$0xff]
        %v3013 = vld [vmem:[%s24 + $0x5e0] sm:$0xff]
        %v3014 = vld [vmem:[%s24 + $0x5e8] sm:$0xff]
        %v3015 = vld [vmem:[%s24 + $0x5f0] sm:$0xff]
        %v3016 = vld [vmem:[%s24 + $0x5f8] sm:$0xff]
        %v3017 = vld [vmem:[#allocation21] sm:$0x3]
        %v3019 = vperm.slane %v3017, 0
        %v3020 = vperm.slane %v3017, 1
        %3023 = vmatpush.msra.mxu0 %v2855
        %3024 = vmatpush.msra.mxu0 %v2853
        %3025 = vmatpush.msra.mxu0 %v2851
        %3026 = vmatpush.msra.mxu0 %v2849
        %3027 = vmatpush.msra.mxu0 %v2847
        %3028 = vmatpush.msra.mxu0 %v2845
        %3029 = vmatpush.msra.mxu0 %v2843
        %3030 = vmatpush.msra.mxu0 %v2841
        %3031 = vmatpush.msra.mxu0 %v2839
        %3032 = vmatpush.msra.mxu0 %v2837
        %3033 = vmatpush.msra.mxu0 %v2835
        %3034 = vmatpush.msra.mxu0 %v2833
        %3035 = vmatpush.msra.mxu0 %v2831
        %3036 = vmatpush.msra.mxu0 %v2829
        %3037 = vmatpush.msra.mxu0 %v2827
        %3038 = vmatpush.msra.mxu0 %v2825
        %3039 = vmatmul.f32.gmra.mxu0 %v2705
        %v3040 = vpop.f32.mrf.mxu0
        %v3041 = vadd.f32 %v3019, %v3040
        %3042 = vmatmul.f32.gmra.mxu0 %v2708
        %v3043 = vpop.f32.mrf.mxu0
        %v3044 = vadd.f32 %v3019, %v3043
        %3045 = vdwg.mxu0
        %3046 = vmatpush.msra.mxu0 %v2887
        %3047 = vmatpush.msra.mxu0 %v2885
        %3048 = vmatpush.msra.mxu0 %v2883
        %3049 = vmatpush.msra.mxu0 %v2881
        %3050 = vmatpush.msra.mxu0 %v2879
        %3051 = vmatpush.msra.mxu0 %v2877
        %3052 = vmatpush.msra.mxu0 %v2875
        %3053 = vmatpush.msra.mxu0 %v2873
        %3054 = vmatpush.msra.mxu0 %v2871
        %3055 = vmatpush.msra.mxu0 %v2869
        %3056 = vmatpush.msra.mxu0 %v2867
        %3057 = vmatpush.msra.mxu0 %v2865
        %3058 = vmatpush.msra.mxu0 %v2863
        %3059 = vmatpush.msra.mxu0 %v2861
        %3060 = vmatpush.msra.mxu0 %v2859
        %3061 = vmatpush.msra.mxu0 %v2857
        %3062 = vmatmul.f32.gmra.mxu0 %v2728
        %v3063 = vpop.f32.mrf.mxu0
        %v3064 = vadd.f32 %v3041, %v3063
        %3065 = vmatmul.f32.gmra.mxu0 %v2731
        %v3066 = vpop.f32.mrf.mxu0
        %v3067 = vadd.f32 %v3044, %v3066
        %3068 = vdwg.mxu0
        %3069 = vmatpush.msra.mxu0 %v2919
        %3070 = vmatpush.msra.mxu0 %v2917
        %3071 = vmatpush.msra.mxu0 %v2915
        %3072 = vmatpush.msra.mxu0 %v2913
        %3073 = vmatpush.msra.mxu0 %v2911
        %3074 = vmatpush.msra.mxu0 %v2909
        %3075 = vmatpush.msra.mxu0 %v2907
        %3076 = vmatpush.msra.mxu0 %v2905
        %3077 = vmatpush.msra.mxu0 %v2903
        %3078 = vmatpush.msra.mxu0 %v2901
        %3079 = vmatpush.msra.mxu0 %v2899
        %3080 = vmatpush.msra.mxu0 %v2897
        %3081 = vmatpush.msra.mxu0 %v2895
        %3082 = vmatpush.msra.mxu0 %v2893
        %3083 = vmatpush.msra.mxu0 %v2891
        %3084 = vmatpush.msra.mxu0 %v2889
        %3085 = vmatmul.f32.gmra.mxu0 %v2751
        %v3086 = vpop.f32.mrf.mxu0
        %v3087 = vadd.f32 %v3064, %v3086
        %3088 = vmatmul.f32.gmra.mxu0 %v2754
        %v3089 = vpop.f32.mrf.mxu0
        %v3090 = vadd.f32 %v3067, %v3089
        %3091 = vdwg.mxu0
        %3092 = vmatpush.msra.mxu0 %v2951
        %3093 = vmatpush.msra.mxu0 %v2949
        %3094 = vmatpush.msra.mxu0 %v2947
        %3095 = vmatpush.msra.mxu0 %v2945
        %3096 = vmatpush.msra.mxu0 %v2943
        %3097 = vmatpush.msra.mxu0 %v2941
        %3098 = vmatpush.msra.mxu0 %v2939
        %3099 = vmatpush.msra.mxu0 %v2937
        %3100 = vmatpush.msra.mxu0 %v2935
        %3101 = vmatpush.msra.mxu0 %v2933
        %3102 = vmatpush.msra.mxu0 %v2931
        %3103 = vmatpush.msra.mxu0 %v2929
        %3104 = vmatpush.msra.mxu0 %v2927
        %3105 = vmatpush.msra.mxu0 %v2925
        %3106 = vmatpush.msra.mxu0 %v2923
        %3107 = vmatpush.msra.mxu0 %v2921
        %3108 = vmatmul.f32.gmra.mxu0 %v2774
        %v3109 = vpop.f32.mrf.mxu0
        %v3110 = vadd.f32 %v3087, %v3109
        %3111 = vmatmul.f32.gmra.mxu0 %v2777
        %v3112 = vpop.f32.mrf.mxu0
        %v3113 = vadd.f32 %v3090, %v3112
        %3114 = vdwg.mxu0
        %3115 = vmatpush.msra.mxu0 %v2983
        %3116 = vmatpush.msra.mxu0 %v2981
        %3117 = vmatpush.msra.mxu0 %v2979
        %3118 = vmatpush.msra.mxu0 %v2977
        %3119 = vmatpush.msra.mxu0 %v2975
        %3120 = vmatpush.msra.mxu0 %v2973
        %3121 = vmatpush.msra.mxu0 %v2971
        %3122 = vmatpush.msra.mxu0 %v2969
        %3123 = vmatpush.msra.mxu0 %v2967
        %3124 = vmatpush.msra.mxu0 %v2965
        %3125 = vmatpush.msra.mxu0 %v2963
        %3126 = vmatpush.msra.mxu0 %v2961
        %3127 = vmatpush.msra.mxu0 %v2959
        %3128 = vmatpush.msra.mxu0 %v2957
        %3129 = vmatpush.msra.mxu0 %v2955
        %3130 = vmatpush.msra.mxu0 %v2953
        %3131 = vmatmul.f32.gmra.mxu0 %v2797
        %v3132 = vpop.f32.mrf.mxu0
        %v3133 = vadd.f32 %v3110, %v3132
        %3134 = vmatmul.f32.gmra.mxu0 %v2800
        %v3135 = vpop.f32.mrf.mxu0
        %v3136 = vadd.f32 %v3113, %v3135
        %3137 = vdwg.mxu0
        %3138 = vmatpush.msra.mxu0 %v3015
        %3139 = vmatpush.msra.mxu0 %v3013
        %3140 = vmatpush.msra.mxu0 %v3011
        %3141 = vmatpush.msra.mxu0 %v3009
        %3142 = vmatpush.msra.mxu0 %v3007
        %3143 = vmatpush.msra.mxu0 %v3005
        %3144 = vmatpush.msra.mxu0 %v3003
        %3145 = vmatpush.msra.mxu0 %v3001
        %3146 = vmatpush.msra.mxu0 %v2999
        %3147 = vmatpush.msra.mxu0 %v2997
        %3148 = vmatpush.msra.mxu0 %v2995
        %3149 = vmatpush.msra.mxu0 %v2993
        %3150 = vmatpush.msra.mxu0 %v2991
        %3151 = vmatpush.msra.mxu0 %v2989
        %3152 = vmatpush.msra.mxu0 %v2987
        %3153 = vmatpush.msra.mxu0 %v2985
        %3154 = vmatmul.f32.gmra.mxu0 %v2820
        %v3155 = vpop.f32.mrf.mxu0
        %v3156 = vadd.f32 %v3133, %v3155
        %3157 = vmatmul.f32.gmra.mxu0 %v2823
        %v3158 = vpop.f32.mrf.mxu0
        %v3159 = vadd.f32 %v3136, %v3158
        %3160 = vdwg.mxu0
        %3161 = vmatpush.msra.mxu0 %v2856
        %3162 = vmatpush.msra.mxu0 %v2854
        %3163 = vmatpush.msra.mxu0 %v2852
        %3164 = vmatpush.msra.mxu0 %v2850
        %3165 = vmatpush.msra.mxu0 %v2848
        %3166 = vmatpush.msra.mxu0 %v2846
        %3167 = vmatpush.msra.mxu0 %v2844
        %3168 = vmatpush.msra.mxu0 %v2842
        %3169 = vmatpush.msra.mxu0 %v2840
        %3170 = vmatpush.msra.mxu0 %v2838
        %3171 = vmatpush.msra.mxu0 %v2836
        %3172 = vmatpush.msra.mxu0 %v2834
        %3173 = vmatpush.msra.mxu0 %v2832
        %3174 = vmatpush.msra.mxu0 %v2830
        %3175 = vmatpush.msra.mxu0 %v2828
        %3176 = vmatpush.msra.mxu0 %v2826
        %3177 = vmatmul.f32.gmra.mxu0 %v2705
        %v3178 = vpop.f32.mrf.mxu0
        %v3179 = vadd.f32 %v3020, %v3178
        %3180 = vmatmul.f32.gmra.mxu0 %v2708
        %v3181 = vpop.f32.mrf.mxu0
        %v3182 = vadd.f32 %v3020, %v3181
        %3183 = vdwg.mxu0
        %3184 = vmatpush.msra.mxu0 %v2888
        %3185 = vmatpush.msra.mxu0 %v2886
        %3186 = vmatpush.msra.mxu0 %v2884
        %3187 = vmatpush.msra.mxu0 %v2882
        %3188 = vmatpush.msra.mxu0 %v2880
        %3189 = vmatpush.msra.mxu0 %v2878
        %3190 = vmatpush.msra.mxu0 %v2876
        %3191 = vmatpush.msra.mxu0 %v2874
        %3192 = vmatpush.msra.mxu0 %v2872
        %3193 = vmatpush.msra.mxu0 %v2870
        %3194 = vmatpush.msra.mxu0 %v2868
        %3195 = vmatpush.msra.mxu0 %v2866
        %3196 = vmatpush.msra.mxu0 %v2864
        %3197 = vmatpush.msra.mxu0 %v2862
        %3198 = vmatpush.msra.mxu0 %v2860
        %3199 = vmatpush.msra.mxu0 %v2858
        %3200 = vmatmul.f32.gmra.mxu0 %v2728
        %v3201 = vpop.f32.mrf.mxu0
        %v3202 = vadd.f32 %v3179, %v3201
        %3203 = vmatmul.f32.gmra.mxu0 %v2731
        %v3204 = vpop.f32.mrf.mxu0
        %v3205 = vadd.f32 %v3182, %v3204
        %3206 = vdwg.mxu0
        %3207 = vmatpush.msra.mxu0 %v2920
        %3208 = vmatpush.msra.mxu0 %v2918
        %3209 = vmatpush.msra.mxu0 %v2916
        %3210 = vmatpush.msra.mxu0 %v2914
        %3211 = vmatpush.msra.mxu0 %v2912
        %3212 = vmatpush.msra.mxu0 %v2910
        %3213 = vmatpush.msra.mxu0 %v2908
        %3214 = vmatpush.msra.mxu0 %v2906
        %3215 = vmatpush.msra.mxu0 %v2904
        %3216 = vmatpush.msra.mxu0 %v2902
        %3217 = vmatpush.msra.mxu0 %v2900
        %3218 = vmatpush.msra.mxu0 %v2898
        %3219 = vmatpush.msra.mxu0 %v2896
        %3220 = vmatpush.msra.mxu0 %v2894
        %3221 = vmatpush.msra.mxu0 %v2892
        %3222 = vmatpush.msra.mxu0 %v2890
        %3223 = vmatmul.f32.gmra.mxu0 %v2751
        %v3224 = vpop.f32.mrf.mxu0
        %v3225 = vadd.f32 %v3202, %v3224
        %3226 = vmatmul.f32.gmra.mxu0 %v2754
        %v3227 = vpop.f32.mrf.mxu0
        %v3228 = vadd.f32 %v3205, %v3227
        %3229 = vdwg.mxu0
        %3230 = vmatpush.msra.mxu0 %v2952
        %3231 = vmatpush.msra.mxu0 %v2950
        %3232 = vmatpush.msra.mxu0 %v2948
        %3233 = vmatpush.msra.mxu0 %v2946
        %3234 = vmatpush.msra.mxu0 %v2944
        %3235 = vmatpush.msra.mxu0 %v2942
        %3236 = vmatpush.msra.mxu0 %v2940
        %3237 = vmatpush.msra.mxu0 %v2938
        %3238 = vmatpush.msra.mxu0 %v2936
        %3239 = vmatpush.msra.mxu0 %v2934
        %3240 = vmatpush.msra.mxu0 %v2932
        %3241 = vmatpush.msra.mxu0 %v2930
        %3242 = vmatpush.msra.mxu0 %v2928
        %3243 = vmatpush.msra.mxu0 %v2926
        %3244 = vmatpush.msra.mxu0 %v2924
        %3245 = vmatpush.msra.mxu0 %v2922
        %3246 = vmatmul.f32.gmra.mxu0 %v2774
        %v3247 = vpop.f32.mrf.mxu0
        %v3248 = vadd.f32 %v3225, %v3247
        %3249 = vmatmul.f32.gmra.mxu0 %v2777
        %v3250 = vpop.f32.mrf.mxu0
        %v3251 = vadd.f32 %v3228, %v3250
        %3252 = vdwg.mxu0
        %3253 = vmatpush.msra.mxu0 %v2984
        %3254 = vmatpush.msra.mxu0 %v2982
        %3255 = vmatpush.msra.mxu0 %v2980
        %3256 = vmatpush.msra.mxu0 %v2978
        %3257 = vmatpush.msra.mxu0 %v2976
        %3258 = vmatpush.msra.mxu0 %v2974
        %3259 = vmatpush.msra.mxu0 %v2972
        %3260 = vmatpush.msra.mxu0 %v2970
        %3261 = vmatpush.msra.mxu0 %v2968
        %3262 = vmatpush.msra.mxu0 %v2966
        %3263 = vmatpush.msra.mxu0 %v2964
        %3264 = vmatpush.msra.mxu0 %v2962
        %3265 = vmatpush.msra.mxu0 %v2960
        %3266 = vmatpush.msra.mxu0 %v2958
        %3267 = vmatpush.msra.mxu0 %v2956
        %3268 = vmatpush.msra.mxu0 %v2954
        %3269 = vmatmul.f32.gmra.mxu0 %v2797
        %v3270 = vpop.f32.mrf.mxu0
        %v3271 = vadd.f32 %v3248, %v3270
        %3272 = vmatmul.f32.gmra.mxu0 %v2800
        %v3273 = vpop.f32.mrf.mxu0
        %v3274 = vadd.f32 %v3251, %v3273
        %3275 = vdwg.mxu0
        %3276 = vmatpush.msra.mxu0 %v3016
        %3277 = vmatpush.msra.mxu0 %v3014
        %3278 = vmatpush.msra.mxu0 %v3012
        %3279 = vmatpush.msra.mxu0 %v3010
        %3280 = vmatpush.msra.mxu0 %v3008
        %3281 = vmatpush.msra.mxu0 %v3006
        %3282 = vmatpush.msra.mxu0 %v3004
        %3283 = vmatpush.msra.mxu0 %v3002
        %3284 = vmatpush.msra.mxu0 %v3000
        %3285 = vmatpush.msra.mxu0 %v2998
        %3286 = vmatpush.msra.mxu0 %v2996
        %3287 = vmatpush.msra.mxu0 %v2994
        %3288 = vmatpush.msra.mxu0 %v2992
        %3289 = vmatpush.msra.mxu0 %v2990
        %3290 = vmatpush.msra.mxu0 %v2988
        %3291 = vmatpush.msra.mxu0 %v2986
        %3292 = vmatmul.f32.gmra.mxu0 %v2820
        %v3293 = vpop.f32.mrf.mxu0
        %v3294 = vadd.f32 %v3271, %v3293
        %3295 = vmatmul.f32.gmra.mxu0 %v2823
        %v3296 = vpop.f32.mrf.mxu0
        %v3297 = vadd.f32 %v3274, %v3296
        %3298 = vdwg.mxu0
        %v3299 = vmax.f32 %v3156, 0.0
        %v3300 = vmax.f32 %v3294, 0.0
        %v3301 = vmax.f32 %v3159, 0.0
        %v3302 = vmax.f32 %v3297, 0.0
        %3303 = vmatpush.msra.mxu0 0.0
        %3304 = vmatpush.msra.mxu0 0.0
        %3305 = vmatpush.msra.mxu0 0.0
        %3306 = vmatpush.msra.mxu0 0.0
        %3307 = vmatpush.msra.mxu0 0.0
        %3308 = vmatpush.msra.mxu0 0.0
        %3309 = vmatpush.msra.mxu0 0.0
        %3310 = vmatpush.msra.mxu0 0.0
        %3311 = vmatpush.msra.mxu0 0.0
        %3312 = vmatpush.msra.mxu0 0.0
        %3313 = vmatpush.msra.mxu0 0.0
        %3314 = vmatpush.msra.mxu0 0.0
        %3315 = vmatpush.msra.mxu0 0.0
        %3316 = vmatpush.msra.mxu0 0.0
        %3317 = vmatpush.msra.mxu0 %v3301
        %3318 = vmatpush.msra.mxu0 %v3299
        %3319 = vmatmul.f32.gmra.mxu0 %v1900
        %v3320 = vpop.f32.mrf.mxu0
        %v3321 = vadd.f32 0.0, %v3320
        %3322 = vmatmul.f32.gmra.mxu0 %v1903
        %v3323 = vpop.f32.mrf.mxu0
        %v3324 = vadd.f32 0.0, %v3323
        %3325 = vdwg.mxu0
        %3326 = vmatpush.msra.mxu0 0.0
        %3327 = vmatpush.msra.mxu0 0.0
        %3328 = vmatpush.msra.mxu0 0.0
        %3329 = vmatpush.msra.mxu0 0.0
        %3330 = vmatpush.msra.mxu0 0.0
        %3331 = vmatpush.msra.mxu0 0.0
        %3332 = vmatpush.msra.mxu0 0.0
        %3333 = vmatpush.msra.mxu0 0.0
        %3334 = vmatpush.msra.mxu0 0.0
        %3335 = vmatpush.msra.mxu0 0.0
        %3336 = vmatpush.msra.mxu0 0.0
        %3337 = vmatpush.msra.mxu0 0.0
        %3338 = vmatpush.msra.mxu0 0.0
        %3339 = vmatpush.msra.mxu0 0.0
        %3340 = vmatpush.msra.mxu0 %v3302
        %3341 = vmatpush.msra.mxu0 %v3300
        %3342 = vmatmul.f32.gmra.mxu0 %v1900
        %v3343 = vpop.f32.mrf.mxu0
        %v3344 = vadd.f32 0.0, %v3343
        %3345 = vmatmul.f32.gmra.mxu0 %v1903
        %v3346 = vpop.f32.mrf.mxu0
        %v3347 = vadd.f32 0.0, %v3346
        %3348 = vdwg.mxu0
        %3349 = vmatpush.msra.mxu0 0.0
        %3350 = vmatpush.msra.mxu0 0.0
        %3351 = vmatpush.msra.mxu0 0.0
        %3352 = vmatpush.msra.mxu0 0.0
        %3353 = vmatpush.msra.mxu0 0.0
        %3354 = vmatpush.msra.mxu0 0.0
        %3355 = vmatpush.msra.mxu0 0.0
        %3356 = vmatpush.msra.mxu0 0.0
        %3357 = vmatpush.msra.mxu0 0.0
        %3358 = vmatpush.msra.mxu0 0.0
        %3359 = vmatpush.msra.mxu0 0.0
        %3360 = vmatpush.msra.mxu0 0.0
        %3361 = vmatpush.msra.mxu0 0.0
        %3362 = vmatpush.msra.mxu0 0.0
        %3363 = vmatpush.msra.mxu0 %v3301
        %3364 = vmatpush.msra.mxu0 %v3299
        %3365 = vmatmul.f32.gmra.mxu0 %v1932
        %v3366 = vpop.f32.mrf.mxu0
        %v3367 = vadd.f32 0.0, %v3366
        %3368 = vmatmul.f32.gmra.mxu0 %v1935
        %v3369 = vpop.f32.mrf.mxu0
        %v3370 = vadd.f32 0.0, %v3369
        %3371 = vdwg.mxu0
        %3372 = vmatpush.msra.mxu0 0.0
        %3373 = vmatpush.msra.mxu0 0.0
        %3374 = vmatpush.msra.mxu0 0.0
        %3375 = vmatpush.msra.mxu0 0.0
        %3376 = vmatpush.msra.mxu0 0.0
        %3377 = vmatpush.msra.mxu0 0.0
        %3378 = vmatpush.msra.mxu0 0.0
        %3379 = vmatpush.msra.mxu0 0.0
        %3380 = vmatpush.msra.mxu0 0.0
        %3381 = vmatpush.msra.mxu0 0.0
        %3382 = vmatpush.msra.mxu0 0.0
        %3383 = vmatpush.msra.mxu0 0.0
        %3384 = vmatpush.msra.mxu0 0.0
        %3385 = vmatpush.msra.mxu0 0.0
        %3386 = vmatpush.msra.mxu0 %v3302
        %3387 = vmatpush.msra.mxu0 %v3300
        %3388 = vmatmul.f32.gmra.mxu0 %v1932
        %v3389 = vpop.f32.mrf.mxu0
        %v3390 = vadd.f32 0.0, %v3389
        %3391 = vmatmul.f32.gmra.mxu0 %v1935
        %v3392 = vpop.f32.mrf.mxu0
        %v3393 = vadd.f32 0.0, %v3392
        %3394 = vdwg.mxu0
        %3395 = vmatpush.msra.mxu0 0.0
        %3396 = vmatpush.msra.mxu0 0.0
        %3397 = vmatpush.msra.mxu0 0.0
        %3398 = vmatpush.msra.mxu0 0.0
        %3399 = vmatpush.msra.mxu0 0.0
        %3400 = vmatpush.msra.mxu0 0.0
        %3401 = vmatpush.msra.mxu0 0.0
        %3402 = vmatpush.msra.mxu0 0.0
        %3403 = vmatpush.msra.mxu0 0.0
        %3404 = vmatpush.msra.mxu0 0.0
        %3405 = vmatpush.msra.mxu0 0.0
        %3406 = vmatpush.msra.mxu0 0.0
        %3407 = vmatpush.msra.mxu0 0.0
        %3408 = vmatpush.msra.mxu0 0.0
        %3409 = vmatpush.msra.mxu0 %v3301
        %3410 = vmatpush.msra.mxu0 %v3299
        %3411 = vmatmul.f32.gmra.mxu0 %v1964
        %v3412 = vpop.f32.mrf.mxu0
        %v3413 = vadd.f32 0.0, %v3412
        %3414 = vmatmul.f32.gmra.mxu0 %v1967
        %v3415 = vpop.f32.mrf.mxu0
        %v3416 = vadd.f32 0.0, %v3415
        %3417 = vdwg.mxu0
        %3418 = vmatpush.msra.mxu0 0.0
        %3419 = vmatpush.msra.mxu0 0.0
        %3420 = vmatpush.msra.mxu0 0.0
        %3421 = vmatpush.msra.mxu0 0.0
        %3422 = vmatpush.msra.mxu0 0.0
        %3423 = vmatpush.msra.mxu0 0.0
        %3424 = vmatpush.msra.mxu0 0.0
        %3425 = vmatpush.msra.mxu0 0.0
        %3426 = vmatpush.msra.mxu0 0.0
        %3427 = vmatpush.msra.mxu0 0.0
        %3428 = vmatpush.msra.mxu0 0.0
        %3429 = vmatpush.msra.mxu0 0.0
        %3430 = vmatpush.msra.mxu0 0.0
        %3431 = vmatpush.msra.mxu0 0.0
        %3432 = vmatpush.msra.mxu0 %v3302
        %3433 = vmatpush.msra.mxu0 %v3300
        %3434 = vmatmul.f32.gmra.mxu0 %v1964
        %v3435 = vpop.f32.mrf.mxu0
        %v3436 = vadd.f32 0.0, %v3435
        %3437 = vmatmul.f32.gmra.mxu0 %v1967
        %v3438 = vpop.f32.mrf.mxu0
        %v3439 = vadd.f32 0.0, %v3438
        %3440 = vdwg.mxu0
        %v3441 = vld [vmem:[%s26] sm:$0xff]
        %v3442 = vld [vmem:[%s26 + $0x8] sm:$0xff]
        %v3443 = vld [vmem:[%s26 + $0x10] sm:$0xff]
        %v3444 = vld [vmem:[%s26 + $0x18] sm:$0xff]
        %v3445 = vld [vmem:[%s26 + $0x20] sm:$0xff]
        %v3446 = vld [vmem:[%s26 + $0x28] sm:$0xff]
        %v3447 = vld [vmem:[%s26 + $0x30] sm:$0xff]
        %v3448 = vld [vmem:[%s26 + $0x38] sm:$0xff]
        %v3449 = vld [vmem:[%s26 + $0x40] sm:$0xff]
        %v3450 = vld [vmem:[%s26 + $0x48] sm:$0xff]
        %v3451 = vld [vmem:[%s26 + $0x50] sm:$0xff]
        %v3452 = vld [vmem:[%s26 + $0x58] sm:$0xff]
        %v3453 = vld [vmem:[%s26 + $0x60] sm:$0xff]
        %v3454 = vld [vmem:[%s26 + $0x68] sm:$0xff]
        %v3455 = vld [vmem:[%s26 + $0x70] sm:$0xff]
        %v3456 = vld [vmem:[%s26 + $0x78] sm:$0xff]
        %v3457 = vld [vmem:[%s26 + $0x80] sm:$0xff]
        %v3458 = vld [vmem:[%s26 + $0x88] sm:$0xff]
        %v3459 = vld [vmem:[%s26 + $0x90] sm:$0xff]
        %v3460 = vld [vmem:[%s26 + $0x98] sm:$0xff]
        %v3461 = vld [vmem:[%s26 + $0xa0] sm:$0xff]
        %v3462 = vld [vmem:[%s26 + $0xa8] sm:$0xff]
        %v3463 = vld [vmem:[%s26 + $0xb0] sm:$0xff]
        %v3464 = vld [vmem:[%s26 + $0xb8] sm:$0xff]
        %v3465 = vld [vmem:[%s26 + $0xc0] sm:$0xff]
        %v3466 = vld [vmem:[%s26 + $0xc8] sm:$0xff]
        %v3467 = vld [vmem:[%s26 + $0xd0] sm:$0xff]
        %v3468 = vld [vmem:[%s26 + $0xd8] sm:$0xff]
        %v3469 = vld [vmem:[%s26 + $0xe0] sm:$0xff]
        %v3470 = vld [vmem:[%s26 + $0xe8] sm:$0xff]
        %v3471 = vld [vmem:[%s26 + $0xf0] sm:$0xff]
        %v3472 = vld [vmem:[%s26 + $0xf8] sm:$0xff]
        %v3473 = vld [vmem:[%s26 + $0x100] sm:$0xff]
        %v3474 = vld [vmem:[%s26 + $0x108] sm:$0xff]
        %v3475 = vld [vmem:[%s26 + $0x110] sm:$0xff]
        %v3476 = vld [vmem:[%s26 + $0x118] sm:$0xff]
        %v3477 = vld [vmem:[%s26 + $0x120] sm:$0xff]
        %v3478 = vld [vmem:[%s26 + $0x128] sm:$0xff]
        %v3479 = vld [vmem:[%s26 + $0x130] sm:$0xff]
        %v3480 = vld [vmem:[%s26 + $0x138] sm:$0xff]
        %v3481 = vld [vmem:[%s26 + $0x140] sm:$0xff]
        %v3482 = vld [vmem:[%s26 + $0x148] sm:$0xff]
        %v3483 = vld [vmem:[%s26 + $0x150] sm:$0xff]
        %v3484 = vld [vmem:[%s26 + $0x158] sm:$0xff]
        %v3485 = vld [vmem:[%s26 + $0x160] sm:$0xff]
        %v3486 = vld [vmem:[%s26 + $0x168] sm:$0xff]
        %v3487 = vld [vmem:[%s26 + $0x170] sm:$0xff]
        %v3488 = vld [vmem:[%s26 + $0x178] sm:$0xff]
        %v3489 = vld [vmem:[%s26 + $0x180] sm:$0xff]
        %v3490 = vld [vmem:[%s26 + $0x188] sm:$0xff]
        %v3491 = vld [vmem:[%s26 + $0x190] sm:$0xff]
        %v3492 = vld [vmem:[%s26 + $0x198] sm:$0xff]
        %v3493 = vld [vmem:[%s26 + $0x1a0] sm:$0xff]
        %v3494 = vld [vmem:[%s26 + $0x1a8] sm:$0xff]
        %v3495 = vld [vmem:[%s26 + $0x1b0] sm:$0xff]
        %v3496 = vld [vmem:[%s26 + $0x1b8] sm:$0xff]
        %v3497 = vld [vmem:[%s26 + $0x1c0] sm:$0xff]
        %v3498 = vld [vmem:[%s26 + $0x1c8] sm:$0xff]
        %v3499 = vld [vmem:[%s26 + $0x1d0] sm:$0xff]
        %v3500 = vld [vmem:[%s26 + $0x1d8] sm:$0xff]
        %v3501 = vld [vmem:[%s26 + $0x1e0] sm:$0xff]
        %v3502 = vld [vmem:[%s26 + $0x1e8] sm:$0xff]
        %v3503 = vld [vmem:[%s26 + $0x1f0] sm:$0xff]
        %v3504 = vld [vmem:[%s26 + $0x1f8] sm:$0xff]
        %v3505 = vld [vmem:[%s26 + $0x200] sm:$0xff]
        %v3506 = vld [vmem:[%s26 + $0x208] sm:$0xff]
        %v3507 = vld [vmem:[%s26 + $0x210] sm:$0xff]
        %v3508 = vld [vmem:[%s26 + $0x218] sm:$0xff]
        %v3509 = vld [vmem:[%s26 + $0x220] sm:$0xff]
        %v3510 = vld [vmem:[%s26 + $0x228] sm:$0xff]
        %v3511 = vld [vmem:[%s26 + $0x230] sm:$0xff]
        %v3512 = vld [vmem:[%s26 + $0x238] sm:$0xff]
        %v3513 = vld [vmem:[%s26 + $0x240] sm:$0xff]
        %v3514 = vld [vmem:[%s26 + $0x248] sm:$0xff]
        %v3515 = vld [vmem:[%s26 + $0x250] sm:$0xff]
        %v3516 = vld [vmem:[%s26 + $0x258] sm:$0xff]
        %v3517 = vld [vmem:[%s26 + $0x260] sm:$0xff]
        %v3518 = vld [vmem:[%s26 + $0x268] sm:$0xff]
        %v3519 = vld [vmem:[%s26 + $0x270] sm:$0xff]
        %v3520 = vld [vmem:[%s26 + $0x278] sm:$0xff]
        %v3521 = vld [vmem:[%s26 + $0x280] sm:$0xff]
        %v3522 = vld [vmem:[%s26 + $0x288] sm:$0xff]
        %v3523 = vld [vmem:[%s26 + $0x290] sm:$0xff]
        %v3524 = vld [vmem:[%s26 + $0x298] sm:$0xff]
        %v3525 = vld [vmem:[%s26 + $0x2a0] sm:$0xff]
        %v3526 = vld [vmem:[%s26 + $0x2a8] sm:$0xff]
        %v3527 = vld [vmem:[%s26 + $0x2b0] sm:$0xff]
        %v3528 = vld [vmem:[%s26 + $0x2b8] sm:$0xff]
        %v3529 = vld [vmem:[%s26 + $0x2c0] sm:$0xff]
        %v3530 = vld [vmem:[%s26 + $0x2c8] sm:$0xff]
        %v3531 = vld [vmem:[%s26 + $0x2d0] sm:$0xff]
        %v3532 = vld [vmem:[%s26 + $0x2d8] sm:$0xff]
        %v3533 = vld [vmem:[%s26 + $0x2e0] sm:$0xff]
        %v3534 = vld [vmem:[%s26 + $0x2e8] sm:$0xff]
        %v3535 = vld [vmem:[%s26 + $0x2f0] sm:$0xff]
        %v3536 = vld [vmem:[%s26 + $0x2f8] sm:$0xff]
        %v3537 = vld [vmem:[#allocation22] sm:$0x1]
        %v3539 = vperm.slane %v3537, 0
        %3541 = vmatpush.msra.mxu0 %v3456
        %3542 = vmatpush.msra.mxu0 %v3455
        %3543 = vmatpush.msra.mxu0 %v3454
        %3544 = vmatpush.msra.mxu0 %v3453
        %3545 = vmatpush.msra.mxu0 %v3452
        %3546 = vmatpush.msra.mxu0 %v3451
        %3547 = vmatpush.msra.mxu0 %v3450
        %3548 = vmatpush.msra.mxu0 %v3449
        %3549 = vmatpush.msra.mxu0 %v3448
        %3550 = vmatpush.msra.mxu0 %v3447
        %3551 = vmatpush.msra.mxu0 %v3446
        %3552 = vmatpush.msra.mxu0 %v3445
        %3553 = vmatpush.msra.mxu0 %v3444
        %3554 = vmatpush.msra.mxu0 %v3443
        %3555 = vmatpush.msra.mxu0 %v3442
        %3556 = vmatpush.msra.mxu0 %v3441
        %3557 = vmatmul.f32.gmra.mxu0 %v3321
        %v3558 = vpop.f32.mrf.mxu0
        %v3559 = vadd.f32 %v3539, %v3558
        %3560 = vmatmul.f32.gmra.mxu0 %v3324
        %v3561 = vpop.f32.mrf.mxu0
        %v3562 = vadd.f32 %v3539, %v3561
        %3563 = vdwg.mxu0
        %3564 = vmatpush.msra.mxu0 %v3472
        %3565 = vmatpush.msra.mxu0 %v3471
        %3566 = vmatpush.msra.mxu0 %v3470
        %3567 = vmatpush.msra.mxu0 %v3469
        %3568 = vmatpush.msra.mxu0 %v3468
        %3569 = vmatpush.msra.mxu0 %v3467
        %3570 = vmatpush.msra.mxu0 %v3466
        %3571 = vmatpush.msra.mxu0 %v3465
        %3572 = vmatpush.msra.mxu0 %v3464
        %3573 = vmatpush.msra.mxu0 %v3463
        %3574 = vmatpush.msra.mxu0 %v3462
        %3575 = vmatpush.msra.mxu0 %v3461
        %3576 = vmatpush.msra.mxu0 %v3460
        %3577 = vmatpush.msra.mxu0 %v3459
        %3578 = vmatpush.msra.mxu0 %v3458
        %3579 = vmatpush.msra.mxu0 %v3457
        %3580 = vmatmul.f32.gmra.mxu0 %v3344
        %v3581 = vpop.f32.mrf.mxu0
        %v3582 = vadd.f32 %v3559, %v3581
        %3583 = vmatmul.f32.gmra.mxu0 %v3347
        %v3584 = vpop.f32.mrf.mxu0
        %v3585 = vadd.f32 %v3562, %v3584
        %3586 = vdwg.mxu0
        %3587 = vmatpush.msra.mxu0 %v3488
        %3588 = vmatpush.msra.mxu0 %v3487
        %3589 = vmatpush.msra.mxu0 %v3486
        %3590 = vmatpush.msra.mxu0 %v3485
        %3591 = vmatpush.msra.mxu0 %v3484
        %3592 = vmatpush.msra.mxu0 %v3483
        %3593 = vmatpush.msra.mxu0 %v3482
        %3594 = vmatpush.msra.mxu0 %v3481
        %3595 = vmatpush.msra.mxu0 %v3480
        %3596 = vmatpush.msra.mxu0 %v3479
        %3597 = vmatpush.msra.mxu0 %v3478
        %3598 = vmatpush.msra.mxu0 %v3477
        %3599 = vmatpush.msra.mxu0 %v3476
        %3600 = vmatpush.msra.mxu0 %v3475
        %3601 = vmatpush.msra.mxu0 %v3474
        %3602 = vmatpush.msra.mxu0 %v3473
        %3603 = vmatmul.f32.gmra.mxu0 %v3367
        %v3604 = vpop.f32.mrf.mxu0
        %v3605 = vadd.f32 %v3582, %v3604
        %3606 = vmatmul.f32.gmra.mxu0 %v3370
        %v3607 = vpop.f32.mrf.mxu0
        %v3608 = vadd.f32 %v3585, %v3607
        %3609 = vdwg.mxu0
        %3610 = vmatpush.msra.mxu0 %v3504
        %3611 = vmatpush.msra.mxu0 %v3503
        %3612 = vmatpush.msra.mxu0 %v3502
        %3613 = vmatpush.msra.mxu0 %v3501
        %3614 = vmatpush.msra.mxu0 %v3500
        %3615 = vmatpush.msra.mxu0 %v3499
        %3616 = vmatpush.msra.mxu0 %v3498
        %3617 = vmatpush.msra.mxu0 %v3497
        %3618 = vmatpush.msra.mxu0 %v3496
        %3619 = vmatpush.msra.mxu0 %v3495
        %3620 = vmatpush.msra.mxu0 %v3494
        %3621 = vmatpush.msra.mxu0 %v3493
        %3622 = vmatpush.msra.mxu0 %v3492
        %3623 = vmatpush.msra.mxu0 %v3491
        %3624 = vmatpush.msra.mxu0 %v3490
        %3625 = vmatpush.msra.mxu0 %v3489
        %3626 = vmatmul.f32.gmra.mxu0 %v3390
        %v3627 = vpop.f32.mrf.mxu0
        %v3628 = vadd.f32 %v3605, %v3627
        %3629 = vmatmul.f32.gmra.mxu0 %v3393
        %v3630 = vpop.f32.mrf.mxu0
        %v3631 = vadd.f32 %v3608, %v3630
        %3632 = vdwg.mxu0
        %3633 = vmatpush.msra.mxu0 %v3520
        %3634 = vmatpush.msra.mxu0 %v3519
        %3635 = vmatpush.msra.mxu0 %v3518
        %3636 = vmatpush.msra.mxu0 %v3517
        %3637 = vmatpush.msra.mxu0 %v3516
        %3638 = vmatpush.msra.mxu0 %v3515
        %3639 = vmatpush.msra.mxu0 %v3514
        %3640 = vmatpush.msra.mxu0 %v3513
        %3641 = vmatpush.msra.mxu0 %v3512
        %3642 = vmatpush.msra.mxu0 %v3511
        %3643 = vmatpush.msra.mxu0 %v3510
        %3644 = vmatpush.msra.mxu0 %v3509
        %3645 = vmatpush.msra.mxu0 %v3508
        %3646 = vmatpush.msra.mxu0 %v3507
        %3647 = vmatpush.msra.mxu0 %v3506
        %3648 = vmatpush.msra.mxu0 %v3505
        %3649 = vmatmul.f32.gmra.mxu0 %v3413
        %v3650 = vpop.f32.mrf.mxu0
        %v3651 = vadd.f32 %v3628, %v3650
        %3652 = vmatmul.f32.gmra.mxu0 %v3416
        %v3653 = vpop.f32.mrf.mxu0
        %v3654 = vadd.f32 %v3631, %v3653
        %3655 = vdwg.mxu0
        %3656 = vmatpush.msra.mxu0 %v3536
        %3657 = vmatpush.msra.mxu0 %v3535
        %3658 = vmatpush.msra.mxu0 %v3534
        %3659 = vmatpush.msra.mxu0 %v3533
        %3660 = vmatpush.msra.mxu0 %v3532
        %3661 = vmatpush.msra.mxu0 %v3531
        %3662 = vmatpush.msra.mxu0 %v3530
        %3663 = vmatpush.msra.mxu0 %v3529
        %3664 = vmatpush.msra.mxu0 %v3528
        %3665 = vmatpush.msra.mxu0 %v3527
        %3666 = vmatpush.msra.mxu0 %v3526
        %3667 = vmatpush.msra.mxu0 %v3525
        %3668 = vmatpush.msra.mxu0 %v3524
        %3669 = vmatpush.msra.mxu0 %v3523
        %3670 = vmatpush.msra.mxu0 %v3522
        %3671 = vmatpush.msra.mxu0 %v3521
        %3672 = vmatmul.f32.gmra.mxu0 %v3436
        %v3673 = vpop.f32.mrf.mxu0
        %v3674 = vadd.f32 %v3651, %v3673
        %3675 = vmatmul.f32.gmra.mxu0 %v3439
        %v3676 = vpop.f32.mrf.mxu0
        %v3677 = vadd.f32 %v3654, %v3676
        %3678 = vdwg.mxu0
        %v3679 = vtanh.pop %v3674
        %v3680 = vtanh.pop %v3677
        %3681 = vst.msk [vmem:[%s1110] sm:$0xff] %vm1213, %v3679
        %3682 = vst.msk [vmem:[%s1110 + $0x8] sm:$0xff] %vm1213, %v3680
        %p3683 = scmp.lt.s32.totalorder %s49, 1
        %s3684 = scalar_select %p3683, %s49, 1
        %s3685 = smul.addr %s3684, 2
        %s3686 = smul.addr %s3685, 8
        %s3687 = scalar_lea.vmem %s28, %s3686
        // Predicated region
        $region189: #{combined_model_forward.1} parent=131 // pred_check
          %p3688 = pneg %p670
        $region190: #{combined_model_forward.1} parent=131 // pred_check_branch
          %3690 = sbr.rel (%p3688) target = $region192
        $region191: #{combined_model_forward.1} parent=131 // pred_region
          _
        $region192: #{combined_model_forward.1} parent=131 // pred_fallthru
          _
      $region132: #{combined_model_forward.1} parent=5 // pred_fallthru
        _
      %p3691 = scmp.le.s32.totalorder 2, %s44
      // Predicated region
      $region193: #{combined_model_forward.1} parent=5 // pred_check
        %p3692 = pneg %p3691
      $region194: #{combined_model_forward.1} parent=5 // pred_check_branch
        %3694 = sbr.rel (%p3692) target = $region196
      $region195: #{combined_model_forward.1} parent=5 // pred_region
        %s3695 = ssub.s32 %s44, 2
        // Predicated region
        $region197: #{combined_model_forward.1} parent=195 // pred_check
          %p3696 = pneg %p676
        $region198: #{combined_model_forward.1} parent=195 // pred_check_branch
          %3698 = sbr.rel (%p3696) target = $region200
        $region199: #{combined_model_forward.1} parent=195 // pred_region
          %p3699 = scmp.lt.s32.totalorder %s50, 1
          %s3700 = scalar_select %p3699, %s50, 1
          %s3701 = smul.addr %s3700, 2
          %s3702 = smul.addr %s3701, 8
          %s3703 = scalar_lea.vmem %s28, %s3702
        $region200: #{combined_model_forward.1} parent=195 // pred_fallthru
          _
      $region196: #{combined_model_forward.1} parent=5 // pred_fallthru
        _
    $region6: #{combined_model_forward.1} parent=1 // loop_footer
      %s48 = sadd.s32 1, %s44
    $region7: #{combined_model_forward.1} parent=1 // loop_footer_branch
      %43 = sbr.rel target = $region3
    $region8: #{combined_model_forward.1} parent=1 // loop_exit
      _
    %3704 = vsyncpa [#allocation3], 1
    %s3705 = scalar_lea.sflag [#allocation3], 1
    %3706 = vsyncpa %s3705, 1
    %3707 = vsyncpa [#allocation5], 1
    %3708 = vsyncpa [#allocation8], 1
    %3709 = vsyncpa [#allocation11], 1
    %3710 = vsyncpa [#allocation14], 1
    %3711 = vsyncpa [#allocation17], 1
    %3712 = vsyncpa [#allocation20], 1
    %3713 = vsyncpa [#allocation23], 1

</llo_original>
